<compile_context>
chip_gen: v6e
topology: v6e:2x2x1
jax: 0.10.0
libtpu: 0.0.40
codegen_flags: <defaults>
</compile_context>

<pallas_src>
import math
import functools

import jax
import jax.numpy as jnp
from jax.experimental import pallas as pl
from jax.experimental.pallas import tpu as pltpu

# ----------------------------- config (small) -------------------------------
VOCAB = 50
EMB = 32            # embedding_dim
HID = 32            # hidden_size
KERNEL_SIZES = [3]
ENC_LAYERS = 2
NUM_BLOCKS = 2
NUM_CLASSES = 2
BATCH = 2
SEQ = 8
BL = BATCH * SEQ

NEG_BIG = -10000000.0


# ----------------------------- in-kernel helpers ----------------------------
def _gelu(x):
    # exact GeLU formula from the PyTorch module
    return 0.5 * x * (1.0 + jnp.tanh(x * 0.7978845608 * (1.0 + 0.044715 * x * x)))


def _softmax(x, axis):
    m = jnp.max(x, axis=axis, keepdims=True)
    e = jnp.exp(x - m)
    s = jnp.sum(e, axis=axis, keepdims=True)
    return e * pl.reciprocal(s, approx=True)


def _onehot_embed(tok_col, emb):
    # tok_col: (BL, 1) int32, emb: (VOCAB, EMB).  One-hot matmul = gather.
    vocab_iota = jax.lax.broadcasted_iota(jnp.int32, (BL, VOCAB), 1)
    oh = (vocab_iota == tok_col).astype(jnp.float32)
    return jnp.dot(oh, emb, preferred_element_type=jnp.float32)


def _conv_layer(x, mask_col, layer_wbs):
    # x: (BL, Cin) masked-filled below; one im2col matmul per kernel size.
    xm = x * mask_col                     # masked_fill_(~mask, 0.0)
    cin = xm.shape[-1]
    outs = []
    for (w2, bvec, k) in layer_wbs:       # w2: (K*Cin, Cout), bvec: (1, Cout)
        pad = (k - 1) // 2
        cols_rows = []
        for bi in range(BATCH):           # zero-pad per sequence (no cross-batch leak)
            xb = xm[bi * SEQ:(bi + 1) * SEQ, :]
            if pad > 0:
                z = jnp.zeros((pad, cin), jnp.float32)
                xp = jnp.concatenate([z, xb, z], axis=0)
            else:
                xp = xb
            cols = jnp.concatenate([xp[kk:kk + SEQ, :] for kk in range(k)], axis=-1)
            cols_rows.append(cols)        # (SEQ, K*Cin)
        cols_all = jnp.concatenate(cols_rows, axis=0)       # (BL, K*Cin)
        y = jnp.dot(cols_all, w2, preferred_element_type=jnp.float32) + bvec
        outs.append(_gelu(y))
    return outs[0] if len(outs) == 1 else jnp.concatenate(outs, axis=-1)


def _encoder(x, mask_col, enc_wbs):
    for layer_wbs in enc_wbs:
        x = _conv_layer(x, mask_col, layer_wbs)
    return x                              # dropout = identity


def _connection(x, res, i):
    if i == 1:
        return jnp.concatenate([x, res], axis=-1)
    hs = x.shape[-1]
    xx = (res[:, :hs] + x) * math.sqrt(0.5)
    return jnp.concatenate([xx, res[:, hs:]], axis=-1)


def _alignment(a, b, ma_col, mb_col, mb_row, proj_w, proj_b, temperature):
    pa = _gelu(jnp.dot(a, proj_w, preferred_element_type=jnp.float32) + proj_b)
    pb = _gelu(jnp.dot(b, proj_w, preferred_element_type=jnp.float32) + proj_b)
    fa_rows, fb_rows = [], []
    for bi in range(BATCH):
        s = slice(bi * SEQ, (bi + 1) * SEQ)
        # attn[q, k] = <pa[q], pb[k]> * temperature
        attn = jax.lax.dot_general(
            pa[s], pb[s], (((1,), (1,)), ((), ())),
            preferred_element_type=jnp.float32) * temperature
        pair = ma_col[s] * mb_row[bi:bi + 1, :]          # (SEQ, SEQ) {0,1}
        attn = jnp.where(pair > 0, attn, NEG_BIG)
        attn_a = _softmax(attn, axis=0)                  # softmax over seq of a
        attn_b = _softmax(attn, axis=1)                  # softmax over seq of b
        # feature_b = attn_a^T @ a ; feature_a = attn_b @ b
        fb_rows.append(jax.lax.dot_general(
            attn_a, a[s], (((0,), (0,)), ((), ())),
            preferred_element_type=jnp.float32))
        fa_rows.append(jnp.dot(attn_b, b[s], preferred_element_type=jnp.float32))
    return jnp.concatenate(fa_rows, axis=0), jnp.concatenate(fb_rows, axis=0)


def _fusion(x, align, f1_w, f1_b, ff_w, ff_b):
    # NOTE: the reference forward uses fusion1 for all three branches; reproduced.
    # Stack the three branches along rows -> ONE matmul against f1_w.
    lhs = jnp.concatenate([
        jnp.concatenate([x, align], axis=-1),
        jnp.concatenate([x, x - align], axis=-1),
        jnp.concatenate([x, x * align], axis=-1),
    ], axis=0)                                           # (3*BL, 2*D)
    h = _gelu(jnp.dot(lhs, f1_w, preferred_element_type=jnp.float32) + f1_b)
    hc = jnp.concatenate([h[:BL], h[BL:2 * BL], h[2 * BL:]], axis=-1)   # (BL, 3H)
    return _gelu(jnp.dot(hc, ff_w, preferred_element_type=jnp.float32) + ff_b)


def _pooling(x, mask_col):
    rows = []
    for bi in range(BATCH):
        s = slice(bi * SEQ, (bi + 1) * SEQ)
        xm = jnp.where(mask_col[s] > 0, x[s], NEG_BIG)   # NEG_BIG, not -inf
        rows.append(jnp.max(xm, axis=0, keepdims=True))
    return jnp.concatenate(rows, axis=0)                 # (B, H)


def _prediction(ap, bp, p1_w, p1_b, p2_w, p2_b):
    x = jnp.concatenate([ap, bp, ap - bp, ap * bp], axis=-1)       # (B, 4H)
    h = _gelu(jnp.dot(x, p1_w, preferred_element_type=jnp.float32) + p1_b)
    return jnp.dot(h, p2_w, preferred_element_type=jnp.float32) + p2_b


# ----------------------------- the fused kernel ------------------------------
def re2_fused_kernel(*refs, temperature):
    out_ref = refs[-1]
    it = iter(refs[:-1])

    a_tok = next(it)[...]          # (BL, 1) int32
    b_tok = next(it)[...]
    ma_col = next(it)[...]         # (BL, 1) float {0,1}
    mb_col = next(it)[...]
    ma_row = next(it)[...]         # (B, SEQ)
    mb_row = next(it)[...]
    emb = next(it)[...]            # (VOCAB, EMB)

    a = _onehot_embed(a_tok, emb)  # (BL, EMB)
    b = _onehot_embed(b_tok, emb)
    res_a, res_b = a, b

    for i in range(NUM_BLOCKS):
        # --- read this block's weights (same order as flatten_params) ---
        enc_wbs = []
        for _li in range(ENC_LAYERS):
            layer = []
            for k in KERNEL_SIZES:
                w2 = next(it)[...]       # (K*Cin, Cout)
                bvec = next(it)[...]     # (1, Cout)
                layer.append((w2, bvec, k))
            enc_wbs.append(layer)
        proj_w = next(it)[...]; proj_b = next(it)[...]
        f1_w = next(it)[...]; f1_b = next(it)[...]
        ff_w = next(it)[...]; ff_b = next(it)[...]

        if i > 0:
            a = _connection(a, res_a, i)
            b = _connection(b, res_b, i)
            res_a, res_b = a, b

        a_enc = _encoder(a, ma_col, enc_wbs)
        b_enc = _encoder(b, mb_col, enc_wbs)
        a = jnp.concatenate([a, a_enc], axis=-1)
        b = jnp.concatenate([b, b_enc], axis=-1)

        align_a, align_b = _alignment(a, b, ma_col, mb_col, mb_row,
                                      proj_w, proj_b, temperature)
        # note: feature_a uses b-side attention weights built from a/b symmetrically;
        # the same kernel call produces both directions, so ma_row is unused here.
        del ma_row  # (only mb_row is needed for the pair mask; keep signature symmetric)
        ma_row = None

        a = _fusion(a, align_a, f1_w, f1_b, ff_w, ff_b)
        b = _fusion(b, align_b, f1_w, f1_b, ff_w, ff_b)

        # re-read the row mask ref value is not needed again; restore for next loop
        # (mask rows are constants across blocks)
        ma_row = refs[4][...]

    p1_w = next(it)[...]; p1_b = next(it)[...]
    p2_w = next(it)[...]; p2_b = next(it)[...]

    ap = _pooling(a, ma_col)
    bp = _pooling(b, mb_col)
    out_ref[...] = _prediction(ap, bp, p1_w, p1_b, p2_w, p2_b).astype(out_ref.dtype)


# ----------------------------- host-side wrapper -----------------------------
def flatten_params(params):
    flat = [params["embedding"]]
    for blk in params["blocks"]:
        for layer in blk["encoder"]:
            for (w, bvec, _k) in layer:
                flat.append(w.reshape(-1, w.shape[-1]))      # (K*Cin, Cout)
                flat.append(bvec.reshape(1, -1))
        flat.append(blk["proj_w"]); flat.append(blk["proj_b"].reshape(1, -1))
        flat.append(blk["f1_w"]);   flat.append(blk["f1_b"].reshape(1, -1))
        flat.append(blk["ff_w"]);   flat.append(blk["ff_b"].reshape(1, -1))
    flat += [params["p1_w"], params["p1_b"].reshape(1, -1),
             params["p2_w"], params["p2_b"].reshape(1, -1)]
    return flat


def re2_forward(params, a_tok, b_tok, mask_a, mask_b):
    flat = flatten_params(params)
    a_col = a_tok.reshape(BL, 1).astype(jnp.int32)
    b_col = b_tok.reshape(BL, 1).astype(jnp.int32)
    ma_col = mask_a.reshape(BL, 1).astype(jnp.float32)
    mb_col = mask_b.reshape(BL, 1).astype(jnp.float32)
    ma_row = mask_a.reshape(BATCH, SEQ).astype(jnp.float32)
    mb_row = mask_b.reshape(BATCH, SEQ).astype(jnp.float32)

    temperature = float(1.0 / math.sqrt(HID))   # nn.Parameter init value
    kern = functools.partial(re2_fused_kernel, temperature=temperature)

    return pl.pallas_call(
        kern,
        out_shape=jax.ShapeDtypeStruct((BATCH, NUM_CLASSES), jnp.float32),
        compiler_params=pltpu.CompilerParams(vmem_limit_bytes=32 * 1024 * 1024),
    )(a_col, b_col, ma_col, mb_col, ma_row, mb_row, *flat)


# ----------------------------- parameters ------------------------------------
class ParamGen:
    def __init__(self, key):
        self.key = key

    def normal(self, shape, std):
        self.key, sub = jax.random.split(self.key)
        return std * jax.random.normal(sub, shape, dtype=jnp.float32)


def build_params(pg):
    params = {}
    emb = pg.normal((VOCAB, EMB), 1.0)
    params["embedding"] = emb.at[0].set(0.0)      # padding_idx = 0

    blocks = []
    for i in range(NUM_BLOCKS):
        enc_in = EMB if i == 0 else EMB + HID
        align_in = EMB + HID if i == 0 else EMB + 2 * HID
        oc = HID // len(KERNEL_SIZES)

        enc = []
        for li in range(ENC_LAYERS):
            cin = enc_in if li == 0 else HID
            layer = []
            for k in KERNEL_SIZES:
                w = pg.normal((k, cin, oc), math.sqrt(2.0 / (cin * k)))
                layer.append((w, jnp.zeros((oc,), jnp.float32), k))
            enc.append(layer)

        blk = {
            "encoder": enc,
            "proj_w": pg.normal((align_in, HID), math.sqrt(2.0 / align_in)),
            "proj_b": jnp.zeros((HID,), jnp.float32),
            # fusion2 / fusion3 exist in the module but are unused in forward
            "f1_w": pg.normal((align_in * 2, HID), math.sqrt(2.0 / (align_in * 2))),
            "f1_b": jnp.zeros((HID,), jnp.float32),
            "ff_w": pg.normal((HID * 3, HID), math.sqrt(2.0 / (HID * 3))),
            "ff_b": jnp.zeros((HID,), jnp.float32),
        }
        blocks.append(blk)
    params["blocks"] = blocks

    params["p1_w"] = pg.normal((HID * 4, HID), math.sqrt(2.0 / (HID * 4)))
    params["p1_b"] = jnp.zeros((HID,), jnp.float32)
    params["p2_w"] = pg.normal((HID, NUM_CLASSES), math.sqrt(1.0 / HID))
    params["p2_b"] = jnp.zeros((NUM_CLASSES,), jnp.float32)
    return params


# ----------------------------- main -------------------------------------------
if __name__ == "__main__":
    root = jax.random.PRNGKey(0)
    k_params, k_a, k_b = jax.random.split(root, 3)

    params = build_params(ParamGen(k_params))

    # deterministic token inputs with padding (token 0 = pad)
    lens_a = jnp.array([SEQ, 5])
    lens_b = jnp.array([6, SEQ])
    pos = jnp.arange(SEQ)[None, :]
    mask_a = (pos < lens_a[:, None]).astype(jnp.float32)[:, :, None]  # (B, L, 1)
    mask_b = (pos < lens_b[:, None]).astype(jnp.float32)[:, :, None]

    a_tok = jax.random.randint(k_a, (BATCH, SEQ), 1, VOCAB)
    b_tok = jax.random.randint(k_b, (BATCH, SEQ), 1, VOCAB)
    a_tok = (a_tok * mask_a[:, :, 0]).astype(jnp.int32)
    b_tok = (b_tok * mask_b[:, :, 0]).astype(jnp.int32)

    fwd = jax.jit(re2_forward)
    logits = fwd(params, a_tok, b_tok, mask_a, mask_b)
    jax.block_until_ready(logits)
    assert logits.shape == (BATCH, NUM_CLASSES)
    assert bool(jnp.all(jnp.isfinite(logits)))
    print("KERNEL_OK")
</pallas_src>

<mosaic_0001>
module attributes {stable_mosaic.version = 11 : i64} {
  func.func @re2_fused_kernel(%arg0: memref<16x1xi32, #tpu.memory_space<vmem>>, %arg1: memref<16x1xi32, #tpu.memory_space<vmem>>, %arg2: memref<16x1xf32, #tpu.memory_space<vmem>>, %arg3: memref<16x1xf32, #tpu.memory_space<vmem>>, %arg4: memref<2x8xf32, #tpu.memory_space<vmem>>, %arg5: memref<2x8xf32, #tpu.memory_space<vmem>>, %arg6: memref<50x32xf32, #tpu.memory_space<vmem>>, %arg7: memref<96x32xf32, #tpu.memory_space<vmem>>, %arg8: memref<1x32xf32, #tpu.memory_space<vmem>>, %arg9: memref<96x32xf32, #tpu.memory_space<vmem>>, %arg10: memref<1x32xf32, #tpu.memory_space<vmem>>, %arg11: memref<64x32xf32, #tpu.memory_space<vmem>>, %arg12: memref<1x32xf32, #tpu.memory_space<vmem>>, %arg13: memref<128x32xf32, #tpu.memory_space<vmem>>, %arg14: memref<1x32xf32, #tpu.memory_space<vmem>>, %arg15: memref<96x32xf32, #tpu.memory_space<vmem>>, %arg16: memref<1x32xf32, #tpu.memory_space<vmem>>, %arg17: memref<192x32xf32, #tpu.memory_space<vmem>>, %arg18: memref<1x32xf32, #tpu.memory_space<vmem>>, %arg19: memref<96x32xf32, #tpu.memory_space<vmem>>, %arg20: memref<1x32xf32, #tpu.memory_space<vmem>>, %arg21: memref<96x32xf32, #tpu.memory_space<vmem>>, %arg22: memref<1x32xf32, #tpu.memory_space<vmem>>, %arg23: memref<192x32xf32, #tpu.memory_space<vmem>>, %arg24: memref<1x32xf32, #tpu.memory_space<vmem>>, %arg25: memref<96x32xf32, #tpu.memory_space<vmem>>, %arg26: memref<1x32xf32, #tpu.memory_space<vmem>>, %arg27: memref<128x32xf32, #tpu.memory_space<vmem>>, %arg28: memref<1x32xf32, #tpu.memory_space<vmem>>, %arg29: memref<32x2xf32, #tpu.memory_space<vmem>>, %arg30: memref<1x2xf32, #tpu.memory_space<vmem>>, %arg31: memref<2x2xf32, #tpu.memory_space<vmem>>) attributes {dimension_semantics = [], scalar_prefetch = 0 : i64, scratch_operands = 0 : i64, tpu.core_type = #tpu.core_type<tc>} {
    %c0 = arith.constant 0 : index
    %c0_0 = arith.constant 0 : index
    %0 = vector.load %arg0[%c0, %c0_0] : memref<16x1xi32, #tpu.memory_space<vmem>>, vector<16x1xi32>
    %c0_1 = arith.constant 0 : index
    %c0_2 = arith.constant 0 : index
    %1 = vector.load %arg1[%c0_1, %c0_2] : memref<16x1xi32, #tpu.memory_space<vmem>>, vector<16x1xi32>
    %c0_3 = arith.constant 0 : index
    %c0_4 = arith.constant 0 : index
    %2 = vector.load %arg2[%c0_3, %c0_4] : memref<16x1xf32, #tpu.memory_space<vmem>>, vector<16x1xf32>
    %c0_5 = arith.constant 0 : index
    %c0_6 = arith.constant 0 : index
    %3 = vector.load %arg3[%c0_5, %c0_6] : memref<16x1xf32, #tpu.memory_space<vmem>>, vector<16x1xf32>
    %c0_7 = arith.constant 0 : index
    %c0_8 = arith.constant 0 : index
    %4 = vector.load %arg5[%c0_7, %c0_8] : memref<2x8xf32, #tpu.memory_space<vmem>>, vector<2x8xf32>
    %c0_9 = arith.constant 0 : index
    %c0_10 = arith.constant 0 : index
    %5 = vector.load %arg6[%c0_9, %c0_10] : memref<50x32xf32, #tpu.memory_space<vmem>>, vector<50x32xf32>
    %6 = tpu.iota {dimensions = array<i32: 1>} : vector<16x50xi32>
    %7 = vector.broadcast %0 : vector<16x1xi32> to vector<16x50xi32>
    %8 = arith.cmpi eq, %6, %7 : vector<16x50xi32>
    %9 = arith.extui %8 : vector<16x50xi1> to vector<16x50xi32>
    %10 = arith.sitofp %9 : vector<16x50xi32> to vector<16x50xf32>
    %cst = arith.constant dense<0.000000e+00> : vector<16x32xf32>
    %11 = tpu.matmul %10, %5, %cst {dimension_numbers = #tpu.dot_dimension_numbers<[1], [0], [0], [1], [0, 0, 1, 1], [], []>} : vector<16x50xf32>, vector<50x32xf32>, vector<16x32xf32> -> vector<16x32xf32>
    %12 = tpu.iota {dimensions = array<i32: 1>} : vector<16x50xi32>
    %13 = vector.broadcast %1 : vector<16x1xi32> to vector<16x50xi32>
    %14 = arith.cmpi eq, %12, %13 : vector<16x50xi32>
    %15 = arith.extui %14 : vector<16x50xi1> to vector<16x50xi32>
    %16 = arith.sitofp %15 : vector<16x50xi32> to vector<16x50xf32>
    %cst_11 = arith.constant dense<0.000000e+00> : vector<16x32xf32>
    %17 = tpu.matmul %16, %5, %cst_11 {dimension_numbers = #tpu.dot_dimension_numbers<[1], [0], [0], [1], [0, 0, 1, 1], [], []>} : vector<16x50xf32>, vector<50x32xf32>, vector<16x32xf32> -> vector<16x32xf32>
    %c0_12 = arith.constant 0 : index
    %c0_13 = arith.constant 0 : index
    %18 = vector.load %arg7[%c0_12, %c0_13] : memref<96x32xf32, #tpu.memory_space<vmem>>, vector<96x32xf32>
    %c0_14 = arith.constant 0 : index
    %c0_15 = arith.constant 0 : index
    %19 = vector.load %arg8[%c0_14, %c0_15] : memref<1x32xf32, #tpu.memory_space<vmem>>, vector<1x32xf32>
    %c0_16 = arith.constant 0 : index
    %c0_17 = arith.constant 0 : index
    %20 = vector.load %arg9[%c0_16, %c0_17] : memref<96x32xf32, #tpu.memory_space<vmem>>, vector<96x32xf32>
    %c0_18 = arith.constant 0 : index
    %c0_19 = arith.constant 0 : index
    %21 = vector.load %arg10[%c0_18, %c0_19] : memref<1x32xf32, #tpu.memory_space<vmem>>, vector<1x32xf32>
    %c0_20 = arith.constant 0 : index
    %c0_21 = arith.constant 0 : index
    %22 = vector.load %arg11[%c0_20, %c0_21] : memref<64x32xf32, #tpu.memory_space<vmem>>, vector<64x32xf32>
    %c0_22 = arith.constant 0 : index
    %c0_23 = arith.constant 0 : index
    %23 = vector.load %arg12[%c0_22, %c0_23] : memref<1x32xf32, #tpu.memory_space<vmem>>, vector<1x32xf32>
    %c0_24 = arith.constant 0 : index
    %c0_25 = arith.constant 0 : index
    %24 = vector.load %arg13[%c0_24, %c0_25] : memref<128x32xf32, #tpu.memory_space<vmem>>, vector<128x32xf32>
    %c0_26 = arith.constant 0 : index
    %c0_27 = arith.constant 0 : index
    %25 = vector.load %arg14[%c0_26, %c0_27] : memref<1x32xf32, #tpu.memory_space<vmem>>, vector<1x32xf32>
    %c0_28 = arith.constant 0 : index
    %c0_29 = arith.constant 0 : index
    %26 = vector.load %arg15[%c0_28, %c0_29] : memref<96x32xf32, #tpu.memory_space<vmem>>, vector<96x32xf32>
    %c0_30 = arith.constant 0 : index
    %c0_31 = arith.constant 0 : index
    %27 = vector.load %arg16[%c0_30, %c0_31] : memref<1x32xf32, #tpu.memory_space<vmem>>, vector<1x32xf32>
    %28 = vector.broadcast %2 : vector<16x1xf32> to vector<16x32xf32>
    %29 = arith.mulf %11, %28 : vector<16x32xf32>
    %30 = vector.extract_strided_slice %29 {offsets = [0, 0], sizes = [8, 32], strides = [1, 1]} : vector<16x32xf32> to vector<8x32xf32>
    %cst_32 = arith.constant 0.000000e+00 : f32
    %31 = vector.broadcast %cst_32 : f32 to vector<1x32xf32>
    %32 = tpu.concatenate %31, %30, %31 in 0 : vector<1x32xf32>, vector<8x32xf32>, vector<1x32xf32> -> vector<10x32xf32>
    %33 = vector.extract_strided_slice %32 {offsets = [0, 0], sizes = [8, 32], strides = [1, 1]} : vector<10x32xf32> to vector<8x32xf32>
    %34 = vector.extract_strided_slice %32 {offsets = [1, 0], sizes = [8, 32], strides = [1, 1]} : vector<10x32xf32> to vector<8x32xf32>
    %35 = vector.extract_strided_slice %32 {offsets = [2, 0], sizes = [8, 32], strides = [1, 1]} : vector<10x32xf32> to vector<8x32xf32>
    %36 = tpu.concatenate %33, %34, %35 in 1 : vector<8x32xf32>, vector<8x32xf32>, vector<8x32xf32> -> vector<8x96xf32>
    %37 = vector.extract_strided_slice %29 {offsets = [8, 0], sizes = [8, 32], strides = [1, 1]} : vector<16x32xf32> to vector<8x32xf32>
    %cst_33 = arith.constant 0.000000e+00 : f32
    %38 = vector.broadcast %cst_33 : f32 to vector<1x32xf32>
    %39 = tpu.concatenate %38, %37, %38 in 0 : vector<1x32xf32>, vector<8x32xf32>, vector<1x32xf32> -> vector<10x32xf32>
    %40 = vector.extract_strided_slice %39 {offsets = [0, 0], sizes = [8, 32], strides = [1, 1]} : vector<10x32xf32> to vector<8x32xf32>
    %41 = vector.extract_strided_slice %39 {offsets = [1, 0], sizes = [8, 32], strides = [1, 1]} : vector<10x32xf32> to vector<8x32xf32>
    %42 = vector.extract_strided_slice %39 {offsets = [2, 0], sizes = [8, 32], strides = [1, 1]} : vector<10x32xf32> to vector<8x32xf32>
    %43 = tpu.concatenate %40, %41, %42 in 1 : vector<8x32xf32>, vector<8x32xf32>, vector<8x32xf32> -> vector<8x96xf32>
    %44 = tpu.concatenate %36, %43 in 0 : vector<8x96xf32>, vector<8x96xf32> -> vector<16x96xf32>
    %cst_34 = arith.constant dense<0.000000e+00> : vector<16x32xf32>
    %45 = tpu.matmul %44, %18, %cst_34 {dimension_numbers = #tpu.dot_dimension_numbers<[1], [0], [0], [1], [0, 0, 1, 1], [], []>} : vector<16x96xf32>, vector<96x32xf32>, vector<16x32xf32> -> vector<16x32xf32>
    %46 = vector.broadcast %19 : vector<1x32xf32> to vector<16x32xf32>
    %47 = arith.addf %45, %46 : vector<16x32xf32>
    %cst_35 = arith.constant 5.000000e-01 : f32
    %48 = vector.broadcast %cst_35 : f32 to vector<16x32xf32>
    %49 = arith.mulf %48, %47 : vector<16x32xf32>
    %cst_36 = arith.constant 0.797884583 : f32
    %50 = vector.broadcast %cst_36 : f32 to vector<16x32xf32>
    %51 = arith.mulf %47, %50 : vector<16x32xf32>
    %cst_37 = arith.constant 4.471500e-02 : f32
    %52 = vector.broadcast %cst_37 : f32 to vector<16x32xf32>
    %53 = arith.mulf %52, %47 : vector<16x32xf32>
    %54 = arith.mulf %53, %47 : vector<16x32xf32>
    %cst_38 = arith.constant 1.000000e+00 : f32
    %55 = vector.broadcast %cst_38 : f32 to vector<16x32xf32>
    %56 = arith.addf %55, %54 : vector<16x32xf32>
    %57 = arith.mulf %51, %56 : vector<16x32xf32>
    %58 = math.tanh %57 : vector<16x32xf32>
    %cst_39 = arith.constant 1.000000e+00 : f32
    %59 = vector.broadcast %cst_39 : f32 to vector<16x32xf32>
    %60 = arith.addf %59, %58 : vector<16x32xf32>
    %61 = arith.mulf %49, %60 : vector<16x32xf32>
    %62 = vector.broadcast %2 : vector<16x1xf32> to vector<16x32xf32>
    %63 = arith.mulf %61, %62 : vector<16x32xf32>
    %64 = vector.extract_strided_slice %63 {offsets = [0, 0], sizes = [8, 32], strides = [1, 1]} : vector<16x32xf32> to vector<8x32xf32>
    %cst_40 = arith.constant 0.000000e+00 : f32
    %65 = vector.broadcast %cst_40 : f32 to vector<1x32xf32>
    %66 = tpu.concatenate %65, %64, %65 in 0 : vector<1x32xf32>, vector<8x32xf32>, vector<1x32xf32> -> vector<10x32xf32>
    %67 = vector.extract_strided_slice %66 {offsets = [0, 0], sizes = [8, 32], strides = [1, 1]} : vector<10x32xf32> to vector<8x32xf32>
    %68 = vector.extract_strided_slice %66 {offsets = [1, 0], sizes = [8, 32], strides = [1, 1]} : vector<10x32xf32> to vector<8x32xf32>
    %69 = vector.extract_strided_slice %66 {offsets = [2, 0], sizes = [8, 32], strides = [1, 1]} : vector<10x32xf32> to vector<8x32xf32>
    %70 = tpu.concatenate %67, %68, %69 in 1 : vector<8x32xf32>, vector<8x32xf32>, vector<8x32xf32> -> vector<8x96xf32>
    %71 = vector.extract_strided_slice %63 {offsets = [8, 0], sizes = [8, 32], strides = [1, 1]} : vector<16x32xf32> to vector<8x32xf32>
    %cst_41 = arith.constant 0.000000e+00 : f32
    %72 = vector.broadcast %cst_41 : f32 to vector<1x32xf32>
    %73 = tpu.concatenate %72, %71, %72 in 0 : vector<1x32xf32>, vector<8x32xf32>, vector<1x32xf32> -> vector<10x32xf32>
    %74 = vector.extract_strided_slice %73 {offsets = [0, 0], sizes = [8, 32], strides = [1, 1]} : vector<10x32xf32> to vector<8x32xf32>
    %75 = vector.extract_strided_slice %73 {offsets = [1, 0], sizes = [8, 32], strides = [1, 1]} : vector<10x32xf32> to vector<8x32xf32>
    %76 = vector.extract_strided_slice %73 {offsets = [2, 0], sizes = [8, 32], strides = [1, 1]} : vector<10x32xf32> to vector<8x32xf32>
    %77 = tpu.concatenate %74, %75, %76 in 1 : vector<8x32xf32>, vector<8x32xf32>, vector<8x32xf32> -> vector<8x96xf32>
    %78 = tpu.concatenate %70, %77 in 0 : vector<8x96xf32>, vector<8x96xf32> -> vector<16x96xf32>
    %cst_42 = arith.constant dense<0.000000e+00> : vector<16x32xf32>
    %79 = tpu.matmul %78, %20, %cst_42 {dimension_numbers = #tpu.dot_dimension_numbers<[1], [0], [0], [1], [0, 0, 1, 1], [], []>} : vector<16x96xf32>, vector<96x32xf32>, vector<16x32xf32> -> vector<16x32xf32>
    %80 = vector.broadcast %21 : vector<1x32xf32> to vector<16x32xf32>
    %81 = arith.addf %79, %80 : vector<16x32xf32>
    %cst_43 = arith.constant 5.000000e-01 : f32
    %82 = vector.broadcast %cst_43 : f32 to vector<16x32xf32>
    %83 = arith.mulf %82, %81 : vector<16x32xf32>
    %cst_44 = arith.constant 0.797884583 : f32
    %84 = vector.broadcast %cst_44 : f32 to vector<16x32xf32>
    %85 = arith.mulf %81, %84 : vector<16x32xf32>
    %cst_45 = arith.constant 4.471500e-02 : f32
    %86 = vector.broadcast %cst_45 : f32 to vector<16x32xf32>
    %87 = arith.mulf %86, %81 : vector<16x32xf32>
    %88 = arith.mulf %87, %81 : vector<16x32xf32>
    %cst_46 = arith.constant 1.000000e+00 : f32
    %89 = vector.broadcast %cst_46 : f32 to vector<16x32xf32>
    %90 = arith.addf %89, %88 : vector<16x32xf32>
    %91 = arith.mulf %85, %90 : vector<16x32xf32>
    %92 = math.tanh %91 : vector<16x32xf32>
    %cst_47 = arith.constant 1.000000e+00 : f32
    %93 = vector.broadcast %cst_47 : f32 to vector<16x32xf32>
    %94 = arith.addf %93, %92 : vector<16x32xf32>
    %95 = arith.mulf %83, %94 : vector<16x32xf32>
    %96 = vector.broadcast %3 : vector<16x1xf32> to vector<16x32xf32>
    %97 = arith.mulf %17, %96 : vector<16x32xf32>
    %98 = vector.extract_strided_slice %97 {offsets = [0, 0], sizes = [8, 32], strides = [1, 1]} : vector<16x32xf32> to vector<8x32xf32>
    %cst_48 = arith.constant 0.000000e+00 : f32
    %99 = vector.broadcast %cst_48 : f32 to vector<1x32xf32>
    %100 = tpu.concatenate %99, %98, %99 in 0 : vector<1x32xf32>, vector<8x32xf32>, vector<1x32xf32> -> vector<10x32xf32>
    %101 = vector.extract_strided_slice %100 {offsets = [0, 0], sizes = [8, 32], strides = [1, 1]} : vector<10x32xf32> to vector<8x32xf32>
    %102 = vector.extract_strided_slice %100 {offsets = [1, 0], sizes = [8, 32], strides = [1, 1]} : vector<10x32xf32> to vector<8x32xf32>
    %103 = vector.extract_strided_slice %100 {offsets = [2, 0], sizes = [8, 32], strides = [1, 1]} : vector<10x32xf32> to vector<8x32xf32>
    %104 = tpu.concatenate %101, %102, %103 in 1 : vector<8x32xf32>, vector<8x32xf32>, vector<8x32xf32> -> vector<8x96xf32>
    %105 = vector.extract_strided_slice %97 {offsets = [8, 0], sizes = [8, 32], strides = [1, 1]} : vector<16x32xf32> to vector<8x32xf32>
    %cst_49 = arith.constant 0.000000e+00 : f32
    %106 = vector.broadcast %cst_49 : f32 to vector<1x32xf32>
    %107 = tpu.concatenate %106, %105, %106 in 0 : vector<1x32xf32>, vector<8x32xf32>, vector<1x32xf32> -> vector<10x32xf32>
    %108 = vector.extract_strided_slice %107 {offsets = [0, 0], sizes = [8, 32], strides = [1, 1]} : vector<10x32xf32> to vector<8x32xf32>
    %109 = vector.extract_strided_slice %107 {offsets = [1, 0], sizes = [8, 32], strides = [1, 1]} : vector<10x32xf32> to vector<8x32xf32>
    %110 = vector.extract_strided_slice %107 {offsets = [2, 0], sizes = [8, 32], strides = [1, 1]} : vector<10x32xf32> to vector<8x32xf32>
    %111 = tpu.concatenate %108, %109, %110 in 1 : vector<8x32xf32>, vector<8x32xf32>, vector<8x32xf32> -> vector<8x96xf32>
    %112 = tpu.concatenate %104, %111 in 0 : vector<8x96xf32>, vector<8x96xf32> -> vector<16x96xf32>
    %cst_50 = arith.constant dense<0.000000e+00> : vector<16x32xf32>
    %113 = tpu.matmul %112, %18, %cst_50 {dimension_numbers = #tpu.dot_dimension_numbers<[1], [0], [0], [1], [0, 0, 1, 1], [], []>} : vector<16x96xf32>, vector<96x32xf32>, vector<16x32xf32> -> vector<16x32xf32>
    %114 = vector.broadcast %19 : vector<1x32xf32> to vector<16x32xf32>
    %115 = arith.addf %113, %114 : vector<16x32xf32>
    %cst_51 = arith.constant 5.000000e-01 : f32
    %116 = vector.broadcast %cst_51 : f32 to vector<16x32xf32>
    %117 = arith.mulf %116, %115 : vector<16x32xf32>
    %cst_52 = arith.constant 0.797884583 : f32
    %118 = vector.broadcast %cst_52 : f32 to vector<16x32xf32>
    %119 = arith.mulf %115, %118 : vector<16x32xf32>
    %cst_53 = arith.constant 4.471500e-02 : f32
    %120 = vector.broadcast %cst_53 : f32 to vector<16x32xf32>
    %121 = arith.mulf %120, %115 : vector<16x32xf32>
    %122 = arith.mulf %121, %115 : vector<16x32xf32>
    %cst_54 = arith.constant 1.000000e+00 : f32
    %123 = vector.broadcast %cst_54 : f32 to vector<16x32xf32>
    %124 = arith.addf %123, %122 : vector<16x32xf32>
    %125 = arith.mulf %119, %124 : vector<16x32xf32>
    %126 = math.tanh %125 : vector<16x32xf32>
    %cst_55 = arith.constant 1.000000e+00 : f32
    %127 = vector.broadcast %cst_55 : f32 to vector<16x32xf32>
    %128 = arith.addf %127, %126 : vector<16x32xf32>
    %129 = arith.mulf %117, %128 : vector<16x32xf32>
    %130 = vector.broadcast %3 : vector<16x1xf32> to vector<16x32xf32>
    %131 = arith.mulf %129, %130 : vector<16x32xf32>
    %132 = vector.extract_strided_slice %131 {offsets = [0, 0], sizes = [8, 32], strides = [1, 1]} : vector<16x32xf32> to vector<8x32xf32>
    %cst_56 = arith.constant 0.000000e+00 : f32
    %133 = vector.broadcast %cst_56 : f32 to vector<1x32xf32>
    %134 = tpu.concatenate %133, %132, %133 in 0 : vector<1x32xf32>, vector<8x32xf32>, vector<1x32xf32> -> vector<10x32xf32>
    %135 = vector.extract_strided_slice %134 {offsets = [0, 0], sizes = [8, 32], strides = [1, 1]} : vector<10x32xf32> to vector<8x32xf32>
    %136 = vector.extract_strided_slice %134 {offsets = [1, 0], sizes = [8, 32], strides = [1, 1]} : vector<10x32xf32> to vector<8x32xf32>
    %137 = vector.extract_strided_slice %134 {offsets = [2, 0], sizes = [8, 32], strides = [1, 1]} : vector<10x32xf32> to vector<8x32xf32>
    %138 = tpu.concatenate %135, %136, %137 in 1 : vector<8x32xf32>, vector<8x32xf32>, vector<8x32xf32> -> vector<8x96xf32>
    %139 = vector.extract_strided_slice %131 {offsets = [8, 0], sizes = [8, 32], strides = [1, 1]} : vector<16x32xf32> to vector<8x32xf32>
    %cst_57 = arith.constant 0.000000e+00 : f32
    %140 = vector.broadcast %cst_57 : f32 to vector<1x32xf32>
    %141 = tpu.concatenate %140, %139, %140 in 0 : vector<1x32xf32>, vector<8x32xf32>, vector<1x32xf32> -> vector<10x32xf32>
    %142 = vector.extract_strided_slice %141 {offsets = [0, 0], sizes = [8, 32], strides = [1, 1]} : vector<10x32xf32> to vector<8x32xf32>
    %143 = vector.extract_strided_slice %141 {offsets = [1, 0], sizes = [8, 32], strides = [1, 1]} : vector<10x32xf32> to vector<8x32xf32>
    %144 = vector.extract_strided_slice %141 {offsets = [2, 0], sizes = [8, 32], strides = [1, 1]} : vector<10x32xf32> to vector<8x32xf32>
    %145 = tpu.concatenate %142, %143, %144 in 1 : vector<8x32xf32>, vector<8x32xf32>, vector<8x32xf32> -> vector<8x96xf32>
    %146 = tpu.concatenate %138, %145 in 0 : vector<8x96xf32>, vector<8x96xf32> -> vector<16x96xf32>
    %cst_58 = arith.constant dense<0.000000e+00> : vector<16x32xf32>
    %147 = tpu.matmul %146, %20, %cst_58 {dimension_numbers = #tpu.dot_dimension_numbers<[1], [0], [0], [1], [0, 0, 1, 1], [], []>} : vector<16x96xf32>, vector<96x32xf32>, vector<16x32xf32> -> vector<16x32xf32>
    %148 = vector.broadcast %21 : vector<1x32xf32> to vector<16x32xf32>
    %149 = arith.addf %147, %148 : vector<16x32xf32>
    %cst_59 = arith.constant 5.000000e-01 : f32
    %150 = vector.broadcast %cst_59 : f32 to vector<16x32xf32>
    %151 = arith.mulf %150, %149 : vector<16x32xf32>
    %cst_60 = arith.constant 0.797884583 : f32
    %152 = vector.broadcast %cst_60 : f32 to vector<16x32xf32>
    %153 = arith.mulf %149, %152 : vector<16x32xf32>
    %cst_61 = arith.constant 4.471500e-02 : f32
    %154 = vector.broadcast %cst_61 : f32 to vector<16x32xf32>
    %155 = arith.mulf %154, %149 : vector<16x32xf32>
    %156 = arith.mulf %155, %149 : vector<16x32xf32>
    %cst_62 = arith.constant 1.000000e+00 : f32
    %157 = vector.broadcast %cst_62 : f32 to vector<16x32xf32>
    %158 = arith.addf %157, %156 : vector<16x32xf32>
    %159 = arith.mulf %153, %158 : vector<16x32xf32>
    %160 = math.tanh %159 : vector<16x32xf32>
    %cst_63 = arith.constant 1.000000e+00 : f32
    %161 = vector.broadcast %cst_63 : f32 to vector<16x32xf32>
    %162 = arith.addf %161, %160 : vector<16x32xf32>
    %163 = arith.mulf %151, %162 : vector<16x32xf32>
    %164 = tpu.concatenate %11, %95 in 1 : vector<16x32xf32>, vector<16x32xf32> -> vector<16x64xf32>
    %165 = tpu.concatenate %17, %163 in 1 : vector<16x32xf32>, vector<16x32xf32> -> vector<16x64xf32>
    %cst_64 = arith.constant dense<0.000000e+00> : vector<16x32xf32>
    %166 = tpu.matmul %164, %22, %cst_64 {dimension_numbers = #tpu.dot_dimension_numbers<[1], [0], [0], [1], [0, 0, 1, 1], [], []>} : vector<16x64xf32>, vector<64x32xf32>, vector<16x32xf32> -> vector<16x32xf32>
    %167 = vector.broadcast %23 : vector<1x32xf32> to vector<16x32xf32>
    %168 = arith.addf %166, %167 : vector<16x32xf32>
    %cst_65 = arith.constant 5.000000e-01 : f32
    %169 = vector.broadcast %cst_65 : f32 to vector<16x32xf32>
    %170 = arith.mulf %169, %168 : vector<16x32xf32>
    %cst_66 = arith.constant 0.797884583 : f32
    %171 = vector.broadcast %cst_66 : f32 to vector<16x32xf32>
    %172 = arith.mulf %168, %171 : vector<16x32xf32>
    %cst_67 = arith.constant 4.471500e-02 : f32
    %173 = vector.broadcast %cst_67 : f32 to vector<16x32xf32>
    %174 = arith.mulf %173, %168 : vector<16x32xf32>
    %175 = arith.mulf %174, %168 : vector<16x32xf32>
    %cst_68 = arith.constant 1.000000e+00 : f32
    %176 = vector.broadcast %cst_68 : f32 to vector<16x32xf32>
    %177 = arith.addf %176, %175 : vector<16x32xf32>
    %178 = arith.mulf %172, %177 : vector<16x32xf32>
    %179 = math.tanh %178 : vector<16x32xf32>
    %cst_69 = arith.constant 1.000000e+00 : f32
    %180 = vector.broadcast %cst_69 : f32 to vector<16x32xf32>
    %181 = arith.addf %180, %179 : vector<16x32xf32>
    %182 = arith.mulf %170, %181 : vector<16x32xf32>
    %cst_70 = arith.constant dense<0.000000e+00> : vector<16x32xf32>
    %183 = tpu.matmul %165, %22, %cst_70 {dimension_numbers = #tpu.dot_dimension_numbers<[1], [0], [0], [1], [0, 0, 1, 1], [], []>} : vector<16x64xf32>, vector<64x32xf32>, vector<16x32xf32> -> vector<16x32xf32>
    %184 = vector.broadcast %23 : vector<1x32xf32> to vector<16x32xf32>
    %185 = arith.addf %183, %184 : vector<16x32xf32>
    %cst_71 = arith.constant 5.000000e-01 : f32
    %186 = vector.broadcast %cst_71 : f32 to vector<16x32xf32>
    %187 = arith.mulf %186, %185 : vector<16x32xf32>
    %cst_72 = arith.constant 0.797884583 : f32
    %188 = vector.broadcast %cst_72 : f32 to vector<16x32xf32>
    %189 = arith.mulf %185, %188 : vector<16x32xf32>
    %cst_73 = arith.constant 4.471500e-02 : f32
    %190 = vector.broadcast %cst_73 : f32 to vector<16x32xf32>
    %191 = arith.mulf %190, %185 : vector<16x32xf32>
    %192 = arith.mulf %191, %185 : vector<16x32xf32>
    %cst_74 = arith.constant 1.000000e+00 : f32
    %193 = vector.broadcast %cst_74 : f32 to vector<16x32xf32>
    %194 = arith.addf %193, %192 : vector<16x32xf32>
    %195 = arith.mulf %189, %194 : vector<16x32xf32>
    %196 = math.tanh %195 : vector<16x32xf32>
    %cst_75 = arith.constant 1.000000e+00 : f32
    %197 = vector.broadcast %cst_75 : f32 to vector<16x32xf32>
    %198 = arith.addf %197, %196 : vector<16x32xf32>
    %199 = arith.mulf %187, %198 : vector<16x32xf32>
    %200 = vector.extract_strided_slice %182 {offsets = [0, 0], sizes = [8, 32], strides = [1, 1]} : vector<16x32xf32> to vector<8x32xf32>
    %201 = vector.extract_strided_slice %199 {offsets = [0, 0], sizes = [8, 32], strides = [1, 1]} : vector<16x32xf32> to vector<8x32xf32>
    %cst_76 = arith.constant dense<0.000000e+00> : vector<8x8xf32>
    %202 = tpu.matmul %200, %201, %cst_76 {dimension_numbers = #tpu.dot_dimension_numbers<[1], [1], [0], [0], [0, 0, 1, 0], [], []>} : vector<8x32xf32>, vector<8x32xf32>, vector<8x8xf32> -> vector<8x8xf32>
    %cst_77 = arith.constant 0.176776692 : f32
    %203 = vector.broadcast %cst_77 : f32 to vector<8x8xf32>
    %204 = arith.mulf %202, %203 : vector<8x8xf32>
    %205 = vector.extract_strided_slice %2 {offsets = [0, 0], sizes = [8, 1], strides = [1, 1]} : vector<16x1xf32> to vector<8x1xf32>
    %206 = vector.extract_strided_slice %4 {offsets = [0, 0], sizes = [1, 8], strides = [1, 1]} : vector<2x8xf32> to vector<1x8xf32>
    %207 = vector.broadcast %205 : vector<8x1xf32> to vector<8x8xf32>
    %208 = vector.broadcast %206 : vector<1x8xf32> to vector<8x8xf32>
    %209 = arith.mulf %207, %208 : vector<8x8xf32>
    %cst_78 = arith.constant 0.000000e+00 : f32
    %210 = vector.broadcast %cst_78 : f32 to vector<8x8xf32>
    %211 = arith.cmpf ogt, %209, %210 : vector<8x8xf32>
    %cst_79 = arith.constant -1.000000e+07 : f32
    %212 = vector.broadcast %cst_79 : f32 to vector<8x8xf32>
    %213 = arith.select %211, %204, %212 : vector<8x8xi1>, vector<8x8xf32>
    %cst_80 = arith.constant dense<0xFF800000> : vector<8xf32>
    %214 = vector.multi_reduction <maximumf>, %213, %cst_80 [0] : vector<8x8xf32> to vector<8xf32>
    %215 = vector.shape_cast %214 : vector<8xf32> to vector<1x8xf32>
    %216 = vector.broadcast %215 : vector<1x8xf32> to vector<8x8xf32>
    %217 = arith.subf %213, %216 : vector<8x8xf32>
    %218 = math.exp %217 : vector<8x8xf32>
    %cst_81 = arith.constant dense<0.000000e+00> : vector<8xf32>
    %219 = vector.multi_reduction <add>, %218, %cst_81 [0] : vector<8x8xf32> to vector<8xf32>
    %220 = vector.shape_cast %219 : vector<8xf32> to vector<1x8xf32>
    %221 = tpu.reciprocal %220 {approx = true} : vector<1x8xf32> -> vector<1x8xf32>
    %222 = vector.broadcast %221 : vector<1x8xf32> to vector<8x8xf32>
    %223 = arith.mulf %218, %222 : vector<8x8xf32>
    %cst_82 = arith.constant dense<0xFF800000> : vector<8xf32>
    %224 = vector.multi_reduction <maximumf>, %213, %cst_82 [1] : vector<8x8xf32> to vector<8xf32>
    %225 = vector.shape_cast %224 : vector<8xf32> to vector<8x1xf32>
    %226 = vector.broadcast %225 : vector<8x1xf32> to vector<8x8xf32>
    %227 = arith.subf %213, %226 : vector<8x8xf32>
    %228 = math.exp %227 : vector<8x8xf32>
    %cst_83 = arith.constant dense<0.000000e+00> : vector<8xf32>
    %229 = vector.multi_reduction <add>, %228, %cst_83 [1] : vector<8x8xf32> to vector<8xf32>
    %230 = vector.shape_cast %229 : vector<8xf32> to vector<8x1xf32>
    %231 = tpu.reciprocal %230 {approx = true} : vector<8x1xf32> -> vector<8x1xf32>
    %232 = vector.broadcast %231 : vector<8x1xf32> to vector<8x8xf32>
    %233 = arith.mulf %228, %232 : vector<8x8xf32>
    %234 = vector.extract_strided_slice %164 {offsets = [0, 0], sizes = [8, 64], strides = [1, 1]} : vector<16x64xf32> to vector<8x64xf32>
    %cst_84 = arith.constant dense<0.000000e+00> : vector<8x64xf32>
    %235 = tpu.matmul %223, %234, %cst_84 {dimension_numbers = #tpu.dot_dimension_numbers<[0], [0], [1], [1], [0, 1, 1, 1], [], []>} : vector<8x8xf32>, vector<8x64xf32>, vector<8x64xf32> -> vector<8x64xf32>
    %236 = vector.extract_strided_slice %165 {offsets = [0, 0], sizes = [8, 64], strides = [1, 1]} : vector<16x64xf32> to vector<8x64xf32>
    %cst_85 = arith.constant dense<0.000000e+00> : vector<8x64xf32>
    %237 = tpu.matmul %233, %236, %cst_85 {dimension_numbers = #tpu.dot_dimension_numbers<[1], [0], [0], [1], [0, 0, 1, 1], [], []>} : vector<8x8xf32>, vector<8x64xf32>, vector<8x64xf32> -> vector<8x64xf32>
    %238 = vector.extract_strided_slice %182 {offsets = [8, 0], sizes = [8, 32], strides = [1, 1]} : vector<16x32xf32> to vector<8x32xf32>
    %239 = vector.extract_strided_slice %199 {offsets = [8, 0], sizes = [8, 32], strides = [1, 1]} : vector<16x32xf32> to vector<8x32xf32>
    %cst_86 = arith.constant dense<0.000000e+00> : vector<8x8xf32>
    %240 = tpu.matmul %238, %239, %cst_86 {dimension_numbers = #tpu.dot_dimension_numbers<[1], [1], [0], [0], [0, 0, 1, 0], [], []>} : vector<8x32xf32>, vector<8x32xf32>, vector<8x8xf32> -> vector<8x8xf32>
    %cst_87 = arith.constant 0.176776692 : f32
    %241 = vector.broadcast %cst_87 : f32 to vector<8x8xf32>
    %242 = arith.mulf %240, %241 : vector<8x8xf32>
    %243 = vector.extract_strided_slice %2 {offsets = [8, 0], sizes = [8, 1], strides = [1, 1]} : vector<16x1xf32> to vector<8x1xf32>
    %244 = vector.extract_strided_slice %4 {offsets = [1, 0], sizes = [1, 8], strides = [1, 1]} : vector<2x8xf32> to vector<1x8xf32>
    %245 = vector.broadcast %243 : vector<8x1xf32> to vector<8x8xf32>
    %246 = vector.broadcast %244 : vector<1x8xf32> to vector<8x8xf32>
    %247 = arith.mulf %245, %246 : vector<8x8xf32>
    %cst_88 = arith.constant 0.000000e+00 : f32
    %248 = vector.broadcast %cst_88 : f32 to vector<8x8xf32>
    %249 = arith.cmpf ogt, %247, %248 : vector<8x8xf32>
    %cst_89 = arith.constant -1.000000e+07 : f32
    %250 = vector.broadcast %cst_89 : f32 to vector<8x8xf32>
    %251 = arith.select %249, %242, %250 : vector<8x8xi1>, vector<8x8xf32>
    %cst_90 = arith.constant dense<0xFF800000> : vector<8xf32>
    %252 = vector.multi_reduction <maximumf>, %251, %cst_90 [0] : vector<8x8xf32> to vector<8xf32>
    %253 = vector.shape_cast %252 : vector<8xf32> to vector<1x8xf32>
    %254 = vector.broadcast %253 : vector<1x8xf32> to vector<8x8xf32>
    %255 = arith.subf %251, %254 : vector<8x8xf32>
    %256 = math.exp %255 : vector<8x8xf32>
    %cst_91 = arith.constant dense<0.000000e+00> : vector<8xf32>
    %257 = vector.multi_reduction <add>, %256, %cst_91 [0] : vector<8x8xf32> to vector<8xf32>
    %258 = vector.shape_cast %257 : vector<8xf32> to vector<1x8xf32>
    %259 = tpu.reciprocal %258 {approx = true} : vector<1x8xf32> -> vector<1x8xf32>
    %260 = vector.broadcast %259 : vector<1x8xf32> to vector<8x8xf32>
    %261 = arith.mulf %256, %260 : vector<8x8xf32>
    %cst_92 = arith.constant dense<0xFF800000> : vector<8xf32>
    %262 = vector.multi_reduction <maximumf>, %251, %cst_92 [1] : vector<8x8xf32> to vector<8xf32>
    %263 = vector.shape_cast %262 : vector<8xf32> to vector<8x1xf32>
    %264 = vector.broadcast %263 : vector<8x1xf32> to vector<8x8xf32>
    %265 = arith.subf %251, %264 : vector<8x8xf32>
    %266 = math.exp %265 : vector<8x8xf32>
    %cst_93 = arith.constant dense<0.000000e+00> : vector<8xf32>
    %267 = vector.multi_reduction <add>, %266, %cst_93 [1] : vector<8x8xf32> to vector<8xf32>
    %268 = vector.shape_cast %267 : vector<8xf32> to vector<8x1xf32>
    %269 = tpu.reciprocal %268 {approx = true} : vector<8x1xf32> -> vector<8x1xf32>
    %270 = vector.broadcast %269 : vector<8x1xf32> to vector<8x8xf32>
    %271 = arith.mulf %266, %270 : vector<8x8xf32>
    %272 = vector.extract_strided_slice %164 {offsets = [8, 0], sizes = [8, 64], strides = [1, 1]} : vector<16x64xf32> to vector<8x64xf32>
    %cst_94 = arith.constant dense<0.000000e+00> : vector<8x64xf32>
    %273 = tpu.matmul %261, %272, %cst_94 {dimension_numbers = #tpu.dot_dimension_numbers<[0], [0], [1], [1], [0, 1, 1, 1], [], []>} : vector<8x8xf32>, vector<8x64xf32>, vector<8x64xf32> -> vector<8x64xf32>
    %274 = vector.extract_strided_slice %165 {offsets = [8, 0], sizes = [8, 64], strides = [1, 1]} : vector<16x64xf32> to vector<8x64xf32>
    %cst_95 = arith.constant dense<0.000000e+00> : vector<8x64xf32>
    %275 = tpu.matmul %271, %274, %cst_95 {dimension_numbers = #tpu.dot_dimension_numbers<[1], [0], [0], [1], [0, 0, 1, 1], [], []>} : vector<8x8xf32>, vector<8x64xf32>, vector<8x64xf32> -> vector<8x64xf32>
    %276 = tpu.concatenate %237, %275 in 0 : vector<8x64xf32>, vector<8x64xf32> -> vector<16x64xf32>
    %277 = tpu.concatenate %235, %273 in 0 : vector<8x64xf32>, vector<8x64xf32> -> vector<16x64xf32>
    %278 = tpu.concatenate %164, %276 in 1 : vector<16x64xf32>, vector<16x64xf32> -> vector<16x128xf32>
    %279 = arith.subf %164, %276 : vector<16x64xf32>
    %280 = tpu.concatenate %164, %279 in 1 : vector<16x64xf32>, vector<16x64xf32> -> vector<16x128xf32>
    %281 = arith.mulf %164, %276 : vector<16x64xf32>
    %282 = tpu.concatenate %164, %281 in 1 : vector<16x64xf32>, vector<16x64xf32> -> vector<16x128xf32>
    %283 = tpu.concatenate %278, %280, %282 in 0 : vector<16x128xf32>, vector<16x128xf32>, vector<16x128xf32> -> vector<48x128xf32>
    %cst_96 = arith.constant dense<0.000000e+00> : vector<48x32xf32>
    %284 = tpu.matmul %283, %24, %cst_96 {dimension_numbers = #tpu.dot_dimension_numbers<[1], [0], [0], [1], [0, 0, 1, 1], [], []>} : vector<48x128xf32>, vector<128x32xf32>, vector<48x32xf32> -> vector<48x32xf32>
    %285 = vector.broadcast %25 : vector<1x32xf32> to vector<48x32xf32>
    %286 = arith.addf %284, %285 : vector<48x32xf32>
    %cst_97 = arith.constant 5.000000e-01 : f32
    %287 = vector.broadcast %cst_97 : f32 to vector<48x32xf32>
    %288 = arith.mulf %287, %286 : vector<48x32xf32>
    %cst_98 = arith.constant 0.797884583 : f32
    %289 = vector.broadcast %cst_98 : f32 to vector<48x32xf32>
    %290 = arith.mulf %286, %289 : vector<48x32xf32>
    %cst_99 = arith.constant 4.471500e-02 : f32
    %291 = vector.broadcast %cst_99 : f32 to vector<48x32xf32>
    %292 = arith.mulf %291, %286 : vector<48x32xf32>
    %293 = arith.mulf %292, %286 : vector<48x32xf32>
    %cst_100 = arith.constant 1.000000e+00 : f32
    %294 = vector.broadcast %cst_100 : f32 to vector<48x32xf32>
    %295 = arith.addf %294, %293 : vector<48x32xf32>
    %296 = arith.mulf %290, %295 : vector<48x32xf32>
    %297 = math.tanh %296 : vector<48x32xf32>
    %cst_101 = arith.constant 1.000000e+00 : f32
    %298 = vector.broadcast %cst_101 : f32 to vector<48x32xf32>
    %299 = arith.addf %298, %297 : vector<48x32xf32>
    %300 = arith.mulf %288, %299 : vector<48x32xf32>
    %301 = vector.extract_strided_slice %300 {offsets = [0, 0], sizes = [16, 32], strides = [1, 1]} : vector<48x32xf32> to vector<16x32xf32>
    %302 = vector.extract_strided_slice %300 {offsets = [16, 0], sizes = [16, 32], strides = [1, 1]} : vector<48x32xf32> to vector<16x32xf32>
    %303 = vector.extract_strided_slice %300 {offsets = [32, 0], sizes = [16, 32], strides = [1, 1]} : vector<48x32xf32> to vector<16x32xf32>
    %304 = tpu.concatenate %301, %302, %303 in 1 : vector<16x32xf32>, vector<16x32xf32>, vector<16x32xf32> -> vector<16x96xf32>
    %cst_102 = arith.constant dense<0.000000e+00> : vector<16x32xf32>
    %305 = tpu.matmul %304, %26, %cst_102 {dimension_numbers = #tpu.dot_dimension_numbers<[1], [0], [0], [1], [0, 0, 1, 1], [], []>} : vector<16x96xf32>, vector<96x32xf32>, vector<16x32xf32> -> vector<16x32xf32>
    %306 = vector.broadcast %27 : vector<1x32xf32> to vector<16x32xf32>
    %307 = arith.addf %305, %306 : vector<16x32xf32>
    %cst_103 = arith.constant 5.000000e-01 : f32
    %308 = vector.broadcast %cst_103 : f32 to vector<16x32xf32>
    %309 = arith.mulf %308, %307 : vector<16x32xf32>
    %cst_104 = arith.constant 0.797884583 : f32
    %310 = vector.broadcast %cst_104 : f32 to vector<16x32xf32>
    %311 = arith.mulf %307, %310 : vector<16x32xf32>
    %cst_105 = arith.constant 4.471500e-02 : f32
    %312 = vector.broadcast %cst_105 : f32 to vector<16x32xf32>
    %313 = arith.mulf %312, %307 : vector<16x32xf32>
    %314 = arith.mulf %313, %307 : vector<16x32xf32>
    %cst_106 = arith.constant 1.000000e+00 : f32
    %315 = vector.broadcast %cst_106 : f32 to vector<16x32xf32>
    %316 = arith.addf %315, %314 : vector<16x32xf32>
    %317 = arith.mulf %311, %316 : vector<16x32xf32>
    %318 = math.tanh %317 : vector<16x32xf32>
    %cst_107 = arith.constant 1.000000e+00 : f32
    %319 = vector.broadcast %cst_107 : f32 to vector<16x32xf32>
    %320 = arith.addf %319, %318 : vector<16x32xf32>
    %321 = arith.mulf %309, %320 : vector<16x32xf32>
    %322 = tpu.concatenate %165, %277 in 1 : vector<16x64xf32>, vector<16x64xf32> -> vector<16x128xf32>
    %323 = arith.subf %165, %277 : vector<16x64xf32>
    %324 = tpu.concatenate %165, %323 in 1 : vector<16x64xf32>, vector<16x64xf32> -> vector<16x128xf32>
    %325 = arith.mulf %165, %277 : vector<16x64xf32>
    %326 = tpu.concatenate %165, %325 in 1 : vector<16x64xf32>, vector<16x64xf32> -> vector<16x128xf32>
    %327 = tpu.concatenate %322, %324, %326 in 0 : vector<16x128xf32>, vector<16x128xf32>, vector<16x128xf32> -> vector<48x128xf32>
    %cst_108 = arith.constant dense<0.000000e+00> : vector<48x32xf32>
    %328 = tpu.matmul %327, %24, %cst_108 {dimension_numbers = #tpu.dot_dimension_numbers<[1], [0], [0], [1], [0, 0, 1, 1], [], []>} : vector<48x128xf32>, vector<128x32xf32>, vector<48x32xf32> -> vector<48x32xf32>
    %329 = vector.broadcast %25 : vector<1x32xf32> to vector<48x32xf32>
    %330 = arith.addf %328, %329 : vector<48x32xf32>
    %cst_109 = arith.constant 5.000000e-01 : f32
    %331 = vector.broadcast %cst_109 : f32 to vector<48x32xf32>
    %332 = arith.mulf %331, %330 : vector<48x32xf32>
    %cst_110 = arith.constant 0.797884583 : f32
    %333 = vector.broadcast %cst_110 : f32 to vector<48x32xf32>
    %334 = arith.mulf %330, %333 : vector<48x32xf32>
    %cst_111 = arith.constant 4.471500e-02 : f32
    %335 = vector.broadcast %cst_111 : f32 to vector<48x32xf32>
    %336 = arith.mulf %335, %330 : vector<48x32xf32>
    %337 = arith.mulf %336, %330 : vector<48x32xf32>
    %cst_112 = arith.constant 1.000000e+00 : f32
    %338 = vector.broadcast %cst_112 : f32 to vector<48x32xf32>
    %339 = arith.addf %338, %337 : vector<48x32xf32>
    %340 = arith.mulf %334, %339 : vector<48x32xf32>
    %341 = math.tanh %340 : vector<48x32xf32>
    %cst_113 = arith.constant 1.000000e+00 : f32
    %342 = vector.broadcast %cst_113 : f32 to vector<48x32xf32>
    %343 = arith.addf %342, %341 : vector<48x32xf32>
    %344 = arith.mulf %332, %343 : vector<48x32xf32>
    %345 = vector.extract_strided_slice %344 {offsets = [0, 0], sizes = [16, 32], strides = [1, 1]} : vector<48x32xf32> to vector<16x32xf32>
    %346 = vector.extract_strided_slice %344 {offsets = [16, 0], sizes = [16, 32], strides = [1, 1]} : vector<48x32xf32> to vector<16x32xf32>
    %347 = vector.extract_strided_slice %344 {offsets = [32, 0], sizes = [16, 32], strides = [1, 1]} : vector<48x32xf32> to vector<16x32xf32>
    %348 = tpu.concatenate %345, %346, %347 in 1 : vector<16x32xf32>, vector<16x32xf32>, vector<16x32xf32> -> vector<16x96xf32>
    %cst_114 = arith.constant dense<0.000000e+00> : vector<16x32xf32>
    %349 = tpu.matmul %348, %26, %cst_114 {dimension_numbers = #tpu.dot_dimension_numbers<[1], [0], [0], [1], [0, 0, 1, 1], [], []>} : vector<16x96xf32>, vector<96x32xf32>, vector<16x32xf32> -> vector<16x32xf32>
    %350 = vector.broadcast %27 : vector<1x32xf32> to vector<16x32xf32>
    %351 = arith.addf %349, %350 : vector<16x32xf32>
    %cst_115 = arith.constant 5.000000e-01 : f32
    %352 = vector.broadcast %cst_115 : f32 to vector<16x32xf32>
    %353 = arith.mulf %352, %351 : vector<16x32xf32>
    %cst_116 = arith.constant 0.797884583 : f32
    %354 = vector.broadcast %cst_116 : f32 to vector<16x32xf32>
    %355 = arith.mulf %351, %354 : vector<16x32xf32>
    %cst_117 = arith.constant 4.471500e-02 : f32
    %356 = vector.broadcast %cst_117 : f32 to vector<16x32xf32>
    %357 = arith.mulf %356, %351 : vector<16x32xf32>
    %358 = arith.mulf %357, %351 : vector<16x32xf32>
    %cst_118 = arith.constant 1.000000e+00 : f32
    %359 = vector.broadcast %cst_118 : f32 to vector<16x32xf32>
    %360 = arith.addf %359, %358 : vector<16x32xf32>
    %361 = arith.mulf %355, %360 : vector<16x32xf32>
    %362 = math.tanh %361 : vector<16x32xf32>
    %cst_119 = arith.constant 1.000000e+00 : f32
    %363 = vector.broadcast %cst_119 : f32 to vector<16x32xf32>
    %364 = arith.addf %363, %362 : vector<16x32xf32>
    %365 = arith.mulf %353, %364 : vector<16x32xf32>
    %c0_120 = arith.constant 0 : index
    %c0_121 = arith.constant 0 : index
    %366 = vector.load %arg17[%c0_120, %c0_121] : memref<192x32xf32, #tpu.memory_space<vmem>>, vector<192x32xf32>
    %c0_122 = arith.constant 0 : index
    %c0_123 = arith.constant 0 : index
    %367 = vector.load %arg18[%c0_122, %c0_123] : memref<1x32xf32, #tpu.memory_space<vmem>>, vector<1x32xf32>
    %c0_124 = arith.constant 0 : index
    %c0_125 = arith.constant 0 : index
    %368 = vector.load %arg19[%c0_124, %c0_125] : memref<96x32xf32, #tpu.memory_space<vmem>>, vector<96x32xf32>
    %c0_126 = arith.constant 0 : index
    %c0_127 = arith.constant 0 : index
    %369 = vector.load %arg20[%c0_126, %c0_127] : memref<1x32xf32, #tpu.memory_space<vmem>>, vector<1x32xf32>
    %c0_128 = arith.constant 0 : index
    %c0_129 = arith.constant 0 : index
    %370 = vector.load %arg21[%c0_128, %c0_129] : memref<96x32xf32, #tpu.memory_space<vmem>>, vector<96x32xf32>
    %c0_130 = arith.constant 0 : index
    %c0_131 = arith.constant 0 : index
    %371 = vector.load %arg22[%c0_130, %c0_131] : memref<1x32xf32, #tpu.memory_space<vmem>>, vector<1x32xf32>
    %c0_132 = arith.constant 0 : index
    %c0_133 = arith.constant 0 : index
    %372 = vector.load %arg23[%c0_132, %c0_133] : memref<192x32xf32, #tpu.memory_space<vmem>>, vector<192x32xf32>
    %c0_134 = arith.constant 0 : index
    %c0_135 = arith.constant 0 : index
    %373 = vector.load %arg24[%c0_134, %c0_135] : memref<1x32xf32, #tpu.memory_space<vmem>>, vector<1x32xf32>
    %c0_136 = arith.constant 0 : index
    %c0_137 = arith.constant 0 : index
    %374 = vector.load %arg25[%c0_136, %c0_137] : memref<96x32xf32, #tpu.memory_space<vmem>>, vector<96x32xf32>
    %c0_138 = arith.constant 0 : index
    %c0_139 = arith.constant 0 : index
    %375 = vector.load %arg26[%c0_138, %c0_139] : memref<1x32xf32, #tpu.memory_space<vmem>>, vector<1x32xf32>
    %376 = tpu.concatenate %321, %11 in 1 : vector<16x32xf32>, vector<16x32xf32> -> vector<16x64xf32>
    %377 = tpu.concatenate %365, %17 in 1 : vector<16x32xf32>, vector<16x32xf32> -> vector<16x64xf32>
    %378 = vector.broadcast %2 : vector<16x1xf32> to vector<16x64xf32>
    %379 = arith.mulf %376, %378 : vector<16x64xf32>
    %380 = vector.extract_strided_slice %379 {offsets = [0, 0], sizes = [8, 64], strides = [1, 1]} : vector<16x64xf32> to vector<8x64xf32>
    %cst_140 = arith.constant 0.000000e+00 : f32
    %381 = vector.broadcast %cst_140 : f32 to vector<1x64xf32>
    %382 = tpu.concatenate %381, %380, %381 in 0 : vector<1x64xf32>, vector<8x64xf32>, vector<1x64xf32> -> vector<10x64xf32>
    %383 = vector.extract_strided_slice %382 {offsets = [0, 0], sizes = [8, 64], strides = [1, 1]} : vector<10x64xf32> to vector<8x64xf32>
    %384 = vector.extract_strided_slice %382 {offsets = [1, 0], sizes = [8, 64], strides = [1, 1]} : vector<10x64xf32> to vector<8x64xf32>
    %385 = vector.extract_strided_slice %382 {offsets = [2, 0], sizes = [8, 64], strides = [1, 1]} : vector<10x64xf32> to vector<8x64xf32>
    %386 = tpu.concatenate %383, %384, %385 in 1 : vector<8x64xf32>, vector<8x64xf32>, vector<8x64xf32> -> vector<8x192xf32>
    %387 = vector.extract_strided_slice %379 {offsets = [8, 0], sizes = [8, 64], strides = [1, 1]} : vector<16x64xf32> to vector<8x64xf32>
    %cst_141 = arith.constant 0.000000e+00 : f32
    %388 = vector.broadcast %cst_141 : f32 to vector<1x64xf32>
    %389 = tpu.concatenate %388, %387, %388 in 0 : vector<1x64xf32>, vector<8x64xf32>, vector<1x64xf32> -> vector<10x64xf32>
    %390 = vector.extract_strided_slice %389 {offsets = [0, 0], sizes = [8, 64], strides = [1, 1]} : vector<10x64xf32> to vector<8x64xf32>
    %391 = vector.extract_strided_slice %389 {offsets = [1, 0], sizes = [8, 64], strides = [1, 1]} : vector<10x64xf32> to vector<8x64xf32>
    %392 = vector.extract_strided_slice %389 {offsets = [2, 0], sizes = [8, 64], strides = [1, 1]} : vector<10x64xf32> to vector<8x64xf32>
    %393 = tpu.concatenate %390, %391, %392 in 1 : vector<8x64xf32>, vector<8x64xf32>, vector<8x64xf32> -> vector<8x192xf32>
    %394 = tpu.concatenate %386, %393 in 0 : vector<8x192xf32>, vector<8x192xf32> -> vector<16x192xf32>
    %cst_142 = arith.constant dense<0.000000e+00> : vector<16x32xf32>
    %395 = tpu.matmul %394, %366, %cst_142 {dimension_numbers = #tpu.dot_dimension_numbers<[1], [0], [0], [1], [0, 0, 1, 1], [], []>} : vector<16x192xf32>, vector<192x32xf32>, vector<16x32xf32> -> vector<16x32xf32>
    %396 = vector.broadcast %367 : vector<1x32xf32> to vector<16x32xf32>
    %397 = arith.addf %395, %396 : vector<16x32xf32>
    %cst_143 = arith.constant 5.000000e-01 : f32
    %398 = vector.broadcast %cst_143 : f32 to vector<16x32xf32>
    %399 = arith.mulf %398, %397 : vector<16x32xf32>
    %cst_144 = arith.constant 0.797884583 : f32
    %400 = vector.broadcast %cst_144 : f32 to vector<16x32xf32>
    %401 = arith.mulf %397, %400 : vector<16x32xf32>
    %cst_145 = arith.constant 4.471500e-02 : f32
    %402 = vector.broadcast %cst_145 : f32 to vector<16x32xf32>
    %403 = arith.mulf %402, %397 : vector<16x32xf32>
    %404 = arith.mulf %403, %397 : vector<16x32xf32>
    %cst_146 = arith.constant 1.000000e+00 : f32
    %405 = vector.broadcast %cst_146 : f32 to vector<16x32xf32>
    %406 = arith.addf %405, %404 : vector<16x32xf32>
    %407 = arith.mulf %401, %406 : vector<16x32xf32>
    %408 = math.tanh %407 : vector<16x32xf32>
    %cst_147 = arith.constant 1.000000e+00 : f32
    %409 = vector.broadcast %cst_147 : f32 to vector<16x32xf32>
    %410 = arith.addf %409, %408 : vector<16x32xf32>
    %411 = arith.mulf %399, %410 : vector<16x32xf32>
    %412 = vector.broadcast %2 : vector<16x1xf32> to vector<16x32xf32>
    %413 = arith.mulf %411, %412 : vector<16x32xf32>
    %414 = vector.extract_strided_slice %413 {offsets = [0, 0], sizes = [8, 32], strides = [1, 1]} : vector<16x32xf32> to vector<8x32xf32>
    %cst_148 = arith.constant 0.000000e+00 : f32
    %415 = vector.broadcast %cst_148 : f32 to vector<1x32xf32>
    %416 = tpu.concatenate %415, %414, %415 in 0 : vector<1x32xf32>, vector<8x32xf32>, vector<1x32xf32> -> vector<10x32xf32>
    %417 = vector.extract_strided_slice %416 {offsets = [0, 0], sizes = [8, 32], strides = [1, 1]} : vector<10x32xf32> to vector<8x32xf32>
    %418 = vector.extract_strided_slice %416 {offsets = [1, 0], sizes = [8, 32], strides = [1, 1]} : vector<10x32xf32> to vector<8x32xf32>
    %419 = vector.extract_strided_slice %416 {offsets = [2, 0], sizes = [8, 32], strides = [1, 1]} : vector<10x32xf32> to vector<8x32xf32>
    %420 = tpu.concatenate %417, %418, %419 in 1 : vector<8x32xf32>, vector<8x32xf32>, vector<8x32xf32> -> vector<8x96xf32>
    %421 = vector.extract_strided_slice %413 {offsets = [8, 0], sizes = [8, 32], strides = [1, 1]} : vector<16x32xf32> to vector<8x32xf32>
    %cst_149 = arith.constant 0.000000e+00 : f32
    %422 = vector.broadcast %cst_149 : f32 to vector<1x32xf32>
    %423 = tpu.concatenate %422, %421, %422 in 0 : vector<1x32xf32>, vector<8x32xf32>, vector<1x32xf32> -> vector<10x32xf32>
    %424 = vector.extract_strided_slice %423 {offsets = [0, 0], sizes = [8, 32], strides = [1, 1]} : vector<10x32xf32> to vector<8x32xf32>
    %425 = vector.extract_strided_slice %423 {offsets = [1, 0], sizes = [8, 32], strides = [1, 1]} : vector<10x32xf32> to vector<8x32xf32>
    %426 = vector.extract_strided_slice %423 {offsets = [2, 0], sizes = [8, 32], strides = [1, 1]} : vector<10x32xf32> to vector<8x32xf32>
    %427 = tpu.concatenate %424, %425, %426 in 1 : vector<8x32xf32>, vector<8x32xf32>, vector<8x32xf32> -> vector<8x96xf32>
    %428 = tpu.concatenate %420, %427 in 0 : vector<8x96xf32>, vector<8x96xf32> -> vector<16x96xf32>
    %cst_150 = arith.constant dense<0.000000e+00> : vector<16x32xf32>
    %429 = tpu.matmul %428, %368, %cst_150 {dimension_numbers = #tpu.dot_dimension_numbers<[1], [0], [0], [1], [0, 0, 1, 1], [], []>} : vector<16x96xf32>, vector<96x32xf32>, vector<16x32xf32> -> vector<16x32xf32>
    %430 = vector.broadcast %369 : vector<1x32xf32> to vector<16x32xf32>
    %431 = arith.addf %429, %430 : vector<16x32xf32>
    %cst_151 = arith.constant 5.000000e-01 : f32
    %432 = vector.broadcast %cst_151 : f32 to vector<16x32xf32>
    %433 = arith.mulf %432, %431 : vector<16x32xf32>
    %cst_152 = arith.constant 0.797884583 : f32
    %434 = vector.broadcast %cst_152 : f32 to vector<16x32xf32>
    %435 = arith.mulf %431, %434 : vector<16x32xf32>
    %cst_153 = arith.constant 4.471500e-02 : f32
    %436 = vector.broadcast %cst_153 : f32 to vector<16x32xf32>
    %437 = arith.mulf %436, %431 : vector<16x32xf32>
    %438 = arith.mulf %437, %431 : vector<16x32xf32>
    %cst_154 = arith.constant 1.000000e+00 : f32
    %439 = vector.broadcast %cst_154 : f32 to vector<16x32xf32>
    %440 = arith.addf %439, %438 : vector<16x32xf32>
    %441 = arith.mulf %435, %440 : vector<16x32xf32>
    %442 = math.tanh %441 : vector<16x32xf32>
    %cst_155 = arith.constant 1.000000e+00 : f32
    %443 = vector.broadcast %cst_155 : f32 to vector<16x32xf32>
    %444 = arith.addf %443, %442 : vector<16x32xf32>
    %445 = arith.mulf %433, %444 : vector<16x32xf32>
    %446 = vector.broadcast %3 : vector<16x1xf32> to vector<16x64xf32>
    %447 = arith.mulf %377, %446 : vector<16x64xf32>
    %448 = vector.extract_strided_slice %447 {offsets = [0, 0], sizes = [8, 64], strides = [1, 1]} : vector<16x64xf32> to vector<8x64xf32>
    %cst_156 = arith.constant 0.000000e+00 : f32
    %449 = vector.broadcast %cst_156 : f32 to vector<1x64xf32>
    %450 = tpu.concatenate %449, %448, %449 in 0 : vector<1x64xf32>, vector<8x64xf32>, vector<1x64xf32> -> vector<10x64xf32>
    %451 = vector.extract_strided_slice %450 {offsets = [0, 0], sizes = [8, 64], strides = [1, 1]} : vector<10x64xf32> to vector<8x64xf32>
    %452 = vector.extract_strided_slice %450 {offsets = [1, 0], sizes = [8, 64], strides = [1, 1]} : vector<10x64xf32> to vector<8x64xf32>
    %453 = vector.extract_strided_slice %450 {offsets = [2, 0], sizes = [8, 64], strides = [1, 1]} : vector<10x64xf32> to vector<8x64xf32>
    %454 = tpu.concatenate %451, %452, %453 in 1 : vector<8x64xf32>, vector<8x64xf32>, vector<8x64xf32> -> vector<8x192xf32>
    %455 = vector.extract_strided_slice %447 {offsets = [8, 0], sizes = [8, 64], strides = [1, 1]} : vector<16x64xf32> to vector<8x64xf32>
    %cst_157 = arith.constant 0.000000e+00 : f32
    %456 = vector.broadcast %cst_157 : f32 to vector<1x64xf32>
    %457 = tpu.concatenate %456, %455, %456 in 0 : vector<1x64xf32>, vector<8x64xf32>, vector<1x64xf32> -> vector<10x64xf32>
    %458 = vector.extract_strided_slice %457 {offsets = [0, 0], sizes = [8, 64], strides = [1, 1]} : vector<10x64xf32> to vector<8x64xf32>
    %459 = vector.extract_strided_slice %457 {offsets = [1, 0], sizes = [8, 64], strides = [1, 1]} : vector<10x64xf32> to vector<8x64xf32>
    %460 = vector.extract_strided_slice %457 {offsets = [2, 0], sizes = [8, 64], strides = [1, 1]} : vector<10x64xf32> to vector<8x64xf32>
    %461 = tpu.concatenate %458, %459, %460 in 1 : vector<8x64xf32>, vector<8x64xf32>, vector<8x64xf32> -> vector<8x192xf32>
    %462 = tpu.concatenate %454, %461 in 0 : vector<8x192xf32>, vector<8x192xf32> -> vector<16x192xf32>
    %cst_158 = arith.constant dense<0.000000e+00> : vector<16x32xf32>
    %463 = tpu.matmul %462, %366, %cst_158 {dimension_numbers = #tpu.dot_dimension_numbers<[1], [0], [0], [1], [0, 0, 1, 1], [], []>} : vector<16x192xf32>, vector<192x32xf32>, vector<16x32xf32> -> vector<16x32xf32>
    %464 = vector.broadcast %367 : vector<1x32xf32> to vector<16x32xf32>
    %465 = arith.addf %463, %464 : vector<16x32xf32>
    %cst_159 = arith.constant 5.000000e-01 : f32
    %466 = vector.broadcast %cst_159 : f32 to vector<16x32xf32>
    %467 = arith.mulf %466, %465 : vector<16x32xf32>
    %cst_160 = arith.constant 0.797884583 : f32
    %468 = vector.broadcast %cst_160 : f32 to vector<16x32xf32>
    %469 = arith.mulf %465, %468 : vector<16x32xf32>
    %cst_161 = arith.constant 4.471500e-02 : f32
    %470 = vector.broadcast %cst_161 : f32 to vector<16x32xf32>
    %471 = arith.mulf %470, %465 : vector<16x32xf32>
    %472 = arith.mulf %471, %465 : vector<16x32xf32>
    %cst_162 = arith.constant 1.000000e+00 : f32
    %473 = vector.broadcast %cst_162 : f32 to vector<16x32xf32>
    %474 = arith.addf %473, %472 : vector<16x32xf32>
    %475 = arith.mulf %469, %474 : vector<16x32xf32>
    %476 = math.tanh %475 : vector<16x32xf32>
    %cst_163 = arith.constant 1.000000e+00 : f32
    %477 = vector.broadcast %cst_163 : f32 to vector<16x32xf32>
    %478 = arith.addf %477, %476 : vector<16x32xf32>
    %479 = arith.mulf %467, %478 : vector<16x32xf32>
    %480 = vector.broadcast %3 : vector<16x1xf32> to vector<16x32xf32>
    %481 = arith.mulf %479, %480 : vector<16x32xf32>
    %482 = vector.extract_strided_slice %481 {offsets = [0, 0], sizes = [8, 32], strides = [1, 1]} : vector<16x32xf32> to vector<8x32xf32>
    %cst_164 = arith.constant 0.000000e+00 : f32
    %483 = vector.broadcast %cst_164 : f32 to vector<1x32xf32>
    %484 = tpu.concatenate %483, %482, %483 in 0 : vector<1x32xf32>, vector<8x32xf32>, vector<1x32xf32> -> vector<10x32xf32>
    %485 = vector.extract_strided_slice %484 {offsets = [0, 0], sizes = [8, 32], strides = [1, 1]} : vector<10x32xf32> to vector<8x32xf32>
    %486 = vector.extract_strided_slice %484 {offsets = [1, 0], sizes = [8, 32], strides = [1, 1]} : vector<10x32xf32> to vector<8x32xf32>
    %487 = vector.extract_strided_slice %484 {offsets = [2, 0], sizes = [8, 32], strides = [1, 1]} : vector<10x32xf32> to vector<8x32xf32>
    %488 = tpu.concatenate %485, %486, %487 in 1 : vector<8x32xf32>, vector<8x32xf32>, vector<8x32xf32> -> vector<8x96xf32>
    %489 = vector.extract_strided_slice %481 {offsets = [8, 0], sizes = [8, 32], strides = [1, 1]} : vector<16x32xf32> to vector<8x32xf32>
    %cst_165 = arith.constant 0.000000e+00 : f32
    %490 = vector.broadcast %cst_165 : f32 to vector<1x32xf32>
    %491 = tpu.concatenate %490, %489, %490 in 0 : vector<1x32xf32>, vector<8x32xf32>, vector<1x32xf32> -> vector<10x32xf32>
    %492 = vector.extract_strided_slice %491 {offsets = [0, 0], sizes = [8, 32], strides = [1, 1]} : vector<10x32xf32> to vector<8x32xf32>
    %493 = vector.extract_strided_slice %491 {offsets = [1, 0], sizes = [8, 32], strides = [1, 1]} : vector<10x32xf32> to vector<8x32xf32>
    %494 = vector.extract_strided_slice %491 {offsets = [2, 0], sizes = [8, 32], strides = [1, 1]} : vector<10x32xf32> to vector<8x32xf32>
    %495 = tpu.concatenate %492, %493, %494 in 1 : vector<8x32xf32>, vector<8x32xf32>, vector<8x32xf32> -> vector<8x96xf32>
    %496 = tpu.concatenate %488, %495 in 0 : vector<8x96xf32>, vector<8x96xf32> -> vector<16x96xf32>
    %cst_166 = arith.constant dense<0.000000e+00> : vector<16x32xf32>
    %497 = tpu.matmul %496, %368, %cst_166 {dimension_numbers = #tpu.dot_dimension_numbers<[1], [0], [0], [1], [0, 0, 1, 1], [], []>} : vector<16x96xf32>, vector<96x32xf32>, vector<16x32xf32> -> vector<16x32xf32>
    %498 = vector.broadcast %369 : vector<1x32xf32> to vector<16x32xf32>
    %499 = arith.addf %497, %498 : vector<16x32xf32>
    %cst_167 = arith.constant 5.000000e-01 : f32
    %500 = vector.broadcast %cst_167 : f32 to vector<16x32xf32>
    %501 = arith.mulf %500, %499 : vector<16x32xf32>
    %cst_168 = arith.constant 0.797884583 : f32
    %502 = vector.broadcast %cst_168 : f32 to vector<16x32xf32>
    %503 = arith.mulf %499, %502 : vector<16x32xf32>
    %cst_169 = arith.constant 4.471500e-02 : f32
    %504 = vector.broadcast %cst_169 : f32 to vector<16x32xf32>
    %505 = arith.mulf %504, %499 : vector<16x32xf32>
    %506 = arith.mulf %505, %499 : vector<16x32xf32>
    %cst_170 = arith.constant 1.000000e+00 : f32
    %507 = vector.broadcast %cst_170 : f32 to vector<16x32xf32>
    %508 = arith.addf %507, %506 : vector<16x32xf32>
    %509 = arith.mulf %503, %508 : vector<16x32xf32>
    %510 = math.tanh %509 : vector<16x32xf32>
    %cst_171 = arith.constant 1.000000e+00 : f32
    %511 = vector.broadcast %cst_171 : f32 to vector<16x32xf32>
    %512 = arith.addf %511, %510 : vector<16x32xf32>
    %513 = arith.mulf %501, %512 : vector<16x32xf32>
    %514 = tpu.concatenate %376, %445 in 1 : vector<16x64xf32>, vector<16x32xf32> -> vector<16x96xf32>
    %515 = tpu.concatenate %377, %513 in 1 : vector<16x64xf32>, vector<16x32xf32> -> vector<16x96xf32>
    %cst_172 = arith.constant dense<0.000000e+00> : vector<16x32xf32>
    %516 = tpu.matmul %514, %370, %cst_172 {dimension_numbers = #tpu.dot_dimension_numbers<[1], [0], [0], [1], [0, 0, 1, 1], [], []>} : vector<16x96xf32>, vector<96x32xf32>, vector<16x32xf32> -> vector<16x32xf32>
    %517 = vector.broadcast %371 : vector<1x32xf32> to vector<16x32xf32>
    %518 = arith.addf %516, %517 : vector<16x32xf32>
    %cst_173 = arith.constant 5.000000e-01 : f32
    %519 = vector.broadcast %cst_173 : f32 to vector<16x32xf32>
    %520 = arith.mulf %519, %518 : vector<16x32xf32>
    %cst_174 = arith.constant 0.797884583 : f32
    %521 = vector.broadcast %cst_174 : f32 to vector<16x32xf32>
    %522 = arith.mulf %518, %521 : vector<16x32xf32>
    %cst_175 = arith.constant 4.471500e-02 : f32
    %523 = vector.broadcast %cst_175 : f32 to vector<16x32xf32>
    %524 = arith.mulf %523, %518 : vector<16x32xf32>
    %525 = arith.mulf %524, %518 : vector<16x32xf32>
    %cst_176 = arith.constant 1.000000e+00 : f32
    %526 = vector.broadcast %cst_176 : f32 to vector<16x32xf32>
    %527 = arith.addf %526, %525 : vector<16x32xf32>
    %528 = arith.mulf %522, %527 : vector<16x32xf32>
    %529 = math.tanh %528 : vector<16x32xf32>
    %cst_177 = arith.constant 1.000000e+00 : f32
    %530 = vector.broadcast %cst_177 : f32 to vector<16x32xf32>
    %531 = arith.addf %530, %529 : vector<16x32xf32>
    %532 = arith.mulf %520, %531 : vector<16x32xf32>
    %cst_178 = arith.constant dense<0.000000e+00> : vector<16x32xf32>
    %533 = tpu.matmul %515, %370, %cst_178 {dimension_numbers = #tpu.dot_dimension_numbers<[1], [0], [0], [1], [0, 0, 1, 1], [], []>} : vector<16x96xf32>, vector<96x32xf32>, vector<16x32xf32> -> vector<16x32xf32>
    %534 = vector.broadcast %371 : vector<1x32xf32> to vector<16x32xf32>
    %535 = arith.addf %533, %534 : vector<16x32xf32>
    %cst_179 = arith.constant 5.000000e-01 : f32
    %536 = vector.broadcast %cst_179 : f32 to vector<16x32xf32>
    %537 = arith.mulf %536, %535 : vector<16x32xf32>
    %cst_180 = arith.constant 0.797884583 : f32
    %538 = vector.broadcast %cst_180 : f32 to vector<16x32xf32>
    %539 = arith.mulf %535, %538 : vector<16x32xf32>
    %cst_181 = arith.constant 4.471500e-02 : f32
    %540 = vector.broadcast %cst_181 : f32 to vector<16x32xf32>
    %541 = arith.mulf %540, %535 : vector<16x32xf32>
    %542 = arith.mulf %541, %535 : vector<16x32xf32>
    %cst_182 = arith.constant 1.000000e+00 : f32
    %543 = vector.broadcast %cst_182 : f32 to vector<16x32xf32>
    %544 = arith.addf %543, %542 : vector<16x32xf32>
    %545 = arith.mulf %539, %544 : vector<16x32xf32>
    %546 = math.tanh %545 : vector<16x32xf32>
    %cst_183 = arith.constant 1.000000e+00 : f32
    %547 = vector.broadcast %cst_183 : f32 to vector<16x32xf32>
    %548 = arith.addf %547, %546 : vector<16x32xf32>
    %549 = arith.mulf %537, %548 : vector<16x32xf32>
    %550 = vector.extract_strided_slice %532 {offsets = [0, 0], sizes = [8, 32], strides = [1, 1]} : vector<16x32xf32> to vector<8x32xf32>
    %551 = vector.extract_strided_slice %549 {offsets = [0, 0], sizes = [8, 32], strides = [1, 1]} : vector<16x32xf32> to vector<8x32xf32>
    %cst_184 = arith.constant dense<0.000000e+00> : vector<8x8xf32>
    %552 = tpu.matmul %550, %551, %cst_184 {dimension_numbers = #tpu.dot_dimension_numbers<[1], [1], [0], [0], [0, 0, 1, 0], [], []>} : vector<8x32xf32>, vector<8x32xf32>, vector<8x8xf32> -> vector<8x8xf32>
    %cst_185 = arith.constant 0.176776692 : f32
    %553 = vector.broadcast %cst_185 : f32 to vector<8x8xf32>
    %554 = arith.mulf %552, %553 : vector<8x8xf32>
    %555 = vector.extract_strided_slice %2 {offsets = [0, 0], sizes = [8, 1], strides = [1, 1]} : vector<16x1xf32> to vector<8x1xf32>
    %556 = vector.extract_strided_slice %4 {offsets = [0, 0], sizes = [1, 8], strides = [1, 1]} : vector<2x8xf32> to vector<1x8xf32>
    %557 = vector.broadcast %555 : vector<8x1xf32> to vector<8x8xf32>
    %558 = vector.broadcast %556 : vector<1x8xf32> to vector<8x8xf32>
    %559 = arith.mulf %557, %558 : vector<8x8xf32>
    %cst_186 = arith.constant 0.000000e+00 : f32
    %560 = vector.broadcast %cst_186 : f32 to vector<8x8xf32>
    %561 = arith.cmpf ogt, %559, %560 : vector<8x8xf32>
    %cst_187 = arith.constant -1.000000e+07 : f32
    %562 = vector.broadcast %cst_187 : f32 to vector<8x8xf32>
    %563 = arith.select %561, %554, %562 : vector<8x8xi1>, vector<8x8xf32>
    %cst_188 = arith.constant dense<0xFF800000> : vector<8xf32>
    %564 = vector.multi_reduction <maximumf>, %563, %cst_188 [0] : vector<8x8xf32> to vector<8xf32>
    %565 = vector.shape_cast %564 : vector<8xf32> to vector<1x8xf32>
    %566 = vector.broadcast %565 : vector<1x8xf32> to vector<8x8xf32>
    %567 = arith.subf %563, %566 : vector<8x8xf32>
    %568 = math.exp %567 : vector<8x8xf32>
    %cst_189 = arith.constant dense<0.000000e+00> : vector<8xf32>
    %569 = vector.multi_reduction <add>, %568, %cst_189 [0] : vector<8x8xf32> to vector<8xf32>
    %570 = vector.shape_cast %569 : vector<8xf32> to vector<1x8xf32>
    %571 = tpu.reciprocal %570 {approx = true} : vector<1x8xf32> -> vector<1x8xf32>
    %572 = vector.broadcast %571 : vector<1x8xf32> to vector<8x8xf32>
    %573 = arith.mulf %568, %572 : vector<8x8xf32>
    %cst_190 = arith.constant dense<0xFF800000> : vector<8xf32>
    %574 = vector.multi_reduction <maximumf>, %563, %cst_190 [1] : vector<8x8xf32> to vector<8xf32>
    %575 = vector.shape_cast %574 : vector<8xf32> to vector<8x1xf32>
    %576 = vector.broadcast %575 : vector<8x1xf32> to vector<8x8xf32>
    %577 = arith.subf %563, %576 : vector<8x8xf32>
    %578 = math.exp %577 : vector<8x8xf32>
    %cst_191 = arith.constant dense<0.000000e+00> : vector<8xf32>
    %579 = vector.multi_reduction <add>, %578, %cst_191 [1] : vector<8x8xf32> to vector<8xf32>
    %580 = vector.shape_cast %579 : vector<8xf32> to vector<8x1xf32>
    %581 = tpu.reciprocal %580 {approx = true} : vector<8x1xf32> -> vector<8x1xf32>
    %582 = vector.broadcast %581 : vector<8x1xf32> to vector<8x8xf32>
    %583 = arith.mulf %578, %582 : vector<8x8xf32>
    %584 = vector.extract_strided_slice %514 {offsets = [0, 0], sizes = [8, 96], strides = [1, 1]} : vector<16x96xf32> to vector<8x96xf32>
    %cst_192 = arith.constant dense<0.000000e+00> : vector<8x96xf32>
    %585 = tpu.matmul %573, %584, %cst_192 {dimension_numbers = #tpu.dot_dimension_numbers<[0], [0], [1], [1], [0, 1, 1, 1], [], []>} : vector<8x8xf32>, vector<8x96xf32>, vector<8x96xf32> -> vector<8x96xf32>
    %586 = vector.extract_strided_slice %515 {offsets = [0, 0], sizes = [8, 96], strides = [1, 1]} : vector<16x96xf32> to vector<8x96xf32>
    %cst_193 = arith.constant dense<0.000000e+00> : vector<8x96xf32>
    %587 = tpu.matmul %583, %586, %cst_193 {dimension_numbers = #tpu.dot_dimension_numbers<[1], [0], [0], [1], [0, 0, 1, 1], [], []>} : vector<8x8xf32>, vector<8x96xf32>, vector<8x96xf32> -> vector<8x96xf32>
    %588 = vector.extract_strided_slice %532 {offsets = [8, 0], sizes = [8, 32], strides = [1, 1]} : vector<16x32xf32> to vector<8x32xf32>
    %589 = vector.extract_strided_slice %549 {offsets = [8, 0], sizes = [8, 32], strides = [1, 1]} : vector<16x32xf32> to vector<8x32xf32>
    %cst_194 = arith.constant dense<0.000000e+00> : vector<8x8xf32>
    %590 = tpu.matmul %588, %589, %cst_194 {dimension_numbers = #tpu.dot_dimension_numbers<[1], [1], [0], [0], [0, 0, 1, 0], [], []>} : vector<8x32xf32>, vector<8x32xf32>, vector<8x8xf32> -> vector<8x8xf32>
    %cst_195 = arith.constant 0.176776692 : f32
    %591 = vector.broadcast %cst_195 : f32 to vector<8x8xf32>
    %592 = arith.mulf %590, %591 : vector<8x8xf32>
    %593 = vector.extract_strided_slice %2 {offsets = [8, 0], sizes = [8, 1], strides = [1, 1]} : vector<16x1xf32> to vector<8x1xf32>
    %594 = vector.extract_strided_slice %4 {offsets = [1, 0], sizes = [1, 8], strides = [1, 1]} : vector<2x8xf32> to vector<1x8xf32>
    %595 = vector.broadcast %593 : vector<8x1xf32> to vector<8x8xf32>
    %596 = vector.broadcast %594 : vector<1x8xf32> to vector<8x8xf32>
    %597 = arith.mulf %595, %596 : vector<8x8xf32>
    %cst_196 = arith.constant 0.000000e+00 : f32
    %598 = vector.broadcast %cst_196 : f32 to vector<8x8xf32>
    %599 = arith.cmpf ogt, %597, %598 : vector<8x8xf32>
    %cst_197 = arith.constant -1.000000e+07 : f32
    %600 = vector.broadcast %cst_197 : f32 to vector<8x8xf32>
    %601 = arith.select %599, %592, %600 : vector<8x8xi1>, vector<8x8xf32>
    %cst_198 = arith.constant dense<0xFF800000> : vector<8xf32>
    %602 = vector.multi_reduction <maximumf>, %601, %cst_198 [0] : vector<8x8xf32> to vector<8xf32>
    %603 = vector.shape_cast %602 : vector<8xf32> to vector<1x8xf32>
    %604 = vector.broadcast %603 : vector<1x8xf32> to vector<8x8xf32>
    %605 = arith.subf %601, %604 : vector<8x8xf32>
    %606 = math.exp %605 : vector<8x8xf32>
    %cst_199 = arith.constant dense<0.000000e+00> : vector<8xf32>
    %607 = vector.multi_reduction <add>, %606, %cst_199 [0] : vector<8x8xf32> to vector<8xf32>
    %608 = vector.shape_cast %607 : vector<8xf32> to vector<1x8xf32>
    %609 = tpu.reciprocal %608 {approx = true} : vector<1x8xf32> -> vector<1x8xf32>
    %610 = vector.broadcast %609 : vector<1x8xf32> to vector<8x8xf32>
    %611 = arith.mulf %606, %610 : vector<8x8xf32>
    %cst_200 = arith.constant dense<0xFF800000> : vector<8xf32>
    %612 = vector.multi_reduction <maximumf>, %601, %cst_200 [1] : vector<8x8xf32> to vector<8xf32>
    %613 = vector.shape_cast %612 : vector<8xf32> to vector<8x1xf32>
    %614 = vector.broadcast %613 : vector<8x1xf32> to vector<8x8xf32>
    %615 = arith.subf %601, %614 : vector<8x8xf32>
    %616 = math.exp %615 : vector<8x8xf32>
    %cst_201 = arith.constant dense<0.000000e+00> : vector<8xf32>
    %617 = vector.multi_reduction <add>, %616, %cst_201 [1] : vector<8x8xf32> to vector<8xf32>
    %618 = vector.shape_cast %617 : vector<8xf32> to vector<8x1xf32>
    %619 = tpu.reciprocal %618 {approx = true} : vector<8x1xf32> -> vector<8x1xf32>
    %620 = vector.broadcast %619 : vector<8x1xf32> to vector<8x8xf32>
    %621 = arith.mulf %616, %620 : vector<8x8xf32>
    %622 = vector.extract_strided_slice %514 {offsets = [8, 0], sizes = [8, 96], strides = [1, 1]} : vector<16x96xf32> to vector<8x96xf32>
    %cst_202 = arith.constant dense<0.000000e+00> : vector<8x96xf32>
    %623 = tpu.matmul %611, %622, %cst_202 {dimension_numbers = #tpu.dot_dimension_numbers<[0], [0], [1], [1], [0, 1, 1, 1], [], []>} : vector<8x8xf32>, vector<8x96xf32>, vector<8x96xf32> -> vector<8x96xf32>
    %624 = vector.extract_strided_slice %515 {offsets = [8, 0], sizes = [8, 96], strides = [1, 1]} : vector<16x96xf32> to vector<8x96xf32>
    %cst_203 = arith.constant dense<0.000000e+00> : vector<8x96xf32>
    %625 = tpu.matmul %621, %624, %cst_203 {dimension_numbers = #tpu.dot_dimension_numbers<[1], [0], [0], [1], [0, 0, 1, 1], [], []>} : vector<8x8xf32>, vector<8x96xf32>, vector<8x96xf32> -> vector<8x96xf32>
    %626 = tpu.concatenate %587, %625 in 0 : vector<8x96xf32>, vector<8x96xf32> -> vector<16x96xf32>
    %627 = tpu.concatenate %585, %623 in 0 : vector<8x96xf32>, vector<8x96xf32> -> vector<16x96xf32>
    %628 = tpu.concatenate %514, %626 in 1 : vector<16x96xf32>, vector<16x96xf32> -> vector<16x192xf32>
    %629 = arith.subf %514, %626 : vector<16x96xf32>
    %630 = tpu.concatenate %514, %629 in 1 : vector<16x96xf32>, vector<16x96xf32> -> vector<16x192xf32>
    %631 = arith.mulf %514, %626 : vector<16x96xf32>
    %632 = tpu.concatenate %514, %631 in 1 : vector<16x96xf32>, vector<16x96xf32> -> vector<16x192xf32>
    %633 = tpu.concatenate %628, %630, %632 in 0 : vector<16x192xf32>, vector<16x192xf32>, vector<16x192xf32> -> vector<48x192xf32>
    %cst_204 = arith.constant dense<0.000000e+00> : vector<48x32xf32>
    %634 = tpu.matmul %633, %372, %cst_204 {dimension_numbers = #tpu.dot_dimension_numbers<[1], [0], [0], [1], [0, 0, 1, 1], [], []>} : vector<48x192xf32>, vector<192x32xf32>, vector<48x32xf32> -> vector<48x32xf32>
    %635 = vector.broadcast %373 : vector<1x32xf32> to vector<48x32xf32>
    %636 = arith.addf %634, %635 : vector<48x32xf32>
    %cst_205 = arith.constant 5.000000e-01 : f32
    %637 = vector.broadcast %cst_205 : f32 to vector<48x32xf32>
    %638 = arith.mulf %637, %636 : vector<48x32xf32>
    %cst_206 = arith.constant 0.797884583 : f32
    %639 = vector.broadcast %cst_206 : f32 to vector<48x32xf32>
    %640 = arith.mulf %636, %639 : vector<48x32xf32>
    %cst_207 = arith.constant 4.471500e-02 : f32
    %641 = vector.broadcast %cst_207 : f32 to vector<48x32xf32>
    %642 = arith.mulf %641, %636 : vector<48x32xf32>
    %643 = arith.mulf %642, %636 : vector<48x32xf32>
    %cst_208 = arith.constant 1.000000e+00 : f32
    %644 = vector.broadcast %cst_208 : f32 to vector<48x32xf32>
    %645 = arith.addf %644, %643 : vector<48x32xf32>
    %646 = arith.mulf %640, %645 : vector<48x32xf32>
    %647 = math.tanh %646 : vector<48x32xf32>
    %cst_209 = arith.constant 1.000000e+00 : f32
    %648 = vector.broadcast %cst_209 : f32 to vector<48x32xf32>
    %649 = arith.addf %648, %647 : vector<48x32xf32>
    %650 = arith.mulf %638, %649 : vector<48x32xf32>
    %651 = vector.extract_strided_slice %650 {offsets = [0, 0], sizes = [16, 32], strides = [1, 1]} : vector<48x32xf32> to vector<16x32xf32>
    %652 = vector.extract_strided_slice %650 {offsets = [16, 0], sizes = [16, 32], strides = [1, 1]} : vector<48x32xf32> to vector<16x32xf32>
    %653 = vector.extract_strided_slice %650 {offsets = [32, 0], sizes = [16, 32], strides = [1, 1]} : vector<48x32xf32> to vector<16x32xf32>
    %654 = tpu.concatenate %651, %652, %653 in 1 : vector<16x32xf32>, vector<16x32xf32>, vector<16x32xf32> -> vector<16x96xf32>
    %cst_210 = arith.constant dense<0.000000e+00> : vector<16x32xf32>
    %655 = tpu.matmul %654, %374, %cst_210 {dimension_numbers = #tpu.dot_dimension_numbers<[1], [0], [0], [1], [0, 0, 1, 1], [], []>} : vector<16x96xf32>, vector<96x32xf32>, vector<16x32xf32> -> vector<16x32xf32>
    %656 = vector.broadcast %375 : vector<1x32xf32> to vector<16x32xf32>
    %657 = arith.addf %655, %656 : vector<16x32xf32>
    %cst_211 = arith.constant 5.000000e-01 : f32
    %658 = vector.broadcast %cst_211 : f32 to vector<16x32xf32>
    %659 = arith.mulf %658, %657 : vector<16x32xf32>
    %cst_212 = arith.constant 0.797884583 : f32
    %660 = vector.broadcast %cst_212 : f32 to vector<16x32xf32>
    %661 = arith.mulf %657, %660 : vector<16x32xf32>
    %cst_213 = arith.constant 4.471500e-02 : f32
    %662 = vector.broadcast %cst_213 : f32 to vector<16x32xf32>
    %663 = arith.mulf %662, %657 : vector<16x32xf32>
    %664 = arith.mulf %663, %657 : vector<16x32xf32>
    %cst_214 = arith.constant 1.000000e+00 : f32
    %665 = vector.broadcast %cst_214 : f32 to vector<16x32xf32>
    %666 = arith.addf %665, %664 : vector<16x32xf32>
    %667 = arith.mulf %661, %666 : vector<16x32xf32>
    %668 = math.tanh %667 : vector<16x32xf32>
    %cst_215 = arith.constant 1.000000e+00 : f32
    %669 = vector.broadcast %cst_215 : f32 to vector<16x32xf32>
    %670 = arith.addf %669, %668 : vector<16x32xf32>
    %671 = arith.mulf %659, %670 : vector<16x32xf32>
    %672 = tpu.concatenate %515, %627 in 1 : vector<16x96xf32>, vector<16x96xf32> -> vector<16x192xf32>
    %673 = arith.subf %515, %627 : vector<16x96xf32>
    %674 = tpu.concatenate %515, %673 in 1 : vector<16x96xf32>, vector<16x96xf32> -> vector<16x192xf32>
    %675 = arith.mulf %515, %627 : vector<16x96xf32>
    %676 = tpu.concatenate %515, %675 in 1 : vector<16x96xf32>, vector<16x96xf32> -> vector<16x192xf32>
    %677 = tpu.concatenate %672, %674, %676 in 0 : vector<16x192xf32>, vector<16x192xf32>, vector<16x192xf32> -> vector<48x192xf32>
    %cst_216 = arith.constant dense<0.000000e+00> : vector<48x32xf32>
    %678 = tpu.matmul %677, %372, %cst_216 {dimension_numbers = #tpu.dot_dimension_numbers<[1], [0], [0], [1], [0, 0, 1, 1], [], []>} : vector<48x192xf32>, vector<192x32xf32>, vector<48x32xf32> -> vector<48x32xf32>
    %679 = vector.broadcast %373 : vector<1x32xf32> to vector<48x32xf32>
    %680 = arith.addf %678, %679 : vector<48x32xf32>
    %cst_217 = arith.constant 5.000000e-01 : f32
    %681 = vector.broadcast %cst_217 : f32 to vector<48x32xf32>
    %682 = arith.mulf %681, %680 : vector<48x32xf32>
    %cst_218 = arith.constant 0.797884583 : f32
    %683 = vector.broadcast %cst_218 : f32 to vector<48x32xf32>
    %684 = arith.mulf %680, %683 : vector<48x32xf32>
    %cst_219 = arith.constant 4.471500e-02 : f32
    %685 = vector.broadcast %cst_219 : f32 to vector<48x32xf32>
    %686 = arith.mulf %685, %680 : vector<48x32xf32>
    %687 = arith.mulf %686, %680 : vector<48x32xf32>
    %cst_220 = arith.constant 1.000000e+00 : f32
    %688 = vector.broadcast %cst_220 : f32 to vector<48x32xf32>
    %689 = arith.addf %688, %687 : vector<48x32xf32>
    %690 = arith.mulf %684, %689 : vector<48x32xf32>
    %691 = math.tanh %690 : vector<48x32xf32>
    %cst_221 = arith.constant 1.000000e+00 : f32
    %692 = vector.broadcast %cst_221 : f32 to vector<48x32xf32>
    %693 = arith.addf %692, %691 : vector<48x32xf32>
    %694 = arith.mulf %682, %693 : vector<48x32xf32>
    %695 = vector.extract_strided_slice %694 {offsets = [0, 0], sizes = [16, 32], strides = [1, 1]} : vector<48x32xf32> to vector<16x32xf32>
    %696 = vector.extract_strided_slice %694 {offsets = [16, 0], sizes = [16, 32], strides = [1, 1]} : vector<48x32xf32> to vector<16x32xf32>
    %697 = vector.extract_strided_slice %694 {offsets = [32, 0], sizes = [16, 32], strides = [1, 1]} : vector<48x32xf32> to vector<16x32xf32>
    %698 = tpu.concatenate %695, %696, %697 in 1 : vector<16x32xf32>, vector<16x32xf32>, vector<16x32xf32> -> vector<16x96xf32>
    %cst_222 = arith.constant dense<0.000000e+00> : vector<16x32xf32>
    %699 = tpu.matmul %698, %374, %cst_222 {dimension_numbers = #tpu.dot_dimension_numbers<[1], [0], [0], [1], [0, 0, 1, 1], [], []>} : vector<16x96xf32>, vector<96x32xf32>, vector<16x32xf32> -> vector<16x32xf32>
    %700 = vector.broadcast %375 : vector<1x32xf32> to vector<16x32xf32>
    %701 = arith.addf %699, %700 : vector<16x32xf32>
    %cst_223 = arith.constant 5.000000e-01 : f32
    %702 = vector.broadcast %cst_223 : f32 to vector<16x32xf32>
    %703 = arith.mulf %702, %701 : vector<16x32xf32>
    %cst_224 = arith.constant 0.797884583 : f32
    %704 = vector.broadcast %cst_224 : f32 to vector<16x32xf32>
    %705 = arith.mulf %701, %704 : vector<16x32xf32>
    %cst_225 = arith.constant 4.471500e-02 : f32
    %706 = vector.broadcast %cst_225 : f32 to vector<16x32xf32>
    %707 = arith.mulf %706, %701 : vector<16x32xf32>
    %708 = arith.mulf %707, %701 : vector<16x32xf32>
    %cst_226 = arith.constant 1.000000e+00 : f32
    %709 = vector.broadcast %cst_226 : f32 to vector<16x32xf32>
    %710 = arith.addf %709, %708 : vector<16x32xf32>
    %711 = arith.mulf %705, %710 : vector<16x32xf32>
    %712 = math.tanh %711 : vector<16x32xf32>
    %cst_227 = arith.constant 1.000000e+00 : f32
    %713 = vector.broadcast %cst_227 : f32 to vector<16x32xf32>
    %714 = arith.addf %713, %712 : vector<16x32xf32>
    %715 = arith.mulf %703, %714 : vector<16x32xf32>
    %c0_228 = arith.constant 0 : index
    %c0_229 = arith.constant 0 : index
    %716 = vector.load %arg27[%c0_228, %c0_229] : memref<128x32xf32, #tpu.memory_space<vmem>>, vector<128x32xf32>
    %c0_230 = arith.constant 0 : index
    %c0_231 = arith.constant 0 : index
    %717 = vector.load %arg28[%c0_230, %c0_231] : memref<1x32xf32, #tpu.memory_space<vmem>>, vector<1x32xf32>
    %c0_232 = arith.constant 0 : index
    %c0_233 = arith.constant 0 : index
    %718 = vector.load %arg29[%c0_232, %c0_233] : memref<32x2xf32, #tpu.memory_space<vmem>>, vector<32x2xf32>
    %c0_234 = arith.constant 0 : index
    %c0_235 = arith.constant 0 : index
    %719 = vector.load %arg30[%c0_234, %c0_235] : memref<1x2xf32, #tpu.memory_space<vmem>>, vector<1x2xf32>
    %720 = vector.extract_strided_slice %2 {offsets = [0, 0], sizes = [8, 1], strides = [1, 1]} : vector<16x1xf32> to vector<8x1xf32>
    %cst_236 = arith.constant 0.000000e+00 : f32
    %721 = vector.broadcast %cst_236 : f32 to vector<8x1xf32>
    %722 = arith.cmpf ogt, %720, %721 : vector<8x1xf32>
    %723 = vector.extract_strided_slice %671 {offsets = [0, 0], sizes = [8, 32], strides = [1, 1]} : vector<16x32xf32> to vector<8x32xf32>
    %cst_237 = arith.constant -1.000000e+07 : f32
    %724 = vector.shape_cast %722 : vector<8x1xi1> to vector<8x1xi1>
    %725 = vector.broadcast %724 : vector<8x1xi1> to vector<8x32xi1>
    %726 = vector.broadcast %cst_237 : f32 to vector<8x32xf32>
    %727 = arith.select %725, %723, %726 : vector<8x32xi1>, vector<8x32xf32>
    %cst_238 = arith.constant dense<0xFF800000> : vector<32xf32>
    %728 = vector.multi_reduction <maximumf>, %727, %cst_238 [0] : vector<8x32xf32> to vector<32xf32>
    %729 = vector.shape_cast %728 : vector<32xf32> to vector<1x32xf32>
    %730 = vector.extract_strided_slice %2 {offsets = [8, 0], sizes = [8, 1], strides = [1, 1]} : vector<16x1xf32> to vector<8x1xf32>
    %cst_239 = arith.constant 0.000000e+00 : f32
    %731 = vector.broadcast %cst_239 : f32 to vector<8x1xf32>
    %732 = arith.cmpf ogt, %730, %731 : vector<8x1xf32>
    %733 = vector.extract_strided_slice %671 {offsets = [8, 0], sizes = [8, 32], strides = [1, 1]} : vector<16x32xf32> to vector<8x32xf32>
    %cst_240 = arith.constant -1.000000e+07 : f32
    %734 = vector.shape_cast %732 : vector<8x1xi1> to vector<8x1xi1>
    %735 = vector.broadcast %734 : vector<8x1xi1> to vector<8x32xi1>
    %736 = vector.broadcast %cst_240 : f32 to vector<8x32xf32>
    %737 = arith.select %735, %733, %736 : vector<8x32xi1>, vector<8x32xf32>
    %cst_241 = arith.constant dense<0xFF800000> : vector<32xf32>
    %738 = vector.multi_reduction <maximumf>, %737, %cst_241 [0] : vector<8x32xf32> to vector<32xf32>
    %739 = vector.shape_cast %738 : vector<32xf32> to vector<1x32xf32>
    %740 = tpu.concatenate %729, %739 in 0 : vector<1x32xf32>, vector<1x32xf32> -> vector<2x32xf32>
    %741 = vector.extract_strided_slice %3 {offsets = [0, 0], sizes = [8, 1], strides = [1, 1]} : vector<16x1xf32> to vector<8x1xf32>
    %cst_242 = arith.constant 0.000000e+00 : f32
    %742 = vector.broadcast %cst_242 : f32 to vector<8x1xf32>
    %743 = arith.cmpf ogt, %741, %742 : vector<8x1xf32>
    %744 = vector.extract_strided_slice %715 {offsets = [0, 0], sizes = [8, 32], strides = [1, 1]} : vector<16x32xf32> to vector<8x32xf32>
    %cst_243 = arith.constant -1.000000e+07 : f32
    %745 = vector.shape_cast %743 : vector<8x1xi1> to vector<8x1xi1>
    %746 = vector.broadcast %745 : vector<8x1xi1> to vector<8x32xi1>
    %747 = vector.broadcast %cst_243 : f32 to vector<8x32xf32>
    %748 = arith.select %746, %744, %747 : vector<8x32xi1>, vector<8x32xf32>
    %cst_244 = arith.constant dense<0xFF800000> : vector<32xf32>
    %749 = vector.multi_reduction <maximumf>, %748, %cst_244 [0] : vector<8x32xf32> to vector<32xf32>
    %750 = vector.shape_cast %749 : vector<32xf32> to vector<1x32xf32>
    %751 = vector.extract_strided_slice %3 {offsets = [8, 0], sizes = [8, 1], strides = [1, 1]} : vector<16x1xf32> to vector<8x1xf32>
    %cst_245 = arith.constant 0.000000e+00 : f32
    %752 = vector.broadcast %cst_245 : f32 to vector<8x1xf32>
    %753 = arith.cmpf ogt, %751, %752 : vector<8x1xf32>
    %754 = vector.extract_strided_slice %715 {offsets = [8, 0], sizes = [8, 32], strides = [1, 1]} : vector<16x32xf32> to vector<8x32xf32>
    %cst_246 = arith.constant -1.000000e+07 : f32
    %755 = vector.shape_cast %753 : vector<8x1xi1> to vector<8x1xi1>
    %756 = vector.broadcast %755 : vector<8x1xi1> to vector<8x32xi1>
    %757 = vector.broadcast %cst_246 : f32 to vector<8x32xf32>
    %758 = arith.select %756, %754, %757 : vector<8x32xi1>, vector<8x32xf32>
    %cst_247 = arith.constant dense<0xFF800000> : vector<32xf32>
    %759 = vector.multi_reduction <maximumf>, %758, %cst_247 [0] : vector<8x32xf32> to vector<32xf32>
    %760 = vector.shape_cast %759 : vector<32xf32> to vector<1x32xf32>
    %761 = tpu.concatenate %750, %760 in 0 : vector<1x32xf32>, vector<1x32xf32> -> vector<2x32xf32>
    %762 = arith.subf %740, %761 : vector<2x32xf32>
    %763 = arith.mulf %740, %761 : vector<2x32xf32>
    %764 = tpu.concatenate %740, %761, %762, %763 in 1 : vector<2x32xf32>, vector<2x32xf32>, vector<2x32xf32>, vector<2x32xf32> -> vector<2x128xf32>
    %cst_248 = arith.constant dense<0.000000e+00> : vector<2x32xf32>
    %765 = tpu.matmul %764, %716, %cst_248 {dimension_numbers = #tpu.dot_dimension_numbers<[1], [0], [0], [1], [0, 0, 1, 1], [], []>} : vector<2x128xf32>, vector<128x32xf32>, vector<2x32xf32> -> vector<2x32xf32>
    %766 = vector.broadcast %717 : vector<1x32xf32> to vector<2x32xf32>
    %767 = arith.addf %765, %766 : vector<2x32xf32>
    %cst_249 = arith.constant 5.000000e-01 : f32
    %768 = vector.broadcast %cst_249 : f32 to vector<2x32xf32>
    %769 = arith.mulf %768, %767 : vector<2x32xf32>
    %cst_250 = arith.constant 0.797884583 : f32
    %770 = vector.broadcast %cst_250 : f32 to vector<2x32xf32>
    %771 = arith.mulf %767, %770 : vector<2x32xf32>
    %cst_251 = arith.constant 4.471500e-02 : f32
    %772 = vector.broadcast %cst_251 : f32 to vector<2x32xf32>
    %773 = arith.mulf %772, %767 : vector<2x32xf32>
    %774 = arith.mulf %773, %767 : vector<2x32xf32>
    %cst_252 = arith.constant 1.000000e+00 : f32
    %775 = vector.broadcast %cst_252 : f32 to vector<2x32xf32>
    %776 = arith.addf %775, %774 : vector<2x32xf32>
    %777 = arith.mulf %771, %776 : vector<2x32xf32>
    %778 = math.tanh %777 : vector<2x32xf32>
    %cst_253 = arith.constant 1.000000e+00 : f32
    %779 = vector.broadcast %cst_253 : f32 to vector<2x32xf32>
    %780 = arith.addf %779, %778 : vector<2x32xf32>
    %781 = arith.mulf %769, %780 : vector<2x32xf32>
    %cst_254 = arith.constant dense<0.000000e+00> : vector<2x2xf32>
    %782 = tpu.matmul %781, %718, %cst_254 {dimension_numbers = #tpu.dot_dimension_numbers<[1], [0], [0], [1], [0, 0, 1, 1], [], []>} : vector<2x32xf32>, vector<32x2xf32>, vector<2x2xf32> -> vector<2x2xf32>
    %783 = vector.broadcast %719 : vector<1x2xf32> to vector<2x2xf32>
    %784 = arith.addf %782, %783 : vector<2x2xf32>
    %c0_255 = arith.constant 0 : index
    %c0_256 = arith.constant 0 : index
    %785 = vector.load %arg31[%c0_255, %c0_256] : memref<2x2xf32, #tpu.memory_space<vmem>>, vector<2x2xf32>
    tpu.vector_store %arg31[%c0_255, %c0_256], %784 {strides = array<i32>} : memref<2x2xf32, #tpu.memory_space<vmem>>, vector<2x2xf32>,
    return
  }
}

</mosaic_0001>

<llo_original>
// kernel: re2_forward.1
$region0: #{re2_forward.1}
  #allocation0 [shape = 'u32[]', space=smem, size = 0x4, offset = 0x4, fixed_abs, tag = 'smem constant byte address 0x4 - core index']
  #allocation1 [shape = 'u32[144,128]{1,0:T(1,128)}', space=vmem, size = 0x12000, scoped, tag = 'internal scratch']
  %s0 = inlined_call_operand.smem [shape: u32[32], index: -1, kind: input, shape index: {}]
  %s1 = sld [smem:[%s0]]
  %s2 = scalar_lea.smem %s0, 1
  %s3 = sld [smem:[%s2]]
  %s4 = scalar_lea.smem %s0, 2
  %s5 = sld [smem:[%s4]]
  %s6 = scalar_lea.smem %s0, 3
  %s7 = sld [smem:[%s6]]
  %s8 = scalar_lea.smem %s0, 4
  %s9 = sld [smem:[%s8]]
  %s10 = scalar_lea.smem %s0, 5
  %s11 = sld [smem:[%s10]]
  %s12 = scalar_lea.smem %s0, 6
  %s13 = sld [smem:[%s12]]
  %s14 = scalar_lea.smem %s0, 7
  %s15 = sld [smem:[%s14]]
  %s16 = scalar_lea.smem %s0, 8
  %s17 = sld [smem:[%s16]]
  %s18 = scalar_lea.smem %s0, 9
  %s19 = sld [smem:[%s18]]
  %s20 = scalar_lea.smem %s0, 10
  %s21 = sld [smem:[%s20]]
  %s22 = scalar_lea.smem %s0, 11
  %s23 = sld [smem:[%s22]]
  %s24 = scalar_lea.smem %s0, 12
  %s25 = sld [smem:[%s24]]
  %s26 = scalar_lea.smem %s0, 13
  %s27 = sld [smem:[%s26]]
  %s28 = scalar_lea.smem %s0, 14
  %s29 = sld [smem:[%s28]]
  %s30 = scalar_lea.smem %s0, 15
  %s31 = sld [smem:[%s30]]
  %s32 = scalar_lea.smem %s0, 16
  %s33 = sld [smem:[%s32]]
  %s34 = scalar_lea.smem %s0, 17
  %s35 = sld [smem:[%s34]]
  %s36 = scalar_lea.smem %s0, 18
  %s37 = sld [smem:[%s36]]
  %s38 = scalar_lea.smem %s0, 19
  %s39 = sld [smem:[%s38]]
  %s40 = scalar_lea.smem %s0, 20
  %s41 = sld [smem:[%s40]]
  %s42 = scalar_lea.smem %s0, 21
  %s43 = sld [smem:[%s42]]
  %s44 = scalar_lea.smem %s0, 22
  %s45 = sld [smem:[%s44]]
  %s46 = scalar_lea.smem %s0, 23
  %s47 = sld [smem:[%s46]]
  %s48 = scalar_lea.smem %s0, 24
  %s49 = sld [smem:[%s48]]
  %s50 = scalar_lea.smem %s0, 25
  %s51 = sld [smem:[%s50]]
  %s52 = scalar_lea.smem %s0, 26
  %s53 = sld [smem:[%s52]]
  %s54 = scalar_lea.smem %s0, 27
  %s55 = sld [smem:[%s54]]
  %s56 = scalar_lea.smem %s0, 28
  %s57 = sld [smem:[%s56]]
  %s58 = scalar_lea.smem %s0, 29
  %s59 = sld [smem:[%s58]]
  %s60 = scalar_lea.smem %s0, 30
  %s61 = sld [smem:[%s60]]
  %s62 = scalar_lea.smem %s0, 31
  %s63 = sld [smem:[%s62]]
  %s64 = sld [smem:[#allocation0]]
  $region134: #{re2_forward.1} parent=0
    _
  %s66 = ssub.s32 1, %s64
  %s67 = scalar_select 0, %s66, %s64
  $region1: #{re2_forward.1} parent=0
    #allocation2 [shape = 'u8[1024]{0}', space=vmem, size = 0x400, scoped, tag = 'output window, operand 0, single buffered']
    #allocation3 [shape = 's32[1]{0}', space=sflag, size = 0x4, scoped, tag = 'scoped memory for re2_forward.1']
    %68 = vsyncpa [#allocation3], 0
    // Predicated region
    $region2: #{re2_forward.1} parent=1 // pred_check
      _
    $region3: #{re2_forward.1} parent=1 // pred_check_branch
      %70 = sbr.rel (0) target = $region5
    $region4: #{re2_forward.1} parent=1 // pred_region
      _
    $region5: #{re2_forward.1} parent=1 // pred_fallthru
      _
    // Predicated region
    $region6: #{re2_forward.1} parent=1 // pred_check
      _
    $region7: #{re2_forward.1} parent=1 // pred_check_branch
      %72 = sbr.rel (0) target = $region9
    $region8: #{re2_forward.1} parent=1 // pred_region
      _
    $region9: #{re2_forward.1} parent=1 // pred_fallthru
      _
    // Predicated region
    $region10: #{re2_forward.1} parent=1 // pred_check
      _
    $region11: #{re2_forward.1} parent=1 // pred_check_branch
      %74 = sbr.rel (0) target = $region13
    $region12: #{re2_forward.1} parent=1 // pred_region
      _
    $region13: #{re2_forward.1} parent=1 // pred_fallthru
      _
    // Predicated region
    $region14: #{re2_forward.1} parent=1 // pred_check
      _
    $region15: #{re2_forward.1} parent=1 // pred_check_branch
      %76 = sbr.rel (0) target = $region17
    $region16: #{re2_forward.1} parent=1 // pred_region
      _
    $region17: #{re2_forward.1} parent=1 // pred_fallthru
      _
    // Predicated region
    $region18: #{re2_forward.1} parent=1 // pred_check
      _
    $region19: #{re2_forward.1} parent=1 // pred_check_branch
      %78 = sbr.rel (0) target = $region21
    $region20: #{re2_forward.1} parent=1 // pred_region
      _
    $region21: #{re2_forward.1} parent=1 // pred_fallthru
      _
    // Predicated region
    $region22: #{re2_forward.1} parent=1 // pred_check
      _
    $region23: #{re2_forward.1} parent=1 // pred_check_branch
      %80 = sbr.rel (0) target = $region25
    $region24: #{re2_forward.1} parent=1 // pred_region
      _
    $region25: #{re2_forward.1} parent=1 // pred_fallthru
      _
    // Predicated region
    $region26: #{re2_forward.1} parent=1 // pred_check
      _
    $region27: #{re2_forward.1} parent=1 // pred_check_branch
      %82 = sbr.rel (0) target = $region29
    $region28: #{re2_forward.1} parent=1 // pred_region
      _
    $region29: #{re2_forward.1} parent=1 // pred_fallthru
      _
    // Predicated region
    $region30: #{re2_forward.1} parent=1 // pred_check
      _
    $region31: #{re2_forward.1} parent=1 // pred_check_branch
      %84 = sbr.rel (0) target = $region33
    $region32: #{re2_forward.1} parent=1 // pred_region
      _
    $region33: #{re2_forward.1} parent=1 // pred_fallthru
      _
    // Predicated region
    $region34: #{re2_forward.1} parent=1 // pred_check
      _
    $region35: #{re2_forward.1} parent=1 // pred_check_branch
      %86 = sbr.rel (0) target = $region37
    $region36: #{re2_forward.1} parent=1 // pred_region
      _
    $region37: #{re2_forward.1} parent=1 // pred_fallthru
      _
    // Predicated region
    $region38: #{re2_forward.1} parent=1 // pred_check
      _
    $region39: #{re2_forward.1} parent=1 // pred_check_branch
      %88 = sbr.rel (0) target = $region41
    $region40: #{re2_forward.1} parent=1 // pred_region
      _
    $region41: #{re2_forward.1} parent=1 // pred_fallthru
      _
    // Predicated region
    $region42: #{re2_forward.1} parent=1 // pred_check
      _
    $region43: #{re2_forward.1} parent=1 // pred_check_branch
      %90 = sbr.rel (0) target = $region45
    $region44: #{re2_forward.1} parent=1 // pred_region
      _
    $region45: #{re2_forward.1} parent=1 // pred_fallthru
      _
    // Predicated region
    $region46: #{re2_forward.1} parent=1 // pred_check
      _
    $region47: #{re2_forward.1} parent=1 // pred_check_branch
      %92 = sbr.rel (0) target = $region49
    $region48: #{re2_forward.1} parent=1 // pred_region
      _
    $region49: #{re2_forward.1} parent=1 // pred_fallthru
      _
    // Predicated region
    $region50: #{re2_forward.1} parent=1 // pred_check
      _
    $region51: #{re2_forward.1} parent=1 // pred_check_branch
      %94 = sbr.rel (0) target = $region53
    $region52: #{re2_forward.1} parent=1 // pred_region
      _
    $region53: #{re2_forward.1} parent=1 // pred_fallthru
      _
    // Predicated region
    $region54: #{re2_forward.1} parent=1 // pred_check
      _
    $region55: #{re2_forward.1} parent=1 // pred_check_branch
      %96 = sbr.rel (0) target = $region57
    $region56: #{re2_forward.1} parent=1 // pred_region
      _
    $region57: #{re2_forward.1} parent=1 // pred_fallthru
      _
    // Predicated region
    $region58: #{re2_forward.1} parent=1 // pred_check
      _
    $region59: #{re2_forward.1} parent=1 // pred_check_branch
      %98 = sbr.rel (0) target = $region61
    $region60: #{re2_forward.1} parent=1 // pred_region
      _
    $region61: #{re2_forward.1} parent=1 // pred_fallthru
      _
    // Predicated region
    $region62: #{re2_forward.1} parent=1 // pred_check
      _
    $region63: #{re2_forward.1} parent=1 // pred_check_branch
      %100 = sbr.rel (0) target = $region65
    $region64: #{re2_forward.1} parent=1 // pred_region
      _
    $region65: #{re2_forward.1} parent=1 // pred_fallthru
      _
    // Predicated region
    $region66: #{re2_forward.1} parent=1 // pred_check
      _
    $region67: #{re2_forward.1} parent=1 // pred_check_branch
      %102 = sbr.rel (0) target = $region69
    $region68: #{re2_forward.1} parent=1 // pred_region
      _
    $region69: #{re2_forward.1} parent=1 // pred_fallthru
      _
    // Predicated region
    $region70: #{re2_forward.1} parent=1 // pred_check
      _
    $region71: #{re2_forward.1} parent=1 // pred_check_branch
      %104 = sbr.rel (0) target = $region73
    $region72: #{re2_forward.1} parent=1 // pred_region
      _
    $region73: #{re2_forward.1} parent=1 // pred_fallthru
      _
    // Predicated region
    $region74: #{re2_forward.1} parent=1 // pred_check
      _
    $region75: #{re2_forward.1} parent=1 // pred_check_branch
      %106 = sbr.rel (0) target = $region77
    $region76: #{re2_forward.1} parent=1 // pred_region
      _
    $region77: #{re2_forward.1} parent=1 // pred_fallthru
      _
    // Predicated region
    $region78: #{re2_forward.1} parent=1 // pred_check
      _
    $region79: #{re2_forward.1} parent=1 // pred_check_branch
      %108 = sbr.rel (0) target = $region81
    $region80: #{re2_forward.1} parent=1 // pred_region
      _
    $region81: #{re2_forward.1} parent=1 // pred_fallthru
      _
    // Predicated region
    $region82: #{re2_forward.1} parent=1 // pred_check
      _
    $region83: #{re2_forward.1} parent=1 // pred_check_branch
      %110 = sbr.rel (0) target = $region85
    $region84: #{re2_forward.1} parent=1 // pred_region
      _
    $region85: #{re2_forward.1} parent=1 // pred_fallthru
      _
    // Predicated region
    $region86: #{re2_forward.1} parent=1 // pred_check
      _
    $region87: #{re2_forward.1} parent=1 // pred_check_branch
      %112 = sbr.rel (0) target = $region89
    $region88: #{re2_forward.1} parent=1 // pred_region
      _
    $region89: #{re2_forward.1} parent=1 // pred_fallthru
      _
    // Predicated region
    $region90: #{re2_forward.1} parent=1 // pred_check
      _
    $region91: #{re2_forward.1} parent=1 // pred_check_branch
      %114 = sbr.rel (0) target = $region93
    $region92: #{re2_forward.1} parent=1 // pred_region
      _
    $region93: #{re2_forward.1} parent=1 // pred_fallthru
      _
    // Predicated region
    $region94: #{re2_forward.1} parent=1 // pred_check
      _
    $region95: #{re2_forward.1} parent=1 // pred_check_branch
      %116 = sbr.rel (0) target = $region97
    $region96: #{re2_forward.1} parent=1 // pred_region
      _
    $region97: #{re2_forward.1} parent=1 // pred_fallthru
      _
    // Predicated region
    $region98: #{re2_forward.1} parent=1 // pred_check
      _
    $region99: #{re2_forward.1} parent=1 // pred_check_branch
      %118 = sbr.rel (0) target = $region101
    $region100: #{re2_forward.1} parent=1 // pred_region
      _
    $region101: #{re2_forward.1} parent=1 // pred_fallthru
      _
    // Predicated region
    $region102: #{re2_forward.1} parent=1 // pred_check
      _
    $region103: #{re2_forward.1} parent=1 // pred_check_branch
      %120 = sbr.rel (0) target = $region105
    $region104: #{re2_forward.1} parent=1 // pred_region
      _
    $region105: #{re2_forward.1} parent=1 // pred_fallthru
      _
    // Predicated region
    $region106: #{re2_forward.1} parent=1 // pred_check
      _
    $region107: #{re2_forward.1} parent=1 // pred_check_branch
      %122 = sbr.rel (0) target = $region109
    $region108: #{re2_forward.1} parent=1 // pred_region
      _
    $region109: #{re2_forward.1} parent=1 // pred_fallthru
      _
    // Predicated region
    $region110: #{re2_forward.1} parent=1 // pred_check
      _
    $region111: #{re2_forward.1} parent=1 // pred_check_branch
      %124 = sbr.rel (0) target = $region113
    $region112: #{re2_forward.1} parent=1 // pred_region
      _
    $region113: #{re2_forward.1} parent=1 // pred_fallthru
      _
    // Predicated region
    $region114: #{re2_forward.1} parent=1 // pred_check
      _
    $region115: #{re2_forward.1} parent=1 // pred_check_branch
      %126 = sbr.rel (0) target = $region117
    $region116: #{re2_forward.1} parent=1 // pred_region
      _
    $region117: #{re2_forward.1} parent=1 // pred_fallthru
      _
    // Predicated region
    $region118: #{re2_forward.1} parent=1 // pred_check
      _
    $region119: #{re2_forward.1} parent=1 // pred_check_branch
      %128 = sbr.rel (0) target = $region121
    $region120: #{re2_forward.1} parent=1 // pred_region
      _
    $region121: #{re2_forward.1} parent=1 // pred_fallthru
      _
    // Predicated region
    $region122: #{re2_forward.1} parent=1 // pred_check
      _
    $region123: #{re2_forward.1} parent=1 // pred_check_branch
      %130 = sbr.rel (0) target = $region125
    $region124: #{re2_forward.1} parent=1 // pred_region
      _
    $region125: #{re2_forward.1} parent=1 // pred_fallthru
      _
    %v131 = vld [vmem:[%s1] sm:$0xff]
    %v132 = vld [vmem:[%s1 + $0x8] sm:$0xff]
    %v133 = vld [vmem:[%s3] sm:$0xff]
    %v134 = vld [vmem:[%s3 + $0x8] sm:$0xff]
    %v135 = vld [vmem:[%s5] sm:$0xff]
    %v136 = vld [vmem:[%s5 + $0x8] sm:$0xff]
    %v137 = vld [vmem:[%s7] sm:$0xff]
    %v138 = vld [vmem:[%s7 + $0x8] sm:$0xff]
    %v139 = vld [vmem:[%s11] sm:$0x3]
    %v140 = vld [vmem:[%s13] sm:$0xff]
    %v141 = vld [vmem:[%s13 + $0x8] sm:$0xff]
    %v142 = vld [vmem:[%s13 + $0x10] sm:$0xff]
    %v143 = vld [vmem:[%s13 + $0x18] sm:$0xff]
    %v144 = vld [vmem:[%s13 + $0x20] sm:$0xff]
    %v145 = vld [vmem:[%s13 + $0x28] sm:$0xff]
    %v146 = vld [vmem:[%s13 + $0x30] sm:$0x3]
    %v147 = vlaneseq
    %v148 = vand.u32 %v147, 127
    %149 = vset.pattern.permute.xlu0 0
    %150 = vperm.xlu0 %149, %v131
    %v151 = vpop.permute.xlu0 %150
    %152 = vset.pattern.permute.xlu0 0
    %153 = vperm.xlu0 %152, %v132
    %v154 = vpop.permute.xlu0 %153
    %vm155 = vcmp.eq.s32.totalorder %v148, %v151
    %vm156 = vcmp.eq.s32.totalorder %v148, %v154
    %v157 = vsel %vm155, 1, 0
    %v158 = vsel %vm156, 1, 0
    %v159 = vcvt.s32.f32 %v157
    %v160 = vcvt.s32.f32 %v158
    %vm161 = vcmask 408576
    %v163 = vsel %vm161, %v159, 0
    %v166 = vsel %vm161, %v160, 0
    %vm168 = vcmask 1041408
    %v170 = vsel %vm168, %v146, 0
    %172 = vmatprep.subr.mxu0 0.0
    %173 = vmatpush1.msra.mxu0 0.0
    %174 = vmatprep.subr.mxu0 0.0
    %175 = vmatpush1.msra.mxu0 0.0
    %176 = vmatprep.subr.mxu0 0.0
    %177 = vmatpush1.msra.mxu0 0.0
    %178 = vmatprep.subr.mxu0 0.0
    %179 = vmatpush1.msra.mxu0 0.0
    %180 = vmatprep.subr.mxu0 0.0
    %181 = vmatpush1.msra.mxu0 0.0
    %182 = vmatprep.subr.mxu0 0.0
    %183 = vmatpush1.msra.mxu0 0.0
    %184 = vmatprep.subr.mxu0 0.0
    %185 = vmatpush1.msra.mxu0 0.0
    %186 = vmatprep.subr.mxu0 0.0
    %187 = vmatpush1.msra.mxu0 0.0
    %188 = vmatprep.subr.mxu0 0.0
    %189 = vmatpush1.msra.mxu0 0.0
    %190 = vmatprep.subr.mxu0 0.0
    %191 = vmatpush1.msra.mxu0 %v170
    %192 = vmatprep.subr.mxu0 0.0
    %193 = vmatpush1.msra.mxu0 %v145
    %194 = vmatprep.subr.mxu0 0.0
    %195 = vmatpush1.msra.mxu0 %v144
    %196 = vmatprep.subr.mxu0 0.0
    %197 = vmatpush1.msra.mxu0 %v143
    %198 = vmatprep.subr.mxu0 0.0
    %199 = vmatpush1.msra.mxu0 %v142
    %200 = vmatprep.subr.mxu0 0.0
    %201 = vmatpush1.msra.mxu0 %v141
    %202 = vmatprep.subr.mxu0 0.0
    %203 = vmatpush1.msra.mxu0 %v140
    %204 = vmatprep.subr.mxu0 0.0
    %205 = vmatpush2.msra.mxu0 0.0
    %206 = vmatprep.subr.mxu0 0.0
    %207 = vmatpush2.msra.mxu0 0.0
    %208 = vmatprep.subr.mxu0 0.0
    %209 = vmatpush2.msra.mxu0 0.0
    %210 = vmatprep.subr.mxu0 0.0
    %211 = vmatpush2.msra.mxu0 0.0
    %212 = vmatprep.subr.mxu0 0.0
    %213 = vmatpush2.msra.mxu0 0.0
    %214 = vmatprep.subr.mxu0 0.0
    %215 = vmatpush2.msra.mxu0 0.0
    %216 = vmatprep.subr.mxu0 0.0
    %217 = vmatpush2.msra.mxu0 0.0
    %218 = vmatprep.subr.mxu0 0.0
    %219 = vmatpush2.msra.mxu0 0.0
    %220 = vmatprep.subr.mxu0 0.0
    %221 = vmatpush2.msra.mxu0 0.0
    %222 = vmatprep.subr.mxu0 0.0
    %223 = vmatpush2.msra.mxu0 0.0
    %224 = vmatprep.subr.mxu0 0.0
    %225 = vmatpush2.msra.mxu0 0.0
    %226 = vmatprep.subr.mxu0 0.0
    %227 = vmatpush2.msra.mxu0 0.0
    %228 = vmatprep.subr.mxu0 0.0
    %229 = vmatpush2.msra.mxu0 0.0
    %230 = vmatprep.subr.mxu0 0.0
    %231 = vmatpush2.msra.mxu0 0.0
    %232 = vmatprep.subr.mxu0 0.0
    %233 = vmatpush2.msra.mxu0 0.0
    %234 = vmatprep.subr.mxu0 0.0
    %235 = vmatpush2.msra.mxu0 0.0
    %236 = vmatprep.mubr.f32.mxu0 0.0
    %237 = vmatmul.mubr.f32.gmra.mxu0 %v163
    %v238 = vpop.f32.mrf.mxu0
    %v239 = vadd.f32 0.0, %v238
    %v240 = vpop.f32.mrf.mxu0
    %241 = vmatprep.mubr.f32.mxu0 0.0
    %242 = vmatmul.mubr.f32.gmra.mxu0 %v166
    %v243 = vpop.f32.mrf.mxu0
    %v244 = vadd.f32 0.0, %v243
    %v245 = vpop.f32.mrf.mxu0
    %246 = vdwg.mxu0
    %247 = vset.pattern.permute.xlu0 0
    %248 = vperm.xlu0 %247, %v133
    %v249 = vpop.permute.xlu0 %248
    %250 = vset.pattern.permute.xlu0 0
    %251 = vperm.xlu0 %250, %v134
    %v252 = vpop.permute.xlu0 %251
    %vm253 = vcmp.eq.s32.totalorder %v148, %v249
    %vm254 = vcmp.eq.s32.totalorder %v148, %v252
    %v255 = vsel %vm253, 1, 0
    %v256 = vsel %vm254, 1, 0
    %v257 = vcvt.s32.f32 %v255
    %v258 = vcvt.s32.f32 %v256
    %v260 = vsel %vm161, %v257, 0
    %v263 = vsel %vm161, %v258, 0
    %265 = vmatprep.subr.mxu0 0.0
    %266 = vmatpush1.msra.mxu0 0.0
    %267 = vmatprep.subr.mxu0 0.0
    %268 = vmatpush1.msra.mxu0 0.0
    %269 = vmatprep.subr.mxu0 0.0
    %270 = vmatpush1.msra.mxu0 0.0
    %271 = vmatprep.subr.mxu0 0.0
    %272 = vmatpush1.msra.mxu0 0.0
    %273 = vmatprep.subr.mxu0 0.0
    %274 = vmatpush1.msra.mxu0 0.0
    %275 = vmatprep.subr.mxu0 0.0
    %276 = vmatpush1.msra.mxu0 0.0
    %277 = vmatprep.subr.mxu0 0.0
    %278 = vmatpush1.msra.mxu0 0.0
    %279 = vmatprep.subr.mxu0 0.0
    %280 = vmatpush1.msra.mxu0 0.0
    %281 = vmatprep.subr.mxu0 0.0
    %282 = vmatpush1.msra.mxu0 0.0
    %283 = vmatprep.subr.mxu0 0.0
    %284 = vmatpush1.msra.mxu0 %v170
    %285 = vmatprep.subr.mxu0 0.0
    %286 = vmatpush1.msra.mxu0 %v145
    %287 = vmatprep.subr.mxu0 0.0
    %288 = vmatpush1.msra.mxu0 %v144
    %289 = vmatprep.subr.mxu0 0.0
    %290 = vmatpush1.msra.mxu0 %v143
    %291 = vmatprep.subr.mxu0 0.0
    %292 = vmatpush1.msra.mxu0 %v142
    %293 = vmatprep.subr.mxu0 0.0
    %294 = vmatpush1.msra.mxu0 %v141
    %295 = vmatprep.subr.mxu0 0.0
    %296 = vmatpush1.msra.mxu0 %v140
    %297 = vmatprep.subr.mxu0 0.0
    %298 = vmatpush2.msra.mxu0 0.0
    %299 = vmatprep.subr.mxu0 0.0
    %300 = vmatpush2.msra.mxu0 0.0
    %301 = vmatprep.subr.mxu0 0.0
    %302 = vmatpush2.msra.mxu0 0.0
    %303 = vmatprep.subr.mxu0 0.0
    %304 = vmatpush2.msra.mxu0 0.0
    %305 = vmatprep.subr.mxu0 0.0
    %306 = vmatpush2.msra.mxu0 0.0
    %307 = vmatprep.subr.mxu0 0.0
    %308 = vmatpush2.msra.mxu0 0.0
    %309 = vmatprep.subr.mxu0 0.0
    %310 = vmatpush2.msra.mxu0 0.0
    %311 = vmatprep.subr.mxu0 0.0
    %312 = vmatpush2.msra.mxu0 0.0
    %313 = vmatprep.subr.mxu0 0.0
    %314 = vmatpush2.msra.mxu0 0.0
    %315 = vmatprep.subr.mxu0 0.0
    %316 = vmatpush2.msra.mxu0 0.0
    %317 = vmatprep.subr.mxu0 0.0
    %318 = vmatpush2.msra.mxu0 0.0
    %319 = vmatprep.subr.mxu0 0.0
    %320 = vmatpush2.msra.mxu0 0.0
    %321 = vmatprep.subr.mxu0 0.0
    %322 = vmatpush2.msra.mxu0 0.0
    %323 = vmatprep.subr.mxu0 0.0
    %324 = vmatpush2.msra.mxu0 0.0
    %325 = vmatprep.subr.mxu0 0.0
    %326 = vmatpush2.msra.mxu0 0.0
    %327 = vmatprep.subr.mxu0 0.0
    %328 = vmatpush2.msra.mxu0 0.0
    %329 = vmatprep.mubr.f32.mxu0 0.0
    %330 = vmatmul.mubr.f32.gmra.mxu0 %v260
    %v331 = vpop.f32.mrf.mxu0
    %v332 = vadd.f32 0.0, %v331
    %v333 = vpop.f32.mrf.mxu0
    %334 = vmatprep.mubr.f32.mxu0 0.0
    %335 = vmatmul.mubr.f32.gmra.mxu0 %v263
    %v336 = vpop.f32.mrf.mxu0
    %v337 = vadd.f32 0.0, %v336
    %v338 = vpop.f32.mrf.mxu0
    %339 = vdwg.mxu0
    %v340 = vld [vmem:[%s15] sm:$0xff]
    %v341 = vld [vmem:[%s15 + $0x8] sm:$0xff]
    %v342 = vld [vmem:[%s15 + $0x10] sm:$0xff]
    %v343 = vld [vmem:[%s15 + $0x18] sm:$0xff]
    %v344 = vld [vmem:[%s15 + $0x20] sm:$0xff]
    %v345 = vld [vmem:[%s15 + $0x28] sm:$0xff]
    %v346 = vld [vmem:[%s15 + $0x30] sm:$0xff]
    %v347 = vld [vmem:[%s15 + $0x38] sm:$0xff]
    %v348 = vld [vmem:[%s15 + $0x40] sm:$0xff]
    %v349 = vld [vmem:[%s15 + $0x48] sm:$0xff]
    %v350 = vld [vmem:[%s15 + $0x50] sm:$0xff]
    %v351 = vld [vmem:[%s15 + $0x58] sm:$0xff]
    %v352 = vld [vmem:[%s17] sm:$0x1]
    %v353 = vld [vmem:[%s19] sm:$0xff]
    %v354 = vld [vmem:[%s19 + $0x8] sm:$0xff]
    %v355 = vld [vmem:[%s19 + $0x10] sm:$0xff]
    %v356 = vld [vmem:[%s19 + $0x18] sm:$0xff]
    %v357 = vld [vmem:[%s19 + $0x20] sm:$0xff]
    %v358 = vld [vmem:[%s19 + $0x28] sm:$0xff]
    %v359 = vld [vmem:[%s19 + $0x30] sm:$0xff]
    %v360 = vld [vmem:[%s19 + $0x38] sm:$0xff]
    %v361 = vld [vmem:[%s19 + $0x40] sm:$0xff]
    %v362 = vld [vmem:[%s19 + $0x48] sm:$0xff]
    %v363 = vld [vmem:[%s19 + $0x50] sm:$0xff]
    %v364 = vld [vmem:[%s19 + $0x58] sm:$0xff]
    %v365 = vld [vmem:[%s21] sm:$0x1]
    %v366 = vld [vmem:[%s23] sm:$0xff]
    %v367 = vld [vmem:[%s23 + $0x8] sm:$0xff]
    %v368 = vld [vmem:[%s23 + $0x10] sm:$0xff]
    %v369 = vld [vmem:[%s23 + $0x18] sm:$0xff]
    %v370 = vld [vmem:[%s23 + $0x20] sm:$0xff]
    %v371 = vld [vmem:[%s23 + $0x28] sm:$0xff]
    %v372 = vld [vmem:[%s23 + $0x30] sm:$0xff]
    %v373 = vld [vmem:[%s23 + $0x38] sm:$0xff]
    %v374 = vld [vmem:[%s25] sm:$0x1]
    %v375 = vld [vmem:[%s27] sm:$0xff]
    %v376 = vld [vmem:[%s27 + $0x8] sm:$0xff]
    %v377 = vld [vmem:[%s27 + $0x10] sm:$0xff]
    %v378 = vld [vmem:[%s27 + $0x18] sm:$0xff]
    %v379 = vld [vmem:[%s27 + $0x20] sm:$0xff]
    %v380 = vld [vmem:[%s27 + $0x28] sm:$0xff]
    %v381 = vld [vmem:[%s27 + $0x30] sm:$0xff]
    %v382 = vld [vmem:[%s27 + $0x38] sm:$0xff]
    %v383 = vld [vmem:[%s27 + $0x40] sm:$0xff]
    %v384 = vld [vmem:[%s27 + $0x48] sm:$0xff]
    %v385 = vld [vmem:[%s27 + $0x50] sm:$0xff]
    %v386 = vld [vmem:[%s27 + $0x58] sm:$0xff]
    %v387 = vld [vmem:[%s27 + $0x60] sm:$0xff]
    %v388 = vld [vmem:[%s27 + $0x68] sm:$0xff]
    %v389 = vld [vmem:[%s27 + $0x70] sm:$0xff]
    %v390 = vld [vmem:[%s27 + $0x78] sm:$0xff]
    %v391 = vld [vmem:[%s29] sm:$0x1]
    %v392 = vld [vmem:[%s31] sm:$0xff]
    %v393 = vld [vmem:[%s31 + $0x8] sm:$0xff]
    %v394 = vld [vmem:[%s31 + $0x10] sm:$0xff]
    %v395 = vld [vmem:[%s31 + $0x18] sm:$0xff]
    %v396 = vld [vmem:[%s31 + $0x20] sm:$0xff]
    %v397 = vld [vmem:[%s31 + $0x28] sm:$0xff]
    %v398 = vld [vmem:[%s31 + $0x30] sm:$0xff]
    %v399 = vld [vmem:[%s31 + $0x38] sm:$0xff]
    %v400 = vld [vmem:[%s31 + $0x40] sm:$0xff]
    %v401 = vld [vmem:[%s31 + $0x48] sm:$0xff]
    %v402 = vld [vmem:[%s31 + $0x50] sm:$0xff]
    %v403 = vld [vmem:[%s31 + $0x58] sm:$0xff]
    %v404 = vld [vmem:[%s33] sm:$0x1]
    %406 = vset.pattern.permute.xlu0 0
    %407 = vperm.xlu0 %406, %v135
    %v408 = vpop.permute.xlu0 %407
    %411 = vset.pattern.permute.xlu0 0
    %412 = vperm.xlu0 %411, %v136
    %v413 = vpop.permute.xlu0 %412
    %v415 = vmul.f32 %v239, %v408
    %v416 = vmul.f32 %v244, %v413
    %v418 = vrot.slane %v415, 7
    %vm420 = vcmask 1040384
    %v421 = vsel %vm420, 0.0, %v418
    %v422 = vsel %vm420, %v418, 0.0
    %vm425 = vcmask 1046528
    %v426 = vrot.slane %v421, 1
    %v427 = vrot.slane %v422, 1
    %v428 = vsel %vm425, %v426, %v427
    %429 = vrot.lane.b32.xlu0 %v428, 32
    %v430 = vpop.permute.xlu0 %429
    %vm432 = vcmask 1045504
    %v433 = vrot.slane %v421, 2
    %v434 = vrot.slane %v422, 2
    %v435 = vsel %vm432, %v433, %v434
    %436 = vrot.lane.b32.xlu0 %v435, 64
    %v437 = vpop.permute.xlu0 %436
    %vm439 = vcmask 261120
    %v440 = vsel %vm439, %v421, %v430
    %vm441 = vcmask 523264
    %v442 = vsel %vm441, %v440, %v437
    %v444 = vrot.slane %v416, 7
    %v446 = vsel %vm420, 0.0, %v444
    %v447 = vsel %vm420, %v444, 0.0
    %v450 = vrot.slane %v446, 1
    %v451 = vrot.slane %v447, 1
    %v452 = vsel %vm425, %v450, %v451
    %453 = vrot.lane.b32.xlu0 %v452, 32
    %v454 = vpop.permute.xlu0 %453
    %v456 = vrot.slane %v446, 2
    %v457 = vrot.slane %v447, 2
    %v458 = vsel %vm432, %v456, %v457
    %459 = vrot.lane.b32.xlu0 %v458, 64
    %v460 = vpop.permute.xlu0 %459
    %v462 = vsel %vm439, %v446, %v454
    %v463 = vsel %vm441, %v462, %v460
    %v465 = vlaneseq
    %v466 = vshrl.u32 %v465, 7
    %v467 = vsub.s32 0, %v466
    %v468 = vrot.slane %v352, %v467
    %vm470 = vcmask 785408
    %v472 = vsel %vm470, %v442, 0
    %v475 = vsel %vm470, %v463, 0
    %477 = vmatprep.subr.mxu0 0.0
    %478 = vmatpush1.msra.mxu0 0.0
    %479 = vmatprep.subr.mxu0 0.0
    %480 = vmatpush1.msra.mxu0 0.0
    %481 = vmatprep.subr.mxu0 0.0
    %482 = vmatpush1.msra.mxu0 0.0
    %483 = vmatprep.subr.mxu0 0.0
    %484 = vmatpush1.msra.mxu0 0.0
    %485 = vmatprep.subr.mxu0 0.0
    %486 = vmatpush1.msra.mxu0 %v351
    %487 = vmatprep.subr.mxu0 0.0
    %488 = vmatpush1.msra.mxu0 %v350
    %489 = vmatprep.subr.mxu0 0.0
    %490 = vmatpush1.msra.mxu0 %v349
    %491 = vmatprep.subr.mxu0 0.0
    %492 = vmatpush1.msra.mxu0 %v348
    %493 = vmatprep.subr.mxu0 0.0
    %494 = vmatpush1.msra.mxu0 %v347
    %495 = vmatprep.subr.mxu0 0.0
    %496 = vmatpush1.msra.mxu0 %v346
    %497 = vmatprep.subr.mxu0 0.0
    %498 = vmatpush1.msra.mxu0 %v345
    %499 = vmatprep.subr.mxu0 0.0
    %500 = vmatpush1.msra.mxu0 %v344
    %501 = vmatprep.subr.mxu0 0.0
    %502 = vmatpush1.msra.mxu0 %v343
    %503 = vmatprep.subr.mxu0 0.0
    %504 = vmatpush1.msra.mxu0 %v342
    %505 = vmatprep.subr.mxu0 0.0
    %506 = vmatpush1.msra.mxu0 %v341
    %507 = vmatprep.subr.mxu0 0.0
    %508 = vmatpush1.msra.mxu0 %v340
    %509 = vmatprep.subr.mxu0 0.0
    %510 = vmatpush2.msra.mxu0 0.0
    %511 = vmatprep.subr.mxu0 0.0
    %512 = vmatpush2.msra.mxu0 0.0
    %513 = vmatprep.subr.mxu0 0.0
    %514 = vmatpush2.msra.mxu0 0.0
    %515 = vmatprep.subr.mxu0 0.0
    %516 = vmatpush2.msra.mxu0 0.0
    %517 = vmatprep.subr.mxu0 0.0
    %518 = vmatpush2.msra.mxu0 0.0
    %519 = vmatprep.subr.mxu0 0.0
    %520 = vmatpush2.msra.mxu0 0.0
    %521 = vmatprep.subr.mxu0 0.0
    %522 = vmatpush2.msra.mxu0 0.0
    %523 = vmatprep.subr.mxu0 0.0
    %524 = vmatpush2.msra.mxu0 0.0
    %525 = vmatprep.subr.mxu0 0.0
    %526 = vmatpush2.msra.mxu0 0.0
    %527 = vmatprep.subr.mxu0 0.0
    %528 = vmatpush2.msra.mxu0 0.0
    %529 = vmatprep.subr.mxu0 0.0
    %530 = vmatpush2.msra.mxu0 0.0
    %531 = vmatprep.subr.mxu0 0.0
    %532 = vmatpush2.msra.mxu0 0.0
    %533 = vmatprep.subr.mxu0 0.0
    %534 = vmatpush2.msra.mxu0 0.0
    %535 = vmatprep.subr.mxu0 0.0
    %536 = vmatpush2.msra.mxu0 0.0
    %537 = vmatprep.subr.mxu0 0.0
    %538 = vmatpush2.msra.mxu0 0.0
    %539 = vmatprep.subr.mxu0 0.0
    %540 = vmatpush2.msra.mxu0 0.0
    %541 = vmatprep.mubr.f32.mxu0 0.0
    %542 = vmatmul.mubr.f32.gmra.mxu0 %v472
    %v543 = vpop.f32.mrf.mxu0
    %v544 = vadd.f32 %v468, %v543
    %v545 = vpop.f32.mrf.mxu0
    %546 = vmatprep.mubr.f32.mxu0 0.0
    %547 = vmatmul.mubr.f32.gmra.mxu0 %v475
    %v548 = vpop.f32.mrf.mxu0
    %v549 = vadd.f32 %v468, %v548
    %v550 = vpop.f32.mrf.mxu0
    %551 = vdwg.mxu0
    %v552 = vmul.f32 %v544, 0.5
    %v553 = vmul.f32 %v549, 0.5
    %v554 = vmul.f32 %v544, 0.7978846
    %v555 = vmul.f32 %v549, 0.7978846
    %v556 = vmul.f32 %v544, 0.044715
    %v557 = vmul.f32 %v549, 0.044715
    %v558 = vmul.f32 %v556, %v544
    %v559 = vmul.f32 %v557, %v549
    %v560 = vadd.f32 %v558, 1.0
    %v561 = vadd.f32 %v559, 1.0
    %v562 = vmul.f32 %v554, %v560
    %v563 = vmul.f32 %v555, %v561
    %v564 = vtanh.pop %v562
    %v565 = vtanh.pop %v563
    %v566 = vadd.f32 %v564, 1.0
    %v567 = vadd.f32 %v565, 1.0
    %v568 = vmul.f32 %v552, %v566
    %v569 = vmul.f32 %v553, %v567
    %v570 = vmul.f32 %v568, %v408
    %v571 = vmul.f32 %v569, %v413
    %v573 = vrot.slane %v570, 7
    %v575 = vsel %vm420, 0.0, %v573
    %v576 = vsel %vm420, %v573, 0.0
    %v579 = vrot.slane %v575, 1
    %v580 = vrot.slane %v576, 1
    %v581 = vsel %vm425, %v579, %v580
    %582 = vrot.lane.b32.xlu0 %v581, 32
    %v583 = vpop.permute.xlu0 %582
    %v585 = vrot.slane %v575, 2
    %v586 = vrot.slane %v576, 2
    %v587 = vsel %vm432, %v585, %v586
    %588 = vrot.lane.b32.xlu0 %v587, 64
    %v589 = vpop.permute.xlu0 %588
    %v591 = vsel %vm439, %v575, %v583
    %v592 = vsel %vm441, %v591, %v589
    %v594 = vrot.slane %v571, 7
    %v596 = vsel %vm420, 0.0, %v594
    %v597 = vsel %vm420, %v594, 0.0
    %v600 = vrot.slane %v596, 1
    %v601 = vrot.slane %v597, 1
    %v602 = vsel %vm425, %v600, %v601
    %603 = vrot.lane.b32.xlu0 %v602, 32
    %v604 = vpop.permute.xlu0 %603
    %v606 = vrot.slane %v596, 2
    %v607 = vrot.slane %v597, 2
    %v608 = vsel %vm432, %v606, %v607
    %609 = vrot.lane.b32.xlu0 %v608, 64
    %v610 = vpop.permute.xlu0 %609
    %v612 = vsel %vm439, %v596, %v604
    %v613 = vsel %vm441, %v612, %v610
    %v615 = vlaneseq
    %v616 = vshrl.u32 %v615, 7
    %v617 = vsub.s32 0, %v616
    %v618 = vrot.slane %v365, %v617
    %v621 = vsel %vm470, %v592, 0
    %v624 = vsel %vm470, %v613, 0
    %626 = vmatprep.subr.mxu0 0.0
    %627 = vmatpush1.msra.mxu0 0.0
    %628 = vmatprep.subr.mxu0 0.0
    %629 = vmatpush1.msra.mxu0 0.0
    %630 = vmatprep.subr.mxu0 0.0
    %631 = vmatpush1.msra.mxu0 0.0
    %632 = vmatprep.subr.mxu0 0.0
    %633 = vmatpush1.msra.mxu0 0.0
    %634 = vmatprep.subr.mxu0 0.0
    %635 = vmatpush1.msra.mxu0 %v364
    %636 = vmatprep.subr.mxu0 0.0
    %637 = vmatpush1.msra.mxu0 %v363
    %638 = vmatprep.subr.mxu0 0.0
    %639 = vmatpush1.msra.mxu0 %v362
    %640 = vmatprep.subr.mxu0 0.0
    %641 = vmatpush1.msra.mxu0 %v361
    %642 = vmatprep.subr.mxu0 0.0
    %643 = vmatpush1.msra.mxu0 %v360
    %644 = vmatprep.subr.mxu0 0.0
    %645 = vmatpush1.msra.mxu0 %v359
    %646 = vmatprep.subr.mxu0 0.0
    %647 = vmatpush1.msra.mxu0 %v358
    %648 = vmatprep.subr.mxu0 0.0
    %649 = vmatpush1.msra.mxu0 %v357
    %650 = vmatprep.subr.mxu0 0.0
    %651 = vmatpush1.msra.mxu0 %v356
    %652 = vmatprep.subr.mxu0 0.0
    %653 = vmatpush1.msra.mxu0 %v355
    %654 = vmatprep.subr.mxu0 0.0
    %655 = vmatpush1.msra.mxu0 %v354
    %656 = vmatprep.subr.mxu0 0.0
    %657 = vmatpush1.msra.mxu0 %v353
    %658 = vmatprep.subr.mxu0 0.0
    %659 = vmatpush2.msra.mxu0 0.0
    %660 = vmatprep.subr.mxu0 0.0
    %661 = vmatpush2.msra.mxu0 0.0
    %662 = vmatprep.subr.mxu0 0.0
    %663 = vmatpush2.msra.mxu0 0.0
    %664 = vmatprep.subr.mxu0 0.0
    %665 = vmatpush2.msra.mxu0 0.0
    %666 = vmatprep.subr.mxu0 0.0
    %667 = vmatpush2.msra.mxu0 0.0
    %668 = vmatprep.subr.mxu0 0.0
    %669 = vmatpush2.msra.mxu0 0.0
    %670 = vmatprep.subr.mxu0 0.0
    %671 = vmatpush2.msra.mxu0 0.0
    %672 = vmatprep.subr.mxu0 0.0
    %673 = vmatpush2.msra.mxu0 0.0
    %674 = vmatprep.subr.mxu0 0.0
    %675 = vmatpush2.msra.mxu0 0.0
    %676 = vmatprep.subr.mxu0 0.0
    %677 = vmatpush2.msra.mxu0 0.0
    %678 = vmatprep.subr.mxu0 0.0
    %679 = vmatpush2.msra.mxu0 0.0
    %680 = vmatprep.subr.mxu0 0.0
    %681 = vmatpush2.msra.mxu0 0.0
    %682 = vmatprep.subr.mxu0 0.0
    %683 = vmatpush2.msra.mxu0 0.0
    %684 = vmatprep.subr.mxu0 0.0
    %685 = vmatpush2.msra.mxu0 0.0
    %686 = vmatprep.subr.mxu0 0.0
    %687 = vmatpush2.msra.mxu0 0.0
    %688 = vmatprep.subr.mxu0 0.0
    %689 = vmatpush2.msra.mxu0 0.0
    %690 = vmatprep.mubr.f32.mxu0 0.0
    %691 = vmatmul.mubr.f32.gmra.mxu0 %v621
    %v692 = vpop.f32.mrf.mxu0
    %v693 = vadd.f32 %v618, %v692
    %v694 = vpop.f32.mrf.mxu0
    %695 = vmatprep.mubr.f32.mxu0 0.0
    %696 = vmatmul.mubr.f32.gmra.mxu0 %v624
    %v697 = vpop.f32.mrf.mxu0
    %v698 = vadd.f32 %v618, %v697
    %v699 = vpop.f32.mrf.mxu0
    %700 = vdwg.mxu0
    %v701 = vmul.f32 %v693, 0.5
    %v702 = vmul.f32 %v698, 0.5
    %v703 = vmul.f32 %v693, 0.7978846
    %v704 = vmul.f32 %v698, 0.7978846
    %v705 = vmul.f32 %v693, 0.044715
    %v706 = vmul.f32 %v698, 0.044715
    %v707 = vmul.f32 %v705, %v693
    %v708 = vmul.f32 %v706, %v698
    %v709 = vadd.f32 %v707, 1.0
    %v710 = vadd.f32 %v708, 1.0
    %v711 = vmul.f32 %v703, %v709
    %v712 = vmul.f32 %v704, %v710
    %v713 = vtanh.pop %v711
    %v714 = vtanh.pop %v712
    %v715 = vadd.f32 %v713, 1.0
    %v716 = vadd.f32 %v714, 1.0
    %v717 = vmul.f32 %v701, %v715
    %v718 = vmul.f32 %v702, %v716
    %720 = vset.pattern.permute.xlu0 0
    %721 = vperm.xlu0 %720, %v137
    %v722 = vpop.permute.xlu0 %721
    %725 = vset.pattern.permute.xlu0 0
    %726 = vperm.xlu0 %725, %v138
    %v727 = vpop.permute.xlu0 %726
    %v729 = vmul.f32 %v332, %v722
    %v730 = vmul.f32 %v337, %v727
    %v732 = vrot.slane %v729, 7
    %v734 = vsel %vm420, 0.0, %v732
    %v735 = vsel %vm420, %v732, 0.0
    %v738 = vrot.slane %v734, 1
    %v739 = vrot.slane %v735, 1
    %v740 = vsel %vm425, %v738, %v739
    %741 = vrot.lane.b32.xlu0 %v740, 32
    %v742 = vpop.permute.xlu0 %741
    %v744 = vrot.slane %v734, 2
    %v745 = vrot.slane %v735, 2
    %v746 = vsel %vm432, %v744, %v745
    %747 = vrot.lane.b32.xlu0 %v746, 64
    %v748 = vpop.permute.xlu0 %747
    %v750 = vsel %vm439, %v734, %v742
    %v751 = vsel %vm441, %v750, %v748
    %v753 = vrot.slane %v730, 7
    %v755 = vsel %vm420, 0.0, %v753
    %v756 = vsel %vm420, %v753, 0.0
    %v759 = vrot.slane %v755, 1
    %v760 = vrot.slane %v756, 1
    %v761 = vsel %vm425, %v759, %v760
    %762 = vrot.lane.b32.xlu0 %v761, 32
    %v763 = vpop.permute.xlu0 %762
    %v765 = vrot.slane %v755, 2
    %v766 = vrot.slane %v756, 2
    %v767 = vsel %vm432, %v765, %v766
    %768 = vrot.lane.b32.xlu0 %v767, 64
    %v769 = vpop.permute.xlu0 %768
    %v771 = vsel %vm439, %v755, %v763
    %v772 = vsel %vm441, %v771, %v769
    %v774 = vsel %vm470, %v751, 0
    %v777 = vsel %vm470, %v772, 0
    %779 = vmatprep.subr.mxu0 0.0
    %780 = vmatpush1.msra.mxu0 0.0
    %781 = vmatprep.subr.mxu0 0.0
    %782 = vmatpush1.msra.mxu0 0.0
    %783 = vmatprep.subr.mxu0 0.0
    %784 = vmatpush1.msra.mxu0 0.0
    %785 = vmatprep.subr.mxu0 0.0
    %786 = vmatpush1.msra.mxu0 0.0
    %787 = vmatprep.subr.mxu0 0.0
    %788 = vmatpush1.msra.mxu0 %v351
    %789 = vmatprep.subr.mxu0 0.0
    %790 = vmatpush1.msra.mxu0 %v350
    %791 = vmatprep.subr.mxu0 0.0
    %792 = vmatpush1.msra.mxu0 %v349
    %793 = vmatprep.subr.mxu0 0.0
    %794 = vmatpush1.msra.mxu0 %v348
    %795 = vmatprep.subr.mxu0 0.0
    %796 = vmatpush1.msra.mxu0 %v347
    %797 = vmatprep.subr.mxu0 0.0
    %798 = vmatpush1.msra.mxu0 %v346
    %799 = vmatprep.subr.mxu0 0.0
    %800 = vmatpush1.msra.mxu0 %v345
    %801 = vmatprep.subr.mxu0 0.0
    %802 = vmatpush1.msra.mxu0 %v344
    %803 = vmatprep.subr.mxu0 0.0
    %804 = vmatpush1.msra.mxu0 %v343
    %805 = vmatprep.subr.mxu0 0.0
    %806 = vmatpush1.msra.mxu0 %v342
    %807 = vmatprep.subr.mxu0 0.0
    %808 = vmatpush1.msra.mxu0 %v341
    %809 = vmatprep.subr.mxu0 0.0
    %810 = vmatpush1.msra.mxu0 %v340
    %811 = vmatprep.subr.mxu0 0.0
    %812 = vmatpush2.msra.mxu0 0.0
    %813 = vmatprep.subr.mxu0 0.0
    %814 = vmatpush2.msra.mxu0 0.0
    %815 = vmatprep.subr.mxu0 0.0
    %816 = vmatpush2.msra.mxu0 0.0
    %817 = vmatprep.subr.mxu0 0.0
    %818 = vmatpush2.msra.mxu0 0.0
    %819 = vmatprep.subr.mxu0 0.0
    %820 = vmatpush2.msra.mxu0 0.0
    %821 = vmatprep.subr.mxu0 0.0
    %822 = vmatpush2.msra.mxu0 0.0
    %823 = vmatprep.subr.mxu0 0.0
    %824 = vmatpush2.msra.mxu0 0.0
    %825 = vmatprep.subr.mxu0 0.0
    %826 = vmatpush2.msra.mxu0 0.0
    %827 = vmatprep.subr.mxu0 0.0
    %828 = vmatpush2.msra.mxu0 0.0
    %829 = vmatprep.subr.mxu0 0.0
    %830 = vmatpush2.msra.mxu0 0.0
    %831 = vmatprep.subr.mxu0 0.0
    %832 = vmatpush2.msra.mxu0 0.0
    %833 = vmatprep.subr.mxu0 0.0
    %834 = vmatpush2.msra.mxu0 0.0
    %835 = vmatprep.subr.mxu0 0.0
    %836 = vmatpush2.msra.mxu0 0.0
    %837 = vmatprep.subr.mxu0 0.0
    %838 = vmatpush2.msra.mxu0 0.0
    %839 = vmatprep.subr.mxu0 0.0
    %840 = vmatpush2.msra.mxu0 0.0
    %841 = vmatprep.subr.mxu0 0.0
    %842 = vmatpush2.msra.mxu0 0.0
    %843 = vmatprep.mubr.f32.mxu0 0.0
    %844 = vmatmul.mubr.f32.gmra.mxu0 %v774
    %v845 = vpop.f32.mrf.mxu0
    %v846 = vadd.f32 %v468, %v845
    %v847 = vpop.f32.mrf.mxu0
    %848 = vmatprep.mubr.f32.mxu0 0.0
    %849 = vmatmul.mubr.f32.gmra.mxu0 %v777
    %v850 = vpop.f32.mrf.mxu0
    %v851 = vadd.f32 %v468, %v850
    %v852 = vpop.f32.mrf.mxu0
    %853 = vdwg.mxu0
    %v854 = vmul.f32 %v846, 0.5
    %v855 = vmul.f32 %v851, 0.5
    %v856 = vmul.f32 %v846, 0.7978846
    %v857 = vmul.f32 %v851, 0.7978846
    %v858 = vmul.f32 %v846, 0.044715
    %v859 = vmul.f32 %v851, 0.044715
    %v860 = vmul.f32 %v858, %v846
    %v861 = vmul.f32 %v859, %v851
    %v862 = vadd.f32 %v860, 1.0
    %v863 = vadd.f32 %v861, 1.0
    %v864 = vmul.f32 %v856, %v862
    %v865 = vmul.f32 %v857, %v863
    %v866 = vtanh.pop %v864
    %v867 = vtanh.pop %v865
    %v868 = vadd.f32 %v866, 1.0
    %v869 = vadd.f32 %v867, 1.0
    %v870 = vmul.f32 %v854, %v868
    %v871 = vmul.f32 %v855, %v869
    %v872 = vmul.f32 %v870, %v722
    %v873 = vmul.f32 %v871, %v727
    %v875 = vrot.slane %v872, 7
    %v877 = vsel %vm420, 0.0, %v875
    %v878 = vsel %vm420, %v875, 0.0
    %v881 = vrot.slane %v877, 1
    %v882 = vrot.slane %v878, 1
    %v883 = vsel %vm425, %v881, %v882
    %884 = vrot.lane.b32.xlu0 %v883, 32
    %v885 = vpop.permute.xlu0 %884
    %v887 = vrot.slane %v877, 2
    %v888 = vrot.slane %v878, 2
    %v889 = vsel %vm432, %v887, %v888
    %890 = vrot.lane.b32.xlu0 %v889, 64
    %v891 = vpop.permute.xlu0 %890
    %v893 = vsel %vm439, %v877, %v885
    %v894 = vsel %vm441, %v893, %v891
    %v896 = vrot.slane %v873, 7
    %v898 = vsel %vm420, 0.0, %v896
    %v899 = vsel %vm420, %v896, 0.0
    %v902 = vrot.slane %v898, 1
    %v903 = vrot.slane %v899, 1
    %v904 = vsel %vm425, %v902, %v903
    %905 = vrot.lane.b32.xlu0 %v904, 32
    %v906 = vpop.permute.xlu0 %905
    %v908 = vrot.slane %v898, 2
    %v909 = vrot.slane %v899, 2
    %v910 = vsel %vm432, %v908, %v909
    %911 = vrot.lane.b32.xlu0 %v910, 64
    %v912 = vpop.permute.xlu0 %911
    %v914 = vsel %vm439, %v898, %v906
    %v915 = vsel %vm441, %v914, %v912
    %v917 = vsel %vm470, %v894, 0
    %v920 = vsel %vm470, %v915, 0
    %922 = vmatprep.subr.mxu0 0.0
    %923 = vmatpush1.msra.mxu0 0.0
    %924 = vmatprep.subr.mxu0 0.0
    %925 = vmatpush1.msra.mxu0 0.0
    %926 = vmatprep.subr.mxu0 0.0
    %927 = vmatpush1.msra.mxu0 0.0
    %928 = vmatprep.subr.mxu0 0.0
    %929 = vmatpush1.msra.mxu0 0.0
    %930 = vmatprep.subr.mxu0 0.0
    %931 = vmatpush1.msra.mxu0 %v364
    %932 = vmatprep.subr.mxu0 0.0
    %933 = vmatpush1.msra.mxu0 %v363
    %934 = vmatprep.subr.mxu0 0.0
    %935 = vmatpush1.msra.mxu0 %v362
    %936 = vmatprep.subr.mxu0 0.0
    %937 = vmatpush1.msra.mxu0 %v361
    %938 = vmatprep.subr.mxu0 0.0
    %939 = vmatpush1.msra.mxu0 %v360
    %940 = vmatprep.subr.mxu0 0.0
    %941 = vmatpush1.msra.mxu0 %v359
    %942 = vmatprep.subr.mxu0 0.0
    %943 = vmatpush1.msra.mxu0 %v358
    %944 = vmatprep.subr.mxu0 0.0
    %945 = vmatpush1.msra.mxu0 %v357
    %946 = vmatprep.subr.mxu0 0.0
    %947 = vmatpush1.msra.mxu0 %v356
    %948 = vmatprep.subr.mxu0 0.0
    %949 = vmatpush1.msra.mxu0 %v355
    %950 = vmatprep.subr.mxu0 0.0
    %951 = vmatpush1.msra.mxu0 %v354
    %952 = vmatprep.subr.mxu0 0.0
    %953 = vmatpush1.msra.mxu0 %v353
    %954 = vmatprep.subr.mxu0 0.0
    %955 = vmatpush2.msra.mxu0 0.0
    %956 = vmatprep.subr.mxu0 0.0
    %957 = vmatpush2.msra.mxu0 0.0
    %958 = vmatprep.subr.mxu0 0.0
    %959 = vmatpush2.msra.mxu0 0.0
    %960 = vmatprep.subr.mxu0 0.0
    %961 = vmatpush2.msra.mxu0 0.0
    %962 = vmatprep.subr.mxu0 0.0
    %963 = vmatpush2.msra.mxu0 0.0
    %964 = vmatprep.subr.mxu0 0.0
    %965 = vmatpush2.msra.mxu0 0.0
    %966 = vmatprep.subr.mxu0 0.0
    %967 = vmatpush2.msra.mxu0 0.0
    %968 = vmatprep.subr.mxu0 0.0
    %969 = vmatpush2.msra.mxu0 0.0
    %970 = vmatprep.subr.mxu0 0.0
    %971 = vmatpush2.msra.mxu0 0.0
    %972 = vmatprep.subr.mxu0 0.0
    %973 = vmatpush2.msra.mxu0 0.0
    %974 = vmatprep.subr.mxu0 0.0
    %975 = vmatpush2.msra.mxu0 0.0
    %976 = vmatprep.subr.mxu0 0.0
    %977 = vmatpush2.msra.mxu0 0.0
    %978 = vmatprep.subr.mxu0 0.0
    %979 = vmatpush2.msra.mxu0 0.0
    %980 = vmatprep.subr.mxu0 0.0
    %981 = vmatpush2.msra.mxu0 0.0
    %982 = vmatprep.subr.mxu0 0.0
    %983 = vmatpush2.msra.mxu0 0.0
    %984 = vmatprep.subr.mxu0 0.0
    %985 = vmatpush2.msra.mxu0 0.0
    %986 = vmatprep.mubr.f32.mxu0 0.0
    %987 = vmatmul.mubr.f32.gmra.mxu0 %v917
    %v988 = vpop.f32.mrf.mxu0
    %v989 = vadd.f32 %v618, %v988
    %v990 = vpop.f32.mrf.mxu0
    %991 = vmatprep.mubr.f32.mxu0 0.0
    %992 = vmatmul.mubr.f32.gmra.mxu0 %v920
    %v993 = vpop.f32.mrf.mxu0
    %v994 = vadd.f32 %v618, %v993
    %v995 = vpop.f32.mrf.mxu0
    %996 = vdwg.mxu0
    %v997 = vmul.f32 %v989, 0.5
    %v998 = vmul.f32 %v994, 0.5
    %v999 = vmul.f32 %v989, 0.7978846
    %v1000 = vmul.f32 %v994, 0.7978846
    %v1001 = vmul.f32 %v989, 0.044715
    %v1002 = vmul.f32 %v994, 0.044715
    %v1003 = vmul.f32 %v1001, %v989
    %v1004 = vmul.f32 %v1002, %v994
    %v1005 = vadd.f32 %v1003, 1.0
    %v1006 = vadd.f32 %v1004, 1.0
    %v1007 = vmul.f32 %v999, %v1005
    %v1008 = vmul.f32 %v1000, %v1006
    %v1009 = vtanh.pop %v1007
    %v1010 = vtanh.pop %v1008
    %v1011 = vadd.f32 %v1009, 1.0
    %v1012 = vadd.f32 %v1010, 1.0
    %v1013 = vmul.f32 %v997, %v1011
    %v1014 = vmul.f32 %v998, %v1012
    %1017 = vrot.lane.b32.xlu0 %v717, 32
    %v1018 = vpop.permute.xlu0 %1017
    %1019 = vrot.lane.b32.xlu0 %v718, 32
    %v1020 = vpop.permute.xlu0 %1019
    %v1023 = vsel %vm439, %v239, %v1018
    %v1024 = vsel %vm439, %v244, %v1020
    %1027 = vrot.lane.b32.xlu0 %v1013, 32
    %v1028 = vpop.permute.xlu0 %1027
    %1029 = vrot.lane.b32.xlu0 %v1014, 32
    %v1030 = vpop.permute.xlu0 %1029
    %v1033 = vsel %vm439, %v332, %v1028
    %v1034 = vsel %vm439, %v337, %v1030
    %v1036 = vlaneseq
    %v1037 = vshrl.u32 %v1036, 7
    %v1038 = vsub.s32 0, %v1037
    %v1039 = vrot.slane %v374, %v1038
    %v1042 = vsel %vm441, %v1023, 0
    %v1045 = vsel %vm441, %v1024, 0
    %1047 = vmatprep.subr.mxu0 0.0
    %1048 = vmatpush1.msra.mxu0 0.0
    %1049 = vmatprep.subr.mxu0 0.0
    %1050 = vmatpush1.msra.mxu0 0.0
    %1051 = vmatprep.subr.mxu0 0.0
    %1052 = vmatpush1.msra.mxu0 0.0
    %1053 = vmatprep.subr.mxu0 0.0
    %1054 = vmatpush1.msra.mxu0 0.0
    %1055 = vmatprep.subr.mxu0 0.0
    %1056 = vmatpush1.msra.mxu0 0.0
    %1057 = vmatprep.subr.mxu0 0.0
    %1058 = vmatpush1.msra.mxu0 0.0
    %1059 = vmatprep.subr.mxu0 0.0
    %1060 = vmatpush1.msra.mxu0 0.0
    %1061 = vmatprep.subr.mxu0 0.0
    %1062 = vmatpush1.msra.mxu0 0.0
    %1063 = vmatprep.subr.mxu0 0.0
    %1064 = vmatpush1.msra.mxu0 %v373
    %1065 = vmatprep.subr.mxu0 0.0
    %1066 = vmatpush1.msra.mxu0 %v372
    %1067 = vmatprep.subr.mxu0 0.0
    %1068 = vmatpush1.msra.mxu0 %v371
    %1069 = vmatprep.subr.mxu0 0.0
    %1070 = vmatpush1.msra.mxu0 %v370
    %1071 = vmatprep.subr.mxu0 0.0
    %1072 = vmatpush1.msra.mxu0 %v369
    %1073 = vmatprep.subr.mxu0 0.0
    %1074 = vmatpush1.msra.mxu0 %v368
    %1075 = vmatprep.subr.mxu0 0.0
    %1076 = vmatpush1.msra.mxu0 %v367
    %1077 = vmatprep.subr.mxu0 0.0
    %1078 = vmatpush1.msra.mxu0 %v366
    %1079 = vmatprep.subr.mxu0 0.0
    %1080 = vmatpush2.msra.mxu0 0.0
    %1081 = vmatprep.subr.mxu0 0.0
    %1082 = vmatpush2.msra.mxu0 0.0
    %1083 = vmatprep.subr.mxu0 0.0
    %1084 = vmatpush2.msra.mxu0 0.0
    %1085 = vmatprep.subr.mxu0 0.0
    %1086 = vmatpush2.msra.mxu0 0.0
    %1087 = vmatprep.subr.mxu0 0.0
    %1088 = vmatpush2.msra.mxu0 0.0
    %1089 = vmatprep.subr.mxu0 0.0
    %1090 = vmatpush2.msra.mxu0 0.0
    %1091 = vmatprep.subr.mxu0 0.0
    %1092 = vmatpush2.msra.mxu0 0.0
    %1093 = vmatprep.subr.mxu0 0.0
    %1094 = vmatpush2.msra.mxu0 0.0
    %1095 = vmatprep.subr.mxu0 0.0
    %1096 = vmatpush2.msra.mxu0 0.0
    %1097 = vmatprep.subr.mxu0 0.0
    %1098 = vmatpush2.msra.mxu0 0.0
    %1099 = vmatprep.subr.mxu0 0.0
    %1100 = vmatpush2.msra.mxu0 0.0
    %1101 = vmatprep.subr.mxu0 0.0
    %1102 = vmatpush2.msra.mxu0 0.0
    %1103 = vmatprep.subr.mxu0 0.0
    %1104 = vmatpush2.msra.mxu0 0.0
    %1105 = vmatprep.subr.mxu0 0.0
    %1106 = vmatpush2.msra.mxu0 0.0
    %1107 = vmatprep.subr.mxu0 0.0
    %1108 = vmatpush2.msra.mxu0 0.0
    %1109 = vmatprep.subr.mxu0 0.0
    %1110 = vmatpush2.msra.mxu0 0.0
    %1111 = vmatprep.mubr.f32.mxu0 0.0
    %1112 = vmatmul.mubr.f32.gmra.mxu0 %v1042
    %v1113 = vpop.f32.mrf.mxu0
    %v1114 = vadd.f32 %v1039, %v1113
    %v1115 = vpop.f32.mrf.mxu0
    %1116 = vmatprep.mubr.f32.mxu0 0.0
    %1117 = vmatmul.mubr.f32.gmra.mxu0 %v1045
    %v1118 = vpop.f32.mrf.mxu0
    %v1119 = vadd.f32 %v1039, %v1118
    %v1120 = vpop.f32.mrf.mxu0
    %1121 = vdwg.mxu0
    %v1122 = vmul.f32 %v1114, 0.5
    %v1123 = vmul.f32 %v1119, 0.5
    %v1124 = vmul.f32 %v1114, 0.7978846
    %v1125 = vmul.f32 %v1119, 0.7978846
    %v1126 = vmul.f32 %v1114, 0.044715
    %v1127 = vmul.f32 %v1119, 0.044715
    %v1128 = vmul.f32 %v1126, %v1114
    %v1129 = vmul.f32 %v1127, %v1119
    %v1130 = vadd.f32 %v1128, 1.0
    %v1131 = vadd.f32 %v1129, 1.0
    %v1132 = vmul.f32 %v1124, %v1130
    %v1133 = vmul.f32 %v1125, %v1131
    %v1134 = vtanh.pop %v1132
    %v1135 = vtanh.pop %v1133
    %v1136 = vadd.f32 %v1134, 1.0
    %v1137 = vadd.f32 %v1135, 1.0
    %v1138 = vmul.f32 %v1122, %v1136
    %v1139 = vmul.f32 %v1123, %v1137
    %v1141 = vsel %vm441, %v1033, 0
    %v1144 = vsel %vm441, %v1034, 0
    %1146 = vmatprep.subr.mxu0 0.0
    %1147 = vmatpush1.msra.mxu0 0.0
    %1148 = vmatprep.subr.mxu0 0.0
    %1149 = vmatpush1.msra.mxu0 0.0
    %1150 = vmatprep.subr.mxu0 0.0
    %1151 = vmatpush1.msra.mxu0 0.0
    %1152 = vmatprep.subr.mxu0 0.0
    %1153 = vmatpush1.msra.mxu0 0.0
    %1154 = vmatprep.subr.mxu0 0.0
    %1155 = vmatpush1.msra.mxu0 0.0
    %1156 = vmatprep.subr.mxu0 0.0
    %1157 = vmatpush1.msra.mxu0 0.0
    %1158 = vmatprep.subr.mxu0 0.0
    %1159 = vmatpush1.msra.mxu0 0.0
    %1160 = vmatprep.subr.mxu0 0.0
    %1161 = vmatpush1.msra.mxu0 0.0
    %1162 = vmatprep.subr.mxu0 0.0
    %1163 = vmatpush1.msra.mxu0 %v373
    %1164 = vmatprep.subr.mxu0 0.0
    %1165 = vmatpush1.msra.mxu0 %v372
    %1166 = vmatprep.subr.mxu0 0.0
    %1167 = vmatpush1.msra.mxu0 %v371
    %1168 = vmatprep.subr.mxu0 0.0
    %1169 = vmatpush1.msra.mxu0 %v370
    %1170 = vmatprep.subr.mxu0 0.0
    %1171 = vmatpush1.msra.mxu0 %v369
    %1172 = vmatprep.subr.mxu0 0.0
    %1173 = vmatpush1.msra.mxu0 %v368
    %1174 = vmatprep.subr.mxu0 0.0
    %1175 = vmatpush1.msra.mxu0 %v367
    %1176 = vmatprep.subr.mxu0 0.0
    %1177 = vmatpush1.msra.mxu0 %v366
    %1178 = vmatprep.subr.mxu0 0.0
    %1179 = vmatpush2.msra.mxu0 0.0
    %1180 = vmatprep.subr.mxu0 0.0
    %1181 = vmatpush2.msra.mxu0 0.0
    %1182 = vmatprep.subr.mxu0 0.0
    %1183 = vmatpush2.msra.mxu0 0.0
    %1184 = vmatprep.subr.mxu0 0.0
    %1185 = vmatpush2.msra.mxu0 0.0
    %1186 = vmatprep.subr.mxu0 0.0
    %1187 = vmatpush2.msra.mxu0 0.0
    %1188 = vmatprep.subr.mxu0 0.0
    %1189 = vmatpush2.msra.mxu0 0.0
    %1190 = vmatprep.subr.mxu0 0.0
    %1191 = vmatpush2.msra.mxu0 0.0
    %1192 = vmatprep.subr.mxu0 0.0
    %1193 = vmatpush2.msra.mxu0 0.0
    %1194 = vmatprep.subr.mxu0 0.0
    %1195 = vmatpush2.msra.mxu0 0.0
    %1196 = vmatprep.subr.mxu0 0.0
    %1197 = vmatpush2.msra.mxu0 0.0
    %1198 = vmatprep.subr.mxu0 0.0
    %1199 = vmatpush2.msra.mxu0 0.0
    %1200 = vmatprep.subr.mxu0 0.0
    %1201 = vmatpush2.msra.mxu0 0.0
    %1202 = vmatprep.subr.mxu0 0.0
    %1203 = vmatpush2.msra.mxu0 0.0
    %1204 = vmatprep.subr.mxu0 0.0
    %1205 = vmatpush2.msra.mxu0 0.0
    %1206 = vmatprep.subr.mxu0 0.0
    %1207 = vmatpush2.msra.mxu0 0.0
    %1208 = vmatprep.subr.mxu0 0.0
    %1209 = vmatpush2.msra.mxu0 0.0
    %1210 = vmatprep.mubr.f32.mxu0 0.0
    %1211 = vmatmul.mubr.f32.gmra.mxu0 %v1141
    %v1212 = vpop.f32.mrf.mxu0
    %v1213 = vadd.f32 %v1039, %v1212
    %v1214 = vpop.f32.mrf.mxu0
    %1215 = vmatprep.mubr.f32.mxu0 0.0
    %1216 = vmatmul.mubr.f32.gmra.mxu0 %v1144
    %v1217 = vpop.f32.mrf.mxu0
    %v1218 = vadd.f32 %v1039, %v1217
    %v1219 = vpop.f32.mrf.mxu0
    %1220 = vdwg.mxu0
    %v1221 = vmul.f32 %v1213, 0.5
    %v1222 = vmul.f32 %v1218, 0.5
    %v1223 = vmul.f32 %v1213, 0.7978846
    %v1224 = vmul.f32 %v1218, 0.7978846
    %v1225 = vmul.f32 %v1213, 0.044715
    %v1226 = vmul.f32 %v1218, 0.044715
    %v1227 = vmul.f32 %v1225, %v1213
    %v1228 = vmul.f32 %v1226, %v1218
    %v1229 = vadd.f32 %v1227, 1.0
    %v1230 = vadd.f32 %v1228, 1.0
    %v1231 = vmul.f32 %v1223, %v1229
    %v1232 = vmul.f32 %v1224, %v1230
    %v1233 = vtanh.pop %v1231
    %v1234 = vtanh.pop %v1232
    %v1235 = vadd.f32 %v1233, 1.0
    %v1236 = vadd.f32 %v1234, 1.0
    %v1237 = vmul.f32 %v1221, %v1235
    %v1238 = vmul.f32 %v1222, %v1236
    %v1240 = vsel %vm439, %v1138, 0
    %v1243 = vsel %vm439, %v1237, 0
    %1245 = vmatprep.subr.mxu0 0.0
    %1246 = vmatpush1.xpose.msra.mxu0 0.0
    %1247 = vmatprep.subr.mxu0 0.0
    %1248 = vmatpush1.xpose.msra.mxu0 0.0
    %1249 = vmatprep.subr.mxu0 0.0
    %1250 = vmatpush1.xpose.msra.mxu0 0.0
    %1251 = vmatprep.subr.mxu0 0.0
    %1252 = vmatpush1.xpose.msra.mxu0 0.0
    %1253 = vmatprep.subr.mxu0 0.0
    %1254 = vmatpush1.xpose.msra.mxu0 0.0
    %1255 = vmatprep.subr.mxu0 0.0
    %1256 = vmatpush1.xpose.msra.mxu0 0.0
    %1257 = vmatprep.subr.mxu0 0.0
    %1258 = vmatpush1.xpose.msra.mxu0 0.0
    %1259 = vmatprep.subr.mxu0 0.0
    %1260 = vmatpush1.xpose.msra.mxu0 0.0
    %1261 = vmatprep.subr.mxu0 0.0
    %1262 = vmatpush1.xpose.msra.mxu0 0.0
    %1263 = vmatprep.subr.mxu0 0.0
    %1264 = vmatpush1.xpose.msra.mxu0 0.0
    %1265 = vmatprep.subr.mxu0 0.0
    %1266 = vmatpush1.xpose.msra.mxu0 0.0
    %1267 = vmatprep.subr.mxu0 0.0
    %1268 = vmatpush1.xpose.msra.mxu0 0.0
    %1269 = vmatprep.subr.mxu0 0.0
    %1270 = vmatpush1.xpose.msra.mxu0 0.0
    %1271 = vmatprep.subr.mxu0 0.0
    %1272 = vmatpush1.xpose.msra.mxu0 0.0
    %1273 = vmatprep.subr.mxu0 0.0
    %1274 = vmatpush1.xpose.msra.mxu0 0.0
    %1275 = vmatprep.subr.mxu0 0.0
    %1276 = vmatpush1.xpose.msra.mxu0 %v1243
    %1277 = vmatprep.subr.mxu0 0.0
    %1278 = vmatpush2.xpose.msra.mxu0 0.0
    %1279 = vmatprep.subr.mxu0 0.0
    %1280 = vmatpush2.xpose.msra.mxu0 0.0
    %1281 = vmatprep.subr.mxu0 0.0
    %1282 = vmatpush2.xpose.msra.mxu0 0.0
    %1283 = vmatprep.subr.mxu0 0.0
    %1284 = vmatpush2.xpose.msra.mxu0 0.0
    %1285 = vmatprep.subr.mxu0 0.0
    %1286 = vmatpush2.xpose.msra.mxu0 0.0
    %1287 = vmatprep.subr.mxu0 0.0
    %1288 = vmatpush2.xpose.msra.mxu0 0.0
    %1289 = vmatprep.subr.mxu0 0.0
    %1290 = vmatpush2.xpose.msra.mxu0 0.0
    %1291 = vmatprep.subr.mxu0 0.0
    %1292 = vmatpush2.xpose.msra.mxu0 0.0
    %1293 = vmatprep.subr.mxu0 0.0
    %1294 = vmatpush2.xpose.msra.mxu0 0.0
    %1295 = vmatprep.subr.mxu0 0.0
    %1296 = vmatpush2.xpose.msra.mxu0 0.0
    %1297 = vmatprep.subr.mxu0 0.0
    %1298 = vmatpush2.xpose.msra.mxu0 0.0
    %1299 = vmatprep.subr.mxu0 0.0
    %1300 = vmatpush2.xpose.msra.mxu0 0.0
    %1301 = vmatprep.subr.mxu0 0.0
    %1302 = vmatpush2.xpose.msra.mxu0 0.0
    %1303 = vmatprep.subr.mxu0 0.0
    %1304 = vmatpush2.xpose.msra.mxu0 0.0
    %1305 = vmatprep.subr.mxu0 0.0
    %1306 = vmatpush2.xpose.msra.mxu0 0.0
    %1307 = vmatprep.subr.mxu0 0.0
    %1308 = vmatpush2.xpose.msra.mxu0 0.0
    %1309 = vmatprep.mubr.f32.mxu0 0.0
    %1310 = vmatmul.mubr.f32.gmra.mxu0 %v1240
    %v1311 = vpop.f32.mrf.mxu0
    %v1312 = vadd.f32 0.0, %v1311
    %v1313 = vpop.f32.mrf.mxu0
    %1314 = vdwg.mxu0
    %v1315 = vmul.f32 %v1312, 0.17677669
    %v1316 = vlaneseq
    %v1317 = vshrl.u32 %v1316, 7
    %v1318 = vsub.s32 0, %v1317
    %v1319 = vrot.slane %v139, %v1318
    %v1320 = vmul.f32 %v408, %v1319
    %vm1321 = vcmp.gt.f32.partialorder %v1320, 0.0
    %v1322 = vsel %vm1321, %v1315, -10000000.0
    %vm1323 = vcmask 64512
    %v1324 = vsel %vm1323, %v1322, -inf
    %v1325 = vrot.slane %v1324, 4
    %v1326 = vmax.f32 %v1324, %v1325
    %v1327 = vrot.slane %v1326, 2
    %v1328 = vmax.f32 %v1326, %v1327
    %v1329 = vrot.slane %v1328, 1
    %v1330 = vmax.f32 %v1328, %v1329
    %v1331 = vsub.f32 %v1322, %v1330
    %v1332 = vmul.f32 %v1331, 1.442695
    %v1333 = vpow.pop %v1332
    %v1334 = vsel %vm1323, %v1333, 0.0
    %v1335 = vrot.slane %v1334, 4
    %v1336 = vadd.f32 %v1334, %v1335
    %v1337 = vrot.slane %v1336, 2
    %v1338 = vadd.f32 %v1336, %v1337
    %v1339 = vrot.slane %v1338, 1
    %v1340 = vadd.f32 %v1338, %v1339
    %v1341 = vrcp.pop %v1340
    %v1342 = vmul.f32 %v1333, %v1341
    %1343 = vmax.xlane.f32.xlu0 %v1324
    %v1344 = vpop.xlane.xlu0 %1343
    %v1345 = vsub.f32 %v1322, %v1344
    %v1346 = vmul.f32 %v1345, 1.442695
    %v1347 = vpow.pop %v1346
    %v1348 = vsel %vm1323, %v1347, 0.0
    %1349 = vadd.xlane.f32.xlu0 %v1348
    %v1350 = vpop.xlane.xlu0 %1349
    %v1351 = vrcp.pop %v1350
    %v1352 = vmul.f32 %v1347, %v1351
    %1353 = vxpose.xlu0.b32.start [1/16] %v1342, 128
    %1354 = vxpose.xlu0.b32.cont [2/16] 0.0, 128
    %1355 = vxpose.xlu0.b32.cont [3/16] 0.0, 128
    %1356 = vxpose.xlu0.b32.cont [4/16] 0.0, 128
    %1357 = vxpose.xlu0.b32.cont [5/16] 0.0, 128
    %1358 = vxpose.xlu0.b32.cont [6/16] 0.0, 128
    %1359 = vxpose.xlu0.b32.cont [7/16] 0.0, 128
    %1360 = vxpose.xlu0.b32.cont [8/16] 0.0, 128
    %1361 = vxpose.xlu0.b32.cont [9/16] 0.0, 128
    %1362 = vxpose.xlu0.b32.cont [10/16] 0.0, 128
    %1363 = vxpose.xlu0.b32.cont [11/16] 0.0, 128
    %1364 = vxpose.xlu0.b32.cont [12/16] 0.0, 128
    %1365 = vxpose.xlu0.b32.cont [13/16] 0.0, 128
    %1366 = vxpose.xlu0.b32.cont [14/16] 0.0, 128
    %1367 = vxpose.xlu0.b32.cont [15/16] 0.0, 128
    %1368 = vxpose.xlu0.b32.end [16/16] 0.0, 128
    %v1369 = vpop.trf.xlu0
    %v1370 = vpop.trf.xlu0
    %v1371 = vpop.trf.xlu0
    %v1372 = vpop.trf.xlu0
    %v1373 = vpop.trf.xlu0
    %v1374 = vpop.trf.xlu0
    %v1375 = vpop.trf.xlu0
    %v1376 = vpop.trf.xlu0
    %v1377 = vpop.trf.xlu0
    %v1378 = vpop.trf.xlu0
    %v1379 = vpop.trf.xlu0
    %v1380 = vpop.trf.xlu0
    %v1381 = vpop.trf.xlu0
    %v1382 = vpop.trf.xlu0
    %v1383 = vpop.trf.xlu0
    %v1384 = vpop.trf.xlu0
    %v1386 = vsel %vm1323, %v1369, 0
    %1388 = vmatprep.subr.mxu0 0.0
    %1389 = vmatpush1.msra.mxu0 0.0
    %1390 = vmatprep.subr.mxu0 0.0
    %1391 = vmatpush1.msra.mxu0 0.0
    %1392 = vmatprep.subr.mxu0 0.0
    %1393 = vmatpush1.msra.mxu0 0.0
    %1394 = vmatprep.subr.mxu0 0.0
    %1395 = vmatpush1.msra.mxu0 0.0
    %1396 = vmatprep.subr.mxu0 0.0
    %1397 = vmatpush1.msra.mxu0 0.0
    %1398 = vmatprep.subr.mxu0 0.0
    %1399 = vmatpush1.msra.mxu0 0.0
    %1400 = vmatprep.subr.mxu0 0.0
    %1401 = vmatpush1.msra.mxu0 0.0
    %1402 = vmatprep.subr.mxu0 0.0
    %1403 = vmatpush1.msra.mxu0 0.0
    %1404 = vmatprep.subr.mxu0 0.0
    %1405 = vmatpush1.msra.mxu0 0.0
    %1406 = vmatprep.subr.mxu0 0.0
    %1407 = vmatpush1.msra.mxu0 0.0
    %1408 = vmatprep.subr.mxu0 0.0
    %1409 = vmatpush1.msra.mxu0 0.0
    %1410 = vmatprep.subr.mxu0 0.0
    %1411 = vmatpush1.msra.mxu0 0.0
    %1412 = vmatprep.subr.mxu0 0.0
    %1413 = vmatpush1.msra.mxu0 0.0
    %1414 = vmatprep.subr.mxu0 0.0
    %1415 = vmatpush1.msra.mxu0 0.0
    %1416 = vmatprep.subr.mxu0 0.0
    %1417 = vmatpush1.msra.mxu0 0.0
    %1418 = vmatprep.subr.mxu0 0.0
    %1419 = vmatpush1.msra.mxu0 %v1023
    %1420 = vmatprep.subr.mxu0 0.0
    %1421 = vmatpush2.msra.mxu0 0.0
    %1422 = vmatprep.subr.mxu0 0.0
    %1423 = vmatpush2.msra.mxu0 0.0
    %1424 = vmatprep.subr.mxu0 0.0
    %1425 = vmatpush2.msra.mxu0 0.0
    %1426 = vmatprep.subr.mxu0 0.0
    %1427 = vmatpush2.msra.mxu0 0.0
    %1428 = vmatprep.subr.mxu0 0.0
    %1429 = vmatpush2.msra.mxu0 0.0
    %1430 = vmatprep.subr.mxu0 0.0
    %1431 = vmatpush2.msra.mxu0 0.0
    %1432 = vmatprep.subr.mxu0 0.0
    %1433 = vmatpush2.msra.mxu0 0.0
    %1434 = vmatprep.subr.mxu0 0.0
    %1435 = vmatpush2.msra.mxu0 0.0
    %1436 = vmatprep.subr.mxu0 0.0
    %1437 = vmatpush2.msra.mxu0 0.0
    %1438 = vmatprep.subr.mxu0 0.0
    %1439 = vmatpush2.msra.mxu0 0.0
    %1440 = vmatprep.subr.mxu0 0.0
    %1441 = vmatpush2.msra.mxu0 0.0
    %1442 = vmatprep.subr.mxu0 0.0
    %1443 = vmatpush2.msra.mxu0 0.0
    %1444 = vmatprep.subr.mxu0 0.0
    %1445 = vmatpush2.msra.mxu0 0.0
    %1446 = vmatprep.subr.mxu0 0.0
    %1447 = vmatpush2.msra.mxu0 0.0
    %1448 = vmatprep.subr.mxu0 0.0
    %1449 = vmatpush2.msra.mxu0 0.0
    %1450 = vmatprep.subr.mxu0 0.0
    %1451 = vmatpush2.msra.mxu0 0.0
    %1452 = vmatprep.mubr.f32.mxu0 0.0
    %1453 = vmatmul.mubr.f32.gmra.mxu0 %v1386
    %v1454 = vpop.f32.mrf.mxu0
    %v1455 = vadd.f32 0.0, %v1454
    %v1456 = vpop.f32.mrf.mxu0
    %1457 = vdwg.mxu0
    %v1459 = vsel %vm1323, %v1352, 0
    %1461 = vmatprep.subr.mxu0 0.0
    %1462 = vmatpush1.msra.mxu0 0.0
    %1463 = vmatprep.subr.mxu0 0.0
    %1464 = vmatpush1.msra.mxu0 0.0
    %1465 = vmatprep.subr.mxu0 0.0
    %1466 = vmatpush1.msra.mxu0 0.0
    %1467 = vmatprep.subr.mxu0 0.0
    %1468 = vmatpush1.msra.mxu0 0.0
    %1469 = vmatprep.subr.mxu0 0.0
    %1470 = vmatpush1.msra.mxu0 0.0
    %1471 = vmatprep.subr.mxu0 0.0
    %1472 = vmatpush1.msra.mxu0 0.0
    %1473 = vmatprep.subr.mxu0 0.0
    %1474 = vmatpush1.msra.mxu0 0.0
    %1475 = vmatprep.subr.mxu0 0.0
    %1476 = vmatpush1.msra.mxu0 0.0
    %1477 = vmatprep.subr.mxu0 0.0
    %1478 = vmatpush1.msra.mxu0 0.0
    %1479 = vmatprep.subr.mxu0 0.0
    %1480 = vmatpush1.msra.mxu0 0.0
    %1481 = vmatprep.subr.mxu0 0.0
    %1482 = vmatpush1.msra.mxu0 0.0
    %1483 = vmatprep.subr.mxu0 0.0
    %1484 = vmatpush1.msra.mxu0 0.0
    %1485 = vmatprep.subr.mxu0 0.0
    %1486 = vmatpush1.msra.mxu0 0.0
    %1487 = vmatprep.subr.mxu0 0.0
    %1488 = vmatpush1.msra.mxu0 0.0
    %1489 = vmatprep.subr.mxu0 0.0
    %1490 = vmatpush1.msra.mxu0 0.0
    %1491 = vmatprep.subr.mxu0 0.0
    %1492 = vmatpush1.msra.mxu0 %v1033
    %1493 = vmatprep.subr.mxu0 0.0
    %1494 = vmatpush2.msra.mxu0 0.0
    %1495 = vmatprep.subr.mxu0 0.0
    %1496 = vmatpush2.msra.mxu0 0.0
    %1497 = vmatprep.subr.mxu0 0.0
    %1498 = vmatpush2.msra.mxu0 0.0
    %1499 = vmatprep.subr.mxu0 0.0
    %1500 = vmatpush2.msra.mxu0 0.0
    %1501 = vmatprep.subr.mxu0 0.0
    %1502 = vmatpush2.msra.mxu0 0.0
    %1503 = vmatprep.subr.mxu0 0.0
    %1504 = vmatpush2.msra.mxu0 0.0
    %1505 = vmatprep.subr.mxu0 0.0
    %1506 = vmatpush2.msra.mxu0 0.0
    %1507 = vmatprep.subr.mxu0 0.0
    %1508 = vmatpush2.msra.mxu0 0.0
    %1509 = vmatprep.subr.mxu0 0.0
    %1510 = vmatpush2.msra.mxu0 0.0
    %1511 = vmatprep.subr.mxu0 0.0
    %1512 = vmatpush2.msra.mxu0 0.0
    %1513 = vmatprep.subr.mxu0 0.0
    %1514 = vmatpush2.msra.mxu0 0.0
    %1515 = vmatprep.subr.mxu0 0.0
    %1516 = vmatpush2.msra.mxu0 0.0
    %1517 = vmatprep.subr.mxu0 0.0
    %1518 = vmatpush2.msra.mxu0 0.0
    %1519 = vmatprep.subr.mxu0 0.0
    %1520 = vmatpush2.msra.mxu0 0.0
    %1521 = vmatprep.subr.mxu0 0.0
    %1522 = vmatpush2.msra.mxu0 0.0
    %1523 = vmatprep.subr.mxu0 0.0
    %1524 = vmatpush2.msra.mxu0 0.0
    %1525 = vmatprep.mubr.f32.mxu0 0.0
    %1526 = vmatmul.mubr.f32.gmra.mxu0 %v1459
    %v1527 = vpop.f32.mrf.mxu0
    %v1528 = vadd.f32 0.0, %v1527
    %v1529 = vpop.f32.mrf.mxu0
    %1530 = vdwg.mxu0
    %v1532 = vsel %vm439, %v1139, 0
    %v1535 = vsel %vm439, %v1238, 0
    %1537 = vmatprep.subr.mxu0 0.0
    %1538 = vmatpush1.xpose.msra.mxu0 0.0
    %1539 = vmatprep.subr.mxu0 0.0
    %1540 = vmatpush1.xpose.msra.mxu0 0.0
    %1541 = vmatprep.subr.mxu0 0.0
    %1542 = vmatpush1.xpose.msra.mxu0 0.0
    %1543 = vmatprep.subr.mxu0 0.0
    %1544 = vmatpush1.xpose.msra.mxu0 0.0
    %1545 = vmatprep.subr.mxu0 0.0
    %1546 = vmatpush1.xpose.msra.mxu0 0.0
    %1547 = vmatprep.subr.mxu0 0.0
    %1548 = vmatpush1.xpose.msra.mxu0 0.0
    %1549 = vmatprep.subr.mxu0 0.0
    %1550 = vmatpush1.xpose.msra.mxu0 0.0
    %1551 = vmatprep.subr.mxu0 0.0
    %1552 = vmatpush1.xpose.msra.mxu0 0.0
    %1553 = vmatprep.subr.mxu0 0.0
    %1554 = vmatpush1.xpose.msra.mxu0 0.0
    %1555 = vmatprep.subr.mxu0 0.0
    %1556 = vmatpush1.xpose.msra.mxu0 0.0
    %1557 = vmatprep.subr.mxu0 0.0
    %1558 = vmatpush1.xpose.msra.mxu0 0.0
    %1559 = vmatprep.subr.mxu0 0.0
    %1560 = vmatpush1.xpose.msra.mxu0 0.0
    %1561 = vmatprep.subr.mxu0 0.0
    %1562 = vmatpush1.xpose.msra.mxu0 0.0
    %1563 = vmatprep.subr.mxu0 0.0
    %1564 = vmatpush1.xpose.msra.mxu0 0.0
    %1565 = vmatprep.subr.mxu0 0.0
    %1566 = vmatpush1.xpose.msra.mxu0 0.0
    %1567 = vmatprep.subr.mxu0 0.0
    %1568 = vmatpush1.xpose.msra.mxu0 %v1535
    %1569 = vmatprep.subr.mxu0 0.0
    %1570 = vmatpush2.xpose.msra.mxu0 0.0
    %1571 = vmatprep.subr.mxu0 0.0
    %1572 = vmatpush2.xpose.msra.mxu0 0.0
    %1573 = vmatprep.subr.mxu0 0.0
    %1574 = vmatpush2.xpose.msra.mxu0 0.0
    %1575 = vmatprep.subr.mxu0 0.0
    %1576 = vmatpush2.xpose.msra.mxu0 0.0
    %1577 = vmatprep.subr.mxu0 0.0
    %1578 = vmatpush2.xpose.msra.mxu0 0.0
    %1579 = vmatprep.subr.mxu0 0.0
    %1580 = vmatpush2.xpose.msra.mxu0 0.0
    %1581 = vmatprep.subr.mxu0 0.0
    %1582 = vmatpush2.xpose.msra.mxu0 0.0
    %1583 = vmatprep.subr.mxu0 0.0
    %1584 = vmatpush2.xpose.msra.mxu0 0.0
    %1585 = vmatprep.subr.mxu0 0.0
    %1586 = vmatpush2.xpose.msra.mxu0 0.0
    %1587 = vmatprep.subr.mxu0 0.0
    %1588 = vmatpush2.xpose.msra.mxu0 0.0
    %1589 = vmatprep.subr.mxu0 0.0
    %1590 = vmatpush2.xpose.msra.mxu0 0.0
    %1591 = vmatprep.subr.mxu0 0.0
    %1592 = vmatpush2.xpose.msra.mxu0 0.0
    %1593 = vmatprep.subr.mxu0 0.0
    %1594 = vmatpush2.xpose.msra.mxu0 0.0
    %1595 = vmatprep.subr.mxu0 0.0
    %1596 = vmatpush2.xpose.msra.mxu0 0.0
    %1597 = vmatprep.subr.mxu0 0.0
    %1598 = vmatpush2.xpose.msra.mxu0 0.0
    %1599 = vmatprep.subr.mxu0 0.0
    %1600 = vmatpush2.xpose.msra.mxu0 0.0
    %1601 = vmatprep.mubr.f32.mxu0 0.0
    %1602 = vmatmul.mubr.f32.gmra.mxu0 %v1532
    %v1603 = vpop.f32.mrf.mxu0
    %v1604 = vadd.f32 0.0, %v1603
    %v1605 = vpop.f32.mrf.mxu0
    %1606 = vdwg.mxu0
    %v1607 = vmul.f32 %v1604, 0.17677669
    %v1608 = vlaneseq
    %v1609 = vshrl.u32 %v1608, 7
    %v1610 = vsub.s32 1, %v1609
    %v1611 = vrot.slane %v139, %v1610
    %v1612 = vmul.f32 %v413, %v1611
    %vm1613 = vcmp.gt.f32.partialorder %v1612, 0.0
    %v1614 = vsel %vm1613, %v1607, -10000000.0
    %v1615 = vsel %vm1323, %v1614, -inf
    %v1616 = vrot.slane %v1615, 4
    %v1617 = vmax.f32 %v1615, %v1616
    %v1618 = vrot.slane %v1617, 2
    %v1619 = vmax.f32 %v1617, %v1618
    %v1620 = vrot.slane %v1619, 1
    %v1621 = vmax.f32 %v1619, %v1620
    %v1622 = vsub.f32 %v1614, %v1621
    %v1623 = vmul.f32 %v1622, 1.442695
    %v1624 = vpow.pop %v1623
    %v1625 = vsel %vm1323, %v1624, 0.0
    %v1626 = vrot.slane %v1625, 4
    %v1627 = vadd.f32 %v1625, %v1626
    %v1628 = vrot.slane %v1627, 2
    %v1629 = vadd.f32 %v1627, %v1628
    %v1630 = vrot.slane %v1629, 1
    %v1631 = vadd.f32 %v1629, %v1630
    %v1632 = vrcp.pop %v1631
    %v1633 = vmul.f32 %v1624, %v1632
    %1634 = vmax.xlane.f32.xlu0 %v1615
    %v1635 = vpop.xlane.xlu0 %1634
    %v1636 = vsub.f32 %v1614, %v1635
    %v1637 = vmul.f32 %v1636, 1.442695
    %v1638 = vpow.pop %v1637
    %v1639 = vsel %vm1323, %v1638, 0.0
    %1640 = vadd.xlane.f32.xlu0 %v1639
    %v1641 = vpop.xlane.xlu0 %1640
    %v1642 = vrcp.pop %v1641
    %v1643 = vmul.f32 %v1638, %v1642
    %1644 = vxpose.xlu0.b32.start [1/16] %v1633, 128
    %1645 = vxpose.xlu0.b32.cont [2/16] 0.0, 128
    %1646 = vxpose.xlu0.b32.cont [3/16] 0.0, 128
    %1647 = vxpose.xlu0.b32.cont [4/16] 0.0, 128
    %1648 = vxpose.xlu0.b32.cont [5/16] 0.0, 128
    %1649 = vxpose.xlu0.b32.cont [6/16] 0.0, 128
    %1650 = vxpose.xlu0.b32.cont [7/16] 0.0, 128
    %1651 = vxpose.xlu0.b32.cont [8/16] 0.0, 128
    %1652 = vxpose.xlu0.b32.cont [9/16] 0.0, 128
    %1653 = vxpose.xlu0.b32.cont [10/16] 0.0, 128
    %1654 = vxpose.xlu0.b32.cont [11/16] 0.0, 128
    %1655 = vxpose.xlu0.b32.cont [12/16] 0.0, 128
    %1656 = vxpose.xlu0.b32.cont [13/16] 0.0, 128
    %1657 = vxpose.xlu0.b32.cont [14/16] 0.0, 128
    %1658 = vxpose.xlu0.b32.cont [15/16] 0.0, 128
    %1659 = vxpose.xlu0.b32.end [16/16] 0.0, 128
    %v1660 = vpop.trf.xlu0
    %v1661 = vpop.trf.xlu0
    %v1662 = vpop.trf.xlu0
    %v1663 = vpop.trf.xlu0
    %v1664 = vpop.trf.xlu0
    %v1665 = vpop.trf.xlu0
    %v1666 = vpop.trf.xlu0
    %v1667 = vpop.trf.xlu0
    %v1668 = vpop.trf.xlu0
    %v1669 = vpop.trf.xlu0
    %v1670 = vpop.trf.xlu0
    %v1671 = vpop.trf.xlu0
    %v1672 = vpop.trf.xlu0
    %v1673 = vpop.trf.xlu0
    %v1674 = vpop.trf.xlu0
    %v1675 = vpop.trf.xlu0
    %v1677 = vsel %vm1323, %v1660, 0
    %1679 = vmatprep.subr.mxu0 0.0
    %1680 = vmatpush1.msra.mxu0 0.0
    %1681 = vmatprep.subr.mxu0 0.0
    %1682 = vmatpush1.msra.mxu0 0.0
    %1683 = vmatprep.subr.mxu0 0.0
    %1684 = vmatpush1.msra.mxu0 0.0
    %1685 = vmatprep.subr.mxu0 0.0
    %1686 = vmatpush1.msra.mxu0 0.0
    %1687 = vmatprep.subr.mxu0 0.0
    %1688 = vmatpush1.msra.mxu0 0.0
    %1689 = vmatprep.subr.mxu0 0.0
    %1690 = vmatpush1.msra.mxu0 0.0
    %1691 = vmatprep.subr.mxu0 0.0
    %1692 = vmatpush1.msra.mxu0 0.0
    %1693 = vmatprep.subr.mxu0 0.0
    %1694 = vmatpush1.msra.mxu0 0.0
    %1695 = vmatprep.subr.mxu0 0.0
    %1696 = vmatpush1.msra.mxu0 0.0
    %1697 = vmatprep.subr.mxu0 0.0
    %1698 = vmatpush1.msra.mxu0 0.0
    %1699 = vmatprep.subr.mxu0 0.0
    %1700 = vmatpush1.msra.mxu0 0.0
    %1701 = vmatprep.subr.mxu0 0.0
    %1702 = vmatpush1.msra.mxu0 0.0
    %1703 = vmatprep.subr.mxu0 0.0
    %1704 = vmatpush1.msra.mxu0 0.0
    %1705 = vmatprep.subr.mxu0 0.0
    %1706 = vmatpush1.msra.mxu0 0.0
    %1707 = vmatprep.subr.mxu0 0.0
    %1708 = vmatpush1.msra.mxu0 0.0
    %1709 = vmatprep.subr.mxu0 0.0
    %1710 = vmatpush1.msra.mxu0 %v1024
    %1711 = vmatprep.subr.mxu0 0.0
    %1712 = vmatpush2.msra.mxu0 0.0
    %1713 = vmatprep.subr.mxu0 0.0
    %1714 = vmatpush2.msra.mxu0 0.0
    %1715 = vmatprep.subr.mxu0 0.0
    %1716 = vmatpush2.msra.mxu0 0.0
    %1717 = vmatprep.subr.mxu0 0.0
    %1718 = vmatpush2.msra.mxu0 0.0
    %1719 = vmatprep.subr.mxu0 0.0
    %1720 = vmatpush2.msra.mxu0 0.0
    %1721 = vmatprep.subr.mxu0 0.0
    %1722 = vmatpush2.msra.mxu0 0.0
    %1723 = vmatprep.subr.mxu0 0.0
    %1724 = vmatpush2.msra.mxu0 0.0
    %1725 = vmatprep.subr.mxu0 0.0
    %1726 = vmatpush2.msra.mxu0 0.0
    %1727 = vmatprep.subr.mxu0 0.0
    %1728 = vmatpush2.msra.mxu0 0.0
    %1729 = vmatprep.subr.mxu0 0.0
    %1730 = vmatpush2.msra.mxu0 0.0
    %1731 = vmatprep.subr.mxu0 0.0
    %1732 = vmatpush2.msra.mxu0 0.0
    %1733 = vmatprep.subr.mxu0 0.0
    %1734 = vmatpush2.msra.mxu0 0.0
    %1735 = vmatprep.subr.mxu0 0.0
    %1736 = vmatpush2.msra.mxu0 0.0
    %1737 = vmatprep.subr.mxu0 0.0
    %1738 = vmatpush2.msra.mxu0 0.0
    %1739 = vmatprep.subr.mxu0 0.0
    %1740 = vmatpush2.msra.mxu0 0.0
    %1741 = vmatprep.subr.mxu0 0.0
    %1742 = vmatpush2.msra.mxu0 0.0
    %1743 = vmatprep.mubr.f32.mxu0 0.0
    %1744 = vmatmul.mubr.f32.gmra.mxu0 %v1677
    %v1745 = vpop.f32.mrf.mxu0
    %v1746 = vadd.f32 0.0, %v1745
    %v1747 = vpop.f32.mrf.mxu0
    %1748 = vdwg.mxu0
    %v1750 = vsel %vm1323, %v1643, 0
    %1752 = vmatprep.subr.mxu0 0.0
    %1753 = vmatpush1.msra.mxu0 0.0
    %1754 = vmatprep.subr.mxu0 0.0
    %1755 = vmatpush1.msra.mxu0 0.0
    %1756 = vmatprep.subr.mxu0 0.0
    %1757 = vmatpush1.msra.mxu0 0.0
    %1758 = vmatprep.subr.mxu0 0.0
    %1759 = vmatpush1.msra.mxu0 0.0
    %1760 = vmatprep.subr.mxu0 0.0
    %1761 = vmatpush1.msra.mxu0 0.0
    %1762 = vmatprep.subr.mxu0 0.0
    %1763 = vmatpush1.msra.mxu0 0.0
    %1764 = vmatprep.subr.mxu0 0.0
    %1765 = vmatpush1.msra.mxu0 0.0
    %1766 = vmatprep.subr.mxu0 0.0
    %1767 = vmatpush1.msra.mxu0 0.0
    %1768 = vmatprep.subr.mxu0 0.0
    %1769 = vmatpush1.msra.mxu0 0.0
    %1770 = vmatprep.subr.mxu0 0.0
    %1771 = vmatpush1.msra.mxu0 0.0
    %1772 = vmatprep.subr.mxu0 0.0
    %1773 = vmatpush1.msra.mxu0 0.0
    %1774 = vmatprep.subr.mxu0 0.0
    %1775 = vmatpush1.msra.mxu0 0.0
    %1776 = vmatprep.subr.mxu0 0.0
    %1777 = vmatpush1.msra.mxu0 0.0
    %1778 = vmatprep.subr.mxu0 0.0
    %1779 = vmatpush1.msra.mxu0 0.0
    %1780 = vmatprep.subr.mxu0 0.0
    %1781 = vmatpush1.msra.mxu0 0.0
    %1782 = vmatprep.subr.mxu0 0.0
    %1783 = vmatpush1.msra.mxu0 %v1034
    %1784 = vmatprep.subr.mxu0 0.0
    %1785 = vmatpush2.msra.mxu0 0.0
    %1786 = vmatprep.subr.mxu0 0.0
    %1787 = vmatpush2.msra.mxu0 0.0
    %1788 = vmatprep.subr.mxu0 0.0
    %1789 = vmatpush2.msra.mxu0 0.0
    %1790 = vmatprep.subr.mxu0 0.0
    %1791 = vmatpush2.msra.mxu0 0.0
    %1792 = vmatprep.subr.mxu0 0.0
    %1793 = vmatpush2.msra.mxu0 0.0
    %1794 = vmatprep.subr.mxu0 0.0
    %1795 = vmatpush2.msra.mxu0 0.0
    %1796 = vmatprep.subr.mxu0 0.0
    %1797 = vmatpush2.msra.mxu0 0.0
    %1798 = vmatprep.subr.mxu0 0.0
    %1799 = vmatpush2.msra.mxu0 0.0
    %1800 = vmatprep.subr.mxu0 0.0
    %1801 = vmatpush2.msra.mxu0 0.0
    %1802 = vmatprep.subr.mxu0 0.0
    %1803 = vmatpush2.msra.mxu0 0.0
    %1804 = vmatprep.subr.mxu0 0.0
    %1805 = vmatpush2.msra.mxu0 0.0
    %1806 = vmatprep.subr.mxu0 0.0
    %1807 = vmatpush2.msra.mxu0 0.0
    %1808 = vmatprep.subr.mxu0 0.0
    %1809 = vmatpush2.msra.mxu0 0.0
    %1810 = vmatprep.subr.mxu0 0.0
    %1811 = vmatpush2.msra.mxu0 0.0
    %1812 = vmatprep.subr.mxu0 0.0
    %1813 = vmatpush2.msra.mxu0 0.0
    %1814 = vmatprep.subr.mxu0 0.0
    %1815 = vmatpush2.msra.mxu0 0.0
    %1816 = vmatprep.mubr.f32.mxu0 0.0
    %1817 = vmatmul.mubr.f32.gmra.mxu0 %v1750
    %v1818 = vpop.f32.mrf.mxu0
    %v1819 = vadd.f32 0.0, %v1818
    %v1820 = vpop.f32.mrf.mxu0
    %1821 = vdwg.mxu0
    %1824 = vrot.lane.b32.xlu0 %v1528, 64
    %v1825 = vpop.permute.xlu0 %1824
    %1826 = vrot.lane.b32.xlu0 %v1819, 64
    %v1827 = vpop.permute.xlu0 %1826
    %v1830 = vsel %vm441, %v1023, %v1825
    %v1831 = vsel %vm441, %v1024, %v1827
    %v1832 = vsub.f32 %v1023, %v1528
    %v1833 = vsub.f32 %v1024, %v1819
    %1836 = vrot.lane.b32.xlu0 %v1832, 64
    %v1837 = vpop.permute.xlu0 %1836
    %1838 = vrot.lane.b32.xlu0 %v1833, 64
    %v1839 = vpop.permute.xlu0 %1838
    %v1842 = vsel %vm441, %v1023, %v1837
    %v1843 = vsel %vm441, %v1024, %v1839
    %v1844 = vmul.f32 %v1023, %v1528
    %v1845 = vmul.f32 %v1024, %v1819
    %1848 = vrot.lane.b32.xlu0 %v1844, 64
    %v1849 = vpop.permute.xlu0 %1848
    %1850 = vrot.lane.b32.xlu0 %v1845, 64
    %v1851 = vpop.permute.xlu0 %1850
    %v1854 = vsel %vm441, %v1023, %v1849
    %v1855 = vsel %vm441, %v1024, %v1851
    %v1857 = vlaneseq
    %v1858 = vshrl.u32 %v1857, 7
    %v1859 = vsub.s32 0, %v1858
    %v1860 = vrot.slane %v391, %v1859
    %1862 = vmatprep.subr.mxu0 0.0
    %1863 = vmatpush1.msra.mxu0 %v390
    %1864 = vmatprep.subr.mxu0 0.0
    %1865 = vmatpush1.msra.mxu0 %v389
    %1866 = vmatprep.subr.mxu0 0.0
    %1867 = vmatpush1.msra.mxu0 %v388
    %1868 = vmatprep.subr.mxu0 0.0
    %1869 = vmatpush1.msra.mxu0 %v387
    %1870 = vmatprep.subr.mxu0 0.0
    %1871 = vmatpush1.msra.mxu0 %v386
    %1872 = vmatprep.subr.mxu0 0.0
    %1873 = vmatpush1.msra.mxu0 %v385
    %1874 = vmatprep.subr.mxu0 0.0
    %1875 = vmatpush1.msra.mxu0 %v384
    %1876 = vmatprep.subr.mxu0 0.0
    %1877 = vmatpush1.msra.mxu0 %v383
    %1878 = vmatprep.subr.mxu0 0.0
    %1879 = vmatpush1.msra.mxu0 %v382
    %1880 = vmatprep.subr.mxu0 0.0
    %1881 = vmatpush1.msra.mxu0 %v381
    %1882 = vmatprep.subr.mxu0 0.0
    %1883 = vmatpush1.msra.mxu0 %v380
    %1884 = vmatprep.subr.mxu0 0.0
    %1885 = vmatpush1.msra.mxu0 %v379
    %1886 = vmatprep.subr.mxu0 0.0
    %1887 = vmatpush1.msra.mxu0 %v378
    %1888 = vmatprep.subr.mxu0 0.0
    %1889 = vmatpush1.msra.mxu0 %v377
    %1890 = vmatprep.subr.mxu0 0.0
    %1891 = vmatpush1.msra.mxu0 %v376
    %1892 = vmatprep.subr.mxu0 0.0
    %1893 = vmatpush1.msra.mxu0 %v375
    %1894 = vmatprep.subr.mxu0 0.0
    %1895 = vmatpush2.msra.mxu0 0.0
    %1896 = vmatprep.subr.mxu0 0.0
    %1897 = vmatpush2.msra.mxu0 0.0
    %1898 = vmatprep.subr.mxu0 0.0
    %1899 = vmatpush2.msra.mxu0 0.0
    %1900 = vmatprep.subr.mxu0 0.0
    %1901 = vmatpush2.msra.mxu0 0.0
    %1902 = vmatprep.subr.mxu0 0.0
    %1903 = vmatpush2.msra.mxu0 0.0
    %1904 = vmatprep.subr.mxu0 0.0
    %1905 = vmatpush2.msra.mxu0 0.0
    %1906 = vmatprep.subr.mxu0 0.0
    %1907 = vmatpush2.msra.mxu0 0.0
    %1908 = vmatprep.subr.mxu0 0.0
    %1909 = vmatpush2.msra.mxu0 0.0
    %1910 = vmatprep.subr.mxu0 0.0
    %1911 = vmatpush2.msra.mxu0 0.0
    %1912 = vmatprep.subr.mxu0 0.0
    %1913 = vmatpush2.msra.mxu0 0.0
    %1914 = vmatprep.subr.mxu0 0.0
    %1915 = vmatpush2.msra.mxu0 0.0
    %1916 = vmatprep.subr.mxu0 0.0
    %1917 = vmatpush2.msra.mxu0 0.0
    %1918 = vmatprep.subr.mxu0 0.0
    %1919 = vmatpush2.msra.mxu0 0.0
    %1920 = vmatprep.subr.mxu0 0.0
    %1921 = vmatpush2.msra.mxu0 0.0
    %1922 = vmatprep.subr.mxu0 0.0
    %1923 = vmatpush2.msra.mxu0 0.0
    %1924 = vmatprep.subr.mxu0 0.0
    %1925 = vmatpush2.msra.mxu0 0.0
    %1926 = vmatprep.mubr.f32.mxu0 0.0
    %1927 = vmatmul.mubr.f32.gmra.mxu0 %v1830
    %v1928 = vpop.f32.mrf.mxu0
    %v1929 = vadd.f32 %v1860, %v1928
    %v1930 = vpop.f32.mrf.mxu0
    %1931 = vmatprep.mubr.f32.mxu0 0.0
    %1932 = vmatmul.mubr.f32.gmra.mxu0 %v1831
    %v1933 = vpop.f32.mrf.mxu0
    %v1934 = vadd.f32 %v1860, %v1933
    %v1935 = vpop.f32.mrf.mxu0
    %1936 = vmatprep.mubr.f32.mxu0 0.0
    %1937 = vmatmul.mubr.f32.gmra.mxu0 %v1842
    %v1938 = vpop.f32.mrf.mxu0
    %v1939 = vadd.f32 %v1860, %v1938
    %v1940 = vpop.f32.mrf.mxu0
    %1941 = vmatprep.mubr.f32.mxu0 0.0
    %1942 = vmatmul.mubr.f32.gmra.mxu0 %v1843
    %v1943 = vpop.f32.mrf.mxu0
    %v1944 = vadd.f32 %v1860, %v1943
    %v1945 = vpop.f32.mrf.mxu0
    %1946 = vmatprep.mubr.f32.mxu0 0.0
    %1947 = vmatmul.mubr.f32.gmra.mxu0 %v1854
    %v1948 = vpop.f32.mrf.mxu0
    %v1949 = vadd.f32 %v1860, %v1948
    %v1950 = vpop.f32.mrf.mxu0
    %1951 = vmatprep.mubr.f32.mxu0 0.0
    %1952 = vmatmul.mubr.f32.gmra.mxu0 %v1855
    %v1953 = vpop.f32.mrf.mxu0
    %v1954 = vadd.f32 %v1860, %v1953
    %v1955 = vpop.f32.mrf.mxu0
    %1956 = vdwg.mxu0
    %v1957 = vmul.f32 %v1929, 0.5
    %v1958 = vmul.f32 %v1934, 0.5
    %v1959 = vmul.f32 %v1939, 0.5
    %v1960 = vmul.f32 %v1944, 0.5
    %v1961 = vmul.f32 %v1949, 0.5
    %v1962 = vmul.f32 %v1954, 0.5
    %v1963 = vmul.f32 %v1929, 0.7978846
    %v1964 = vmul.f32 %v1934, 0.7978846
    %v1965 = vmul.f32 %v1939, 0.7978846
    %v1966 = vmul.f32 %v1944, 0.7978846
    %v1967 = vmul.f32 %v1949, 0.7978846
    %v1968 = vmul.f32 %v1954, 0.7978846
    %v1969 = vmul.f32 %v1929, 0.044715
    %v1970 = vmul.f32 %v1934, 0.044715
    %v1971 = vmul.f32 %v1939, 0.044715
    %v1972 = vmul.f32 %v1944, 0.044715
    %v1973 = vmul.f32 %v1949, 0.044715
    %v1974 = vmul.f32 %v1954, 0.044715
    %v1975 = vmul.f32 %v1969, %v1929
    %v1976 = vmul.f32 %v1970, %v1934
    %v1977 = vmul.f32 %v1971, %v1939
    %v1978 = vmul.f32 %v1972, %v1944
    %v1979 = vmul.f32 %v1973, %v1949
    %v1980 = vmul.f32 %v1974, %v1954
    %v1981 = vadd.f32 %v1975, 1.0
    %v1982 = vadd.f32 %v1976, 1.0
    %v1983 = vadd.f32 %v1977, 1.0
    %v1984 = vadd.f32 %v1978, 1.0
    %v1985 = vadd.f32 %v1979, 1.0
    %v1986 = vadd.f32 %v1980, 1.0
    %v1987 = vmul.f32 %v1963, %v1981
    %v1988 = vmul.f32 %v1964, %v1982
    %v1989 = vmul.f32 %v1965, %v1983
    %v1990 = vmul.f32 %v1966, %v1984
    %v1991 = vmul.f32 %v1967, %v1985
    %v1992 = vmul.f32 %v1968, %v1986
    %v1993 = vtanh.pop %v1987
    %v1994 = vtanh.pop %v1988
    %v1995 = vtanh.pop %v1989
    %v1996 = vtanh.pop %v1990
    %v1997 = vtanh.pop %v1991
    %v1998 = vtanh.pop %v1992
    %v1999 = vadd.f32 %v1993, 1.0
    %v2000 = vadd.f32 %v1994, 1.0
    %v2001 = vadd.f32 %v1995, 1.0
    %v2002 = vadd.f32 %v1996, 1.0
    %v2003 = vadd.f32 %v1997, 1.0
    %v2004 = vadd.f32 %v1998, 1.0
    %v2005 = vmul.f32 %v1957, %v1999
    %v2006 = vmul.f32 %v1958, %v2000
    %v2007 = vmul.f32 %v1959, %v2001
    %v2008 = vmul.f32 %v1960, %v2002
    %v2009 = vmul.f32 %v1961, %v2003
    %v2010 = vmul.f32 %v1962, %v2004
    %2013 = vrot.lane.b32.xlu0 %v2007, 32
    %v2014 = vpop.permute.xlu0 %2013
    %2015 = vrot.lane.b32.xlu0 %v2008, 32
    %v2016 = vpop.permute.xlu0 %2015
    %2021 = vrot.lane.b32.xlu0 %v2009, 64
    %v2022 = vpop.permute.xlu0 %2021
    %2023 = vrot.lane.b32.xlu0 %v2010, 64
    %v2024 = vpop.permute.xlu0 %2023
    %v2027 = vsel %vm439, %v2005, %v2014
    %v2028 = vsel %vm439, %v2006, %v2016
    %v2029 = vsel %vm441, %v2027, %v2022
    %v2030 = vsel %vm441, %v2028, %v2024
    %v2032 = vlaneseq
    %v2033 = vshrl.u32 %v2032, 7
    %v2034 = vsub.s32 0, %v2033
    %v2035 = vrot.slane %v404, %v2034
    %v2038 = vsel %vm470, %v2029, 0
    %v2041 = vsel %vm470, %v2030, 0
    %2043 = vmatprep.subr.mxu0 0.0
    %2044 = vmatpush1.msra.mxu0 0.0
    %2045 = vmatprep.subr.mxu0 0.0
    %2046 = vmatpush1.msra.mxu0 0.0
    %2047 = vmatprep.subr.mxu0 0.0
    %2048 = vmatpush1.msra.mxu0 0.0
    %2049 = vmatprep.subr.mxu0 0.0
    %2050 = vmatpush1.msra.mxu0 0.0
    %2051 = vmatprep.subr.mxu0 0.0
    %2052 = vmatpush1.msra.mxu0 %v403
    %2053 = vmatprep.subr.mxu0 0.0
    %2054 = vmatpush1.msra.mxu0 %v402
    %2055 = vmatprep.subr.mxu0 0.0
    %2056 = vmatpush1.msra.mxu0 %v401
    %2057 = vmatprep.subr.mxu0 0.0
    %2058 = vmatpush1.msra.mxu0 %v400
    %2059 = vmatprep.subr.mxu0 0.0
    %2060 = vmatpush1.msra.mxu0 %v399
    %2061 = vmatprep.subr.mxu0 0.0
    %2062 = vmatpush1.msra.mxu0 %v398
    %2063 = vmatprep.subr.mxu0 0.0
    %2064 = vmatpush1.msra.mxu0 %v397
    %2065 = vmatprep.subr.mxu0 0.0
    %2066 = vmatpush1.msra.mxu0 %v396
    %2067 = vmatprep.subr.mxu0 0.0
    %2068 = vmatpush1.msra.mxu0 %v395
    %2069 = vmatprep.subr.mxu0 0.0
    %2070 = vmatpush1.msra.mxu0 %v394
    %2071 = vmatprep.subr.mxu0 0.0
    %2072 = vmatpush1.msra.mxu0 %v393
    %2073 = vmatprep.subr.mxu0 0.0
    %2074 = vmatpush1.msra.mxu0 %v392
    %2075 = vmatprep.subr.mxu0 0.0
    %2076 = vmatpush2.msra.mxu0 0.0
    %2077 = vmatprep.subr.mxu0 0.0
    %2078 = vmatpush2.msra.mxu0 0.0
    %2079 = vmatprep.subr.mxu0 0.0
    %2080 = vmatpush2.msra.mxu0 0.0
    %2081 = vmatprep.subr.mxu0 0.0
    %2082 = vmatpush2.msra.mxu0 0.0
    %2083 = vmatprep.subr.mxu0 0.0
    %2084 = vmatpush2.msra.mxu0 0.0
    %2085 = vmatprep.subr.mxu0 0.0
    %2086 = vmatpush2.msra.mxu0 0.0
    %2087 = vmatprep.subr.mxu0 0.0
    %2088 = vmatpush2.msra.mxu0 0.0
    %2089 = vmatprep.subr.mxu0 0.0
    %2090 = vmatpush2.msra.mxu0 0.0
    %2091 = vmatprep.subr.mxu0 0.0
    %2092 = vmatpush2.msra.mxu0 0.0
    %2093 = vmatprep.subr.mxu0 0.0
    %2094 = vmatpush2.msra.mxu0 0.0
    %2095 = vmatprep.subr.mxu0 0.0
    %2096 = vmatpush2.msra.mxu0 0.0
    %2097 = vmatprep.subr.mxu0 0.0
    %2098 = vmatpush2.msra.mxu0 0.0
    %2099 = vmatprep.subr.mxu0 0.0
    %2100 = vmatpush2.msra.mxu0 0.0
    %2101 = vmatprep.subr.mxu0 0.0
    %2102 = vmatpush2.msra.mxu0 0.0
    %2103 = vmatprep.subr.mxu0 0.0
    %2104 = vmatpush2.msra.mxu0 0.0
    %2105 = vmatprep.subr.mxu0 0.0
    %2106 = vmatpush2.msra.mxu0 0.0
    %2107 = vmatprep.mubr.f32.mxu0 0.0
    %2108 = vmatmul.mubr.f32.gmra.mxu0 %v2038
    %v2109 = vpop.f32.mrf.mxu0
    %v2110 = vadd.f32 %v2035, %v2109
    %v2111 = vpop.f32.mrf.mxu0
    %2112 = vmatprep.mubr.f32.mxu0 0.0
    %2113 = vmatmul.mubr.f32.gmra.mxu0 %v2041
    %v2114 = vpop.f32.mrf.mxu0
    %v2115 = vadd.f32 %v2035, %v2114
    %v2116 = vpop.f32.mrf.mxu0
    %2117 = vdwg.mxu0
    %v2118 = vmul.f32 %v2110, 0.5
    %v2119 = vmul.f32 %v2115, 0.5
    %v2120 = vmul.f32 %v2110, 0.7978846
    %v2121 = vmul.f32 %v2115, 0.7978846
    %v2122 = vmul.f32 %v2110, 0.044715
    %v2123 = vmul.f32 %v2115, 0.044715
    %v2124 = vmul.f32 %v2122, %v2110
    %v2125 = vmul.f32 %v2123, %v2115
    %v2126 = vadd.f32 %v2124, 1.0
    %v2127 = vadd.f32 %v2125, 1.0
    %v2128 = vmul.f32 %v2120, %v2126
    %v2129 = vmul.f32 %v2121, %v2127
    %v2130 = vtanh.pop %v2128
    %v2131 = vtanh.pop %v2129
    %v2132 = vadd.f32 %v2130, 1.0
    %v2133 = vadd.f32 %v2131, 1.0
    %v2134 = vmul.f32 %v2118, %v2132
    %v2135 = vmul.f32 %v2119, %v2133
    %2138 = vrot.lane.b32.xlu0 %v1455, 64
    %v2139 = vpop.permute.xlu0 %2138
    %2140 = vrot.lane.b32.xlu0 %v1746, 64
    %v2141 = vpop.permute.xlu0 %2140
    %v2144 = vsel %vm441, %v1033, %v2139
    %v2145 = vsel %vm441, %v1034, %v2141
    %v2146 = vsub.f32 %v1033, %v1455
    %v2147 = vsub.f32 %v1034, %v1746
    %2150 = vrot.lane.b32.xlu0 %v2146, 64
    %v2151 = vpop.permute.xlu0 %2150
    %2152 = vrot.lane.b32.xlu0 %v2147, 64
    %v2153 = vpop.permute.xlu0 %2152
    %v2156 = vsel %vm441, %v1033, %v2151
    %v2157 = vsel %vm441, %v1034, %v2153
    %v2158 = vmul.f32 %v1033, %v1455
    %v2159 = vmul.f32 %v1034, %v1746
    %2162 = vrot.lane.b32.xlu0 %v2158, 64
    %v2163 = vpop.permute.xlu0 %2162
    %2164 = vrot.lane.b32.xlu0 %v2159, 64
    %v2165 = vpop.permute.xlu0 %2164
    %v2168 = vsel %vm441, %v1033, %v2163
    %v2169 = vsel %vm441, %v1034, %v2165
    %2170 = vmatprep.subr.mxu0 0.0
    %2171 = vmatpush1.msra.mxu0 %v390
    %2172 = vmatprep.subr.mxu0 0.0
    %2173 = vmatpush1.msra.mxu0 %v389
    %2174 = vmatprep.subr.mxu0 0.0
    %2175 = vmatpush1.msra.mxu0 %v388
    %2176 = vmatprep.subr.mxu0 0.0
    %2177 = vmatpush1.msra.mxu0 %v387
    %2178 = vmatprep.subr.mxu0 0.0
    %2179 = vmatpush1.msra.mxu0 %v386
    %2180 = vmatprep.subr.mxu0 0.0
    %2181 = vmatpush1.msra.mxu0 %v385
    %2182 = vmatprep.subr.mxu0 0.0
    %2183 = vmatpush1.msra.mxu0 %v384
    %2184 = vmatprep.subr.mxu0 0.0
    %2185 = vmatpush1.msra.mxu0 %v383
    %2186 = vmatprep.subr.mxu0 0.0
    %2187 = vmatpush1.msra.mxu0 %v382
    %2188 = vmatprep.subr.mxu0 0.0
    %2189 = vmatpush1.msra.mxu0 %v381
    %2190 = vmatprep.subr.mxu0 0.0
    %2191 = vmatpush1.msra.mxu0 %v380
    %2192 = vmatprep.subr.mxu0 0.0
    %2193 = vmatpush1.msra.mxu0 %v379
    %2194 = vmatprep.subr.mxu0 0.0
    %2195 = vmatpush1.msra.mxu0 %v378
    %2196 = vmatprep.subr.mxu0 0.0
    %2197 = vmatpush1.msra.mxu0 %v377
    %2198 = vmatprep.subr.mxu0 0.0
    %2199 = vmatpush1.msra.mxu0 %v376
    %2200 = vmatprep.subr.mxu0 0.0
    %2201 = vmatpush1.msra.mxu0 %v375
    %2202 = vmatprep.subr.mxu0 0.0
    %2203 = vmatpush2.msra.mxu0 0.0
    %2204 = vmatprep.subr.mxu0 0.0
    %2205 = vmatpush2.msra.mxu0 0.0
    %2206 = vmatprep.subr.mxu0 0.0
    %2207 = vmatpush2.msra.mxu0 0.0
    %2208 = vmatprep.subr.mxu0 0.0
    %2209 = vmatpush2.msra.mxu0 0.0
    %2210 = vmatprep.subr.mxu0 0.0
    %2211 = vmatpush2.msra.mxu0 0.0
    %2212 = vmatprep.subr.mxu0 0.0
    %2213 = vmatpush2.msra.mxu0 0.0
    %2214 = vmatprep.subr.mxu0 0.0
    %2215 = vmatpush2.msra.mxu0 0.0
    %2216 = vmatprep.subr.mxu0 0.0
    %2217 = vmatpush2.msra.mxu0 0.0
    %2218 = vmatprep.subr.mxu0 0.0
    %2219 = vmatpush2.msra.mxu0 0.0
    %2220 = vmatprep.subr.mxu0 0.0
    %2221 = vmatpush2.msra.mxu0 0.0
    %2222 = vmatprep.subr.mxu0 0.0
    %2223 = vmatpush2.msra.mxu0 0.0
    %2224 = vmatprep.subr.mxu0 0.0
    %2225 = vmatpush2.msra.mxu0 0.0
    %2226 = vmatprep.subr.mxu0 0.0
    %2227 = vmatpush2.msra.mxu0 0.0
    %2228 = vmatprep.subr.mxu0 0.0
    %2229 = vmatpush2.msra.mxu0 0.0
    %2230 = vmatprep.subr.mxu0 0.0
    %2231 = vmatpush2.msra.mxu0 0.0
    %2232 = vmatprep.subr.mxu0 0.0
    %2233 = vmatpush2.msra.mxu0 0.0
    %2234 = vmatprep.mubr.f32.mxu0 0.0
    %2235 = vmatmul.mubr.f32.gmra.mxu0 %v2144
    %v2236 = vpop.f32.mrf.mxu0
    %v2237 = vadd.f32 %v1860, %v2236
    %v2238 = vpop.f32.mrf.mxu0
    %2239 = vmatprep.mubr.f32.mxu0 0.0
    %2240 = vmatmul.mubr.f32.gmra.mxu0 %v2145
    %v2241 = vpop.f32.mrf.mxu0
    %v2242 = vadd.f32 %v1860, %v2241
    %v2243 = vpop.f32.mrf.mxu0
    %2244 = vmatprep.mubr.f32.mxu0 0.0
    %2245 = vmatmul.mubr.f32.gmra.mxu0 %v2156
    %v2246 = vpop.f32.mrf.mxu0
    %v2247 = vadd.f32 %v1860, %v2246
    %v2248 = vpop.f32.mrf.mxu0
    %2249 = vmatprep.mubr.f32.mxu0 0.0
    %2250 = vmatmul.mubr.f32.gmra.mxu0 %v2157
    %v2251 = vpop.f32.mrf.mxu0
    %v2252 = vadd.f32 %v1860, %v2251
    %v2253 = vpop.f32.mrf.mxu0
    %2254 = vmatprep.mubr.f32.mxu0 0.0
    %2255 = vmatmul.mubr.f32.gmra.mxu0 %v2168
    %v2256 = vpop.f32.mrf.mxu0
    %v2257 = vadd.f32 %v1860, %v2256
    %v2258 = vpop.f32.mrf.mxu0
    %2259 = vmatprep.mubr.f32.mxu0 0.0
    %2260 = vmatmul.mubr.f32.gmra.mxu0 %v2169
    %v2261 = vpop.f32.mrf.mxu0
    %v2262 = vadd.f32 %v1860, %v2261
    %v2263 = vpop.f32.mrf.mxu0
    %2264 = vdwg.mxu0
    %v2265 = vmul.f32 %v2237, 0.5
    %v2266 = vmul.f32 %v2242, 0.5
    %v2267 = vmul.f32 %v2247, 0.5
    %v2268 = vmul.f32 %v2252, 0.5
    %v2269 = vmul.f32 %v2257, 0.5
    %v2270 = vmul.f32 %v2262, 0.5
    %v2271 = vmul.f32 %v2237, 0.7978846
    %v2272 = vmul.f32 %v2242, 0.7978846
    %v2273 = vmul.f32 %v2247, 0.7978846
    %v2274 = vmul.f32 %v2252, 0.7978846
    %v2275 = vmul.f32 %v2257, 0.7978846
    %v2276 = vmul.f32 %v2262, 0.7978846
    %v2277 = vmul.f32 %v2237, 0.044715
    %v2278 = vmul.f32 %v2242, 0.044715
    %v2279 = vmul.f32 %v2247, 0.044715
    %v2280 = vmul.f32 %v2252, 0.044715
    %v2281 = vmul.f32 %v2257, 0.044715
    %v2282 = vmul.f32 %v2262, 0.044715
    %v2283 = vmul.f32 %v2277, %v2237
    %v2284 = vmul.f32 %v2278, %v2242
    %v2285 = vmul.f32 %v2279, %v2247
    %v2286 = vmul.f32 %v2280, %v2252
    %v2287 = vmul.f32 %v2281, %v2257
    %v2288 = vmul.f32 %v2282, %v2262
    %v2289 = vadd.f32 %v2283, 1.0
    %v2290 = vadd.f32 %v2284, 1.0
    %v2291 = vadd.f32 %v2285, 1.0
    %v2292 = vadd.f32 %v2286, 1.0
    %v2293 = vadd.f32 %v2287, 1.0
    %v2294 = vadd.f32 %v2288, 1.0
    %v2295 = vmul.f32 %v2271, %v2289
    %v2296 = vmul.f32 %v2272, %v2290
    %v2297 = vmul.f32 %v2273, %v2291
    %v2298 = vmul.f32 %v2274, %v2292
    %v2299 = vmul.f32 %v2275, %v2293
    %v2300 = vmul.f32 %v2276, %v2294
    %v2301 = vtanh.pop %v2295
    %v2302 = vtanh.pop %v2296
    %v2303 = vtanh.pop %v2297
    %v2304 = vtanh.pop %v2298
    %v2305 = vtanh.pop %v2299
    %v2306 = vtanh.pop %v2300
    %v2307 = vadd.f32 %v2301, 1.0
    %v2308 = vadd.f32 %v2302, 1.0
    %v2309 = vadd.f32 %v2303, 1.0
    %v2310 = vadd.f32 %v2304, 1.0
    %v2311 = vadd.f32 %v2305, 1.0
    %v2312 = vadd.f32 %v2306, 1.0
    %v2313 = vmul.f32 %v2265, %v2307
    %v2314 = vmul.f32 %v2266, %v2308
    %v2315 = vmul.f32 %v2267, %v2309
    %v2316 = vmul.f32 %v2268, %v2310
    %v2317 = vmul.f32 %v2269, %v2311
    %v2318 = vmul.f32 %v2270, %v2312
    %2321 = vrot.lane.b32.xlu0 %v2315, 32
    %v2322 = vpop.permute.xlu0 %2321
    %2323 = vrot.lane.b32.xlu0 %v2316, 32
    %v2324 = vpop.permute.xlu0 %2323
    %2329 = vrot.lane.b32.xlu0 %v2317, 64
    %v2330 = vpop.permute.xlu0 %2329
    %2331 = vrot.lane.b32.xlu0 %v2318, 64
    %v2332 = vpop.permute.xlu0 %2331
    %v2335 = vsel %vm439, %v2313, %v2322
    %v2336 = vsel %vm439, %v2314, %v2324
    %v2337 = vsel %vm441, %v2335, %v2330
    %v2338 = vsel %vm441, %v2336, %v2332
    %v2340 = vsel %vm470, %v2337, 0
    %v2343 = vsel %vm470, %v2338, 0
    %2345 = vmatprep.subr.mxu0 0.0
    %2346 = vmatpush1.msra.mxu0 0.0
    %2347 = vmatprep.subr.mxu0 0.0
    %2348 = vmatpush1.msra.mxu0 0.0
    %2349 = vmatprep.subr.mxu0 0.0
    %2350 = vmatpush1.msra.mxu0 0.0
    %2351 = vmatprep.subr.mxu0 0.0
    %2352 = vmatpush1.msra.mxu0 0.0
    %2353 = vmatprep.subr.mxu0 0.0
    %2354 = vmatpush1.msra.mxu0 %v403
    %2355 = vmatprep.subr.mxu0 0.0
    %2356 = vmatpush1.msra.mxu0 %v402
    %2357 = vmatprep.subr.mxu0 0.0
    %2358 = vmatpush1.msra.mxu0 %v401
    %2359 = vmatprep.subr.mxu0 0.0
    %2360 = vmatpush1.msra.mxu0 %v400
    %2361 = vmatprep.subr.mxu0 0.0
    %2362 = vmatpush1.msra.mxu0 %v399
    %2363 = vmatprep.subr.mxu0 0.0
    %2364 = vmatpush1.msra.mxu0 %v398
    %2365 = vmatprep.subr.mxu0 0.0
    %2366 = vmatpush1.msra.mxu0 %v397
    %2367 = vmatprep.subr.mxu0 0.0
    %2368 = vmatpush1.msra.mxu0 %v396
    %2369 = vmatprep.subr.mxu0 0.0
    %2370 = vmatpush1.msra.mxu0 %v395
    %2371 = vmatprep.subr.mxu0 0.0
    %2372 = vmatpush1.msra.mxu0 %v394
    %2373 = vmatprep.subr.mxu0 0.0
    %2374 = vmatpush1.msra.mxu0 %v393
    %2375 = vmatprep.subr.mxu0 0.0
    %2376 = vmatpush1.msra.mxu0 %v392
    %2377 = vmatprep.subr.mxu0 0.0
    %2378 = vmatpush2.msra.mxu0 0.0
    %2379 = vmatprep.subr.mxu0 0.0
    %2380 = vmatpush2.msra.mxu0 0.0
    %2381 = vmatprep.subr.mxu0 0.0
    %2382 = vmatpush2.msra.mxu0 0.0
    %2383 = vmatprep.subr.mxu0 0.0
    %2384 = vmatpush2.msra.mxu0 0.0
    %2385 = vmatprep.subr.mxu0 0.0
    %2386 = vmatpush2.msra.mxu0 0.0
    %2387 = vmatprep.subr.mxu0 0.0
    %2388 = vmatpush2.msra.mxu0 0.0
    %2389 = vmatprep.subr.mxu0 0.0
    %2390 = vmatpush2.msra.mxu0 0.0
    %2391 = vmatprep.subr.mxu0 0.0
    %2392 = vmatpush2.msra.mxu0 0.0
    %2393 = vmatprep.subr.mxu0 0.0
    %2394 = vmatpush2.msra.mxu0 0.0
    %2395 = vmatprep.subr.mxu0 0.0
    %2396 = vmatpush2.msra.mxu0 0.0
    %2397 = vmatprep.subr.mxu0 0.0
    %2398 = vmatpush2.msra.mxu0 0.0
    %2399 = vmatprep.subr.mxu0 0.0
    %2400 = vmatpush2.msra.mxu0 0.0
    %2401 = vmatprep.subr.mxu0 0.0
    %2402 = vmatpush2.msra.mxu0 0.0
    %2403 = vmatprep.subr.mxu0 0.0
    %2404 = vmatpush2.msra.mxu0 0.0
    %2405 = vmatprep.subr.mxu0 0.0
    %2406 = vmatpush2.msra.mxu0 0.0
    %2407 = vmatprep.subr.mxu0 0.0
    %2408 = vmatpush2.msra.mxu0 0.0
    %2409 = vmatprep.mubr.f32.mxu0 0.0
    %2410 = vmatmul.mubr.f32.gmra.mxu0 %v2340
    %v2411 = vpop.f32.mrf.mxu0
    %v2412 = vadd.f32 %v2035, %v2411
    %v2413 = vpop.f32.mrf.mxu0
    %2414 = vmatprep.mubr.f32.mxu0 0.0
    %2415 = vmatmul.mubr.f32.gmra.mxu0 %v2343
    %v2416 = vpop.f32.mrf.mxu0
    %v2417 = vadd.f32 %v2035, %v2416
    %v2418 = vpop.f32.mrf.mxu0
    %2419 = vdwg.mxu0
    %v2420 = vmul.f32 %v2412, 0.5
    %v2421 = vmul.f32 %v2417, 0.5
    %v2422 = vmul.f32 %v2412, 0.7978846
    %v2423 = vmul.f32 %v2417, 0.7978846
    %v2424 = vmul.f32 %v2412, 0.044715
    %v2425 = vmul.f32 %v2417, 0.044715
    %v2426 = vmul.f32 %v2424, %v2412
    %v2427 = vmul.f32 %v2425, %v2417
    %v2428 = vadd.f32 %v2426, 1.0
    %v2429 = vadd.f32 %v2427, 1.0
    %v2430 = vmul.f32 %v2422, %v2428
    %v2431 = vmul.f32 %v2423, %v2429
    %v2432 = vtanh.pop %v2430
    %v2433 = vtanh.pop %v2431
    %v2434 = vadd.f32 %v2432, 1.0
    %v2435 = vadd.f32 %v2433, 1.0
    %v2436 = vmul.f32 %v2420, %v2434
    %v2437 = vmul.f32 %v2421, %v2435
    %v2438 = vld [vmem:[%s35] sm:$0xff]
    %v2439 = vld [vmem:[%s35 + $0x8] sm:$0xff]
    %v2440 = vld [vmem:[%s35 + $0x10] sm:$0xff]
    %v2441 = vld [vmem:[%s35 + $0x18] sm:$0xff]
    %v2442 = vld [vmem:[%s35 + $0x20] sm:$0xff]
    %v2443 = vld [vmem:[%s35 + $0x28] sm:$0xff]
    %v2444 = vld [vmem:[%s35 + $0x30] sm:$0xff]
    %v2445 = vld [vmem:[%s35 + $0x38] sm:$0xff]
    %v2446 = vld [vmem:[%s35 + $0x40] sm:$0xff]
    %v2447 = vld [vmem:[%s35 + $0x48] sm:$0xff]
    %v2448 = vld [vmem:[%s35 + $0x50] sm:$0xff]
    %v2449 = vld [vmem:[%s35 + $0x58] sm:$0xff]
    %v2450 = vld [vmem:[%s35 + $0x60] sm:$0xff]
    %v2451 = vld [vmem:[%s35 + $0x68] sm:$0xff]
    %v2452 = vld [vmem:[%s35 + $0x70] sm:$0xff]
    %v2453 = vld [vmem:[%s35 + $0x78] sm:$0xff]
    %v2454 = vld [vmem:[%s35 + $0x80] sm:$0xff]
    %v2455 = vld [vmem:[%s35 + $0x88] sm:$0xff]
    %v2456 = vld [vmem:[%s35 + $0x90] sm:$0xff]
    %v2457 = vld [vmem:[%s35 + $0x98] sm:$0xff]
    %v2458 = vld [vmem:[%s35 + $0xa0] sm:$0xff]
    %v2459 = vld [vmem:[%s35 + $0xa8] sm:$0xff]
    %v2460 = vld [vmem:[%s35 + $0xb0] sm:$0xff]
    %v2461 = vld [vmem:[%s35 + $0xb8] sm:$0xff]
    %v2462 = vld [vmem:[%s37] sm:$0x1]
    %v2463 = vld [vmem:[%s39] sm:$0xff]
    %v2464 = vld [vmem:[%s39 + $0x8] sm:$0xff]
    %v2465 = vld [vmem:[%s39 + $0x10] sm:$0xff]
    %v2466 = vld [vmem:[%s39 + $0x18] sm:$0xff]
    %v2467 = vld [vmem:[%s39 + $0x20] sm:$0xff]
    %v2468 = vld [vmem:[%s39 + $0x28] sm:$0xff]
    %v2469 = vld [vmem:[%s39 + $0x30] sm:$0xff]
    %v2470 = vld [vmem:[%s39 + $0x38] sm:$0xff]
    %v2471 = vld [vmem:[%s39 + $0x40] sm:$0xff]
    %v2472 = vld [vmem:[%s39 + $0x48] sm:$0xff]
    %v2473 = vld [vmem:[%s39 + $0x50] sm:$0xff]
    %v2474 = vld [vmem:[%s39 + $0x58] sm:$0xff]
    %v2475 = vld [vmem:[%s41] sm:$0x1]
    %v2476 = vld [vmem:[%s43] sm:$0xff]
    %v2477 = vld [vmem:[%s43 + $0x8] sm:$0xff]
    %v2478 = vld [vmem:[%s43 + $0x10] sm:$0xff]
    %v2479 = vld [vmem:[%s43 + $0x18] sm:$0xff]
    %v2480 = vld [vmem:[%s43 + $0x20] sm:$0xff]
    %v2481 = vld [vmem:[%s43 + $0x28] sm:$0xff]
    %v2482 = vld [vmem:[%s43 + $0x30] sm:$0xff]
    %v2483 = vld [vmem:[%s43 + $0x38] sm:$0xff]
    %v2484 = vld [vmem:[%s43 + $0x40] sm:$0xff]
    %v2485 = vld [vmem:[%s43 + $0x48] sm:$0xff]
    %v2486 = vld [vmem:[%s43 + $0x50] sm:$0xff]
    %v2487 = vld [vmem:[%s43 + $0x58] sm:$0xff]
    %v2488 = vld [vmem:[%s45] sm:$0x1]
    %v2489 = vld [vmem:[%s47] sm:$0xff]
    %v2490 = vld [vmem:[%s47 + $0x8] sm:$0xff]
    %v2491 = vld [vmem:[%s47 + $0x10] sm:$0xff]
    %v2492 = vld [vmem:[%s47 + $0x18] sm:$0xff]
    %v2493 = vld [vmem:[%s47 + $0x20] sm:$0xff]
    %v2494 = vld [vmem:[%s47 + $0x28] sm:$0xff]
    %v2495 = vld [vmem:[%s47 + $0x30] sm:$0xff]
    %v2496 = vld [vmem:[%s47 + $0x38] sm:$0xff]
    %v2497 = vld [vmem:[%s47 + $0x40] sm:$0xff]
    %v2498 = vld [vmem:[%s47 + $0x48] sm:$0xff]
    %v2499 = vld [vmem:[%s47 + $0x50] sm:$0xff]
    %v2500 = vld [vmem:[%s47 + $0x58] sm:$0xff]
    %v2501 = vld [vmem:[%s47 + $0x60] sm:$0xff]
    %v2502 = vld [vmem:[%s47 + $0x68] sm:$0xff]
    %v2503 = vld [vmem:[%s47 + $0x70] sm:$0xff]
    %v2504 = vld [vmem:[%s47 + $0x78] sm:$0xff]
    %v2505 = vld [vmem:[%s47 + $0x80] sm:$0xff]
    %v2506 = vld [vmem:[%s47 + $0x88] sm:$0xff]
    %v2507 = vld [vmem:[%s47 + $0x90] sm:$0xff]
    %v2508 = vld [vmem:[%s47 + $0x98] sm:$0xff]
    %v2509 = vld [vmem:[%s47 + $0xa0] sm:$0xff]
    %v2510 = vld [vmem:[%s47 + $0xa8] sm:$0xff]
    %v2511 = vld [vmem:[%s47 + $0xb0] sm:$0xff]
    %v2512 = vld [vmem:[%s47 + $0xb8] sm:$0xff]
    %v2513 = vld [vmem:[%s49] sm:$0x1]
    %v2514 = vld [vmem:[%s51] sm:$0xff]
    %v2515 = vld [vmem:[%s51 + $0x8] sm:$0xff]
    %v2516 = vld [vmem:[%s51 + $0x10] sm:$0xff]
    %v2517 = vld [vmem:[%s51 + $0x18] sm:$0xff]
    %v2518 = vld [vmem:[%s51 + $0x20] sm:$0xff]
    %v2519 = vld [vmem:[%s51 + $0x28] sm:$0xff]
    %v2520 = vld [vmem:[%s51 + $0x30] sm:$0xff]
    %v2521 = vld [vmem:[%s51 + $0x38] sm:$0xff]
    %v2522 = vld [vmem:[%s51 + $0x40] sm:$0xff]
    %v2523 = vld [vmem:[%s51 + $0x48] sm:$0xff]
    %v2524 = vld [vmem:[%s51 + $0x50] sm:$0xff]
    %v2525 = vld [vmem:[%s51 + $0x58] sm:$0xff]
    %v2526 = vld [vmem:[%s53] sm:$0x1]
    %2529 = vrot.lane.b32.xlu0 %v239, 32
    %v2530 = vpop.permute.xlu0 %2529
    %2531 = vrot.lane.b32.xlu0 %v244, 32
    %v2532 = vpop.permute.xlu0 %2531
    %v2535 = vsel %vm439, %v2134, %v2530
    %v2536 = vsel %vm439, %v2135, %v2532
    %2539 = vrot.lane.b32.xlu0 %v332, 32
    %v2540 = vpop.permute.xlu0 %2539
    %2541 = vrot.lane.b32.xlu0 %v337, 32
    %v2542 = vpop.permute.xlu0 %2541
    %v2545 = vsel %vm439, %v2436, %v2540
    %v2546 = vsel %vm439, %v2437, %v2542
    %v2547 = vmul.f32 %v2535, %v408
    %v2548 = vmul.f32 %v2536, %v413
    %v2550 = vrot.slane %v2547, 7
    %v2552 = vsel %vm420, 0.0, %v2550
    %v2553 = vsel %vm420, %v2550, 0.0
    %v2556 = vrot.slane %v2552, 1
    %v2557 = vrot.slane %v2553, 1
    %v2558 = vsel %vm425, %v2556, %v2557
    %2559 = vrot.lane.b32.xlu0 %v2558, 64
    %v2560 = vpop.permute.xlu0 %2559
    %v2562 = vrot.slane %v2552, 2
    %v2563 = vrot.slane %v2553, 2
    %v2564 = vsel %vm432, %v2562, %v2563
    %v2565 = vsel %vm441, %v2552, %v2560
    %v2567 = vrot.slane %v2548, 7
    %v2569 = vsel %vm420, 0.0, %v2567
    %v2570 = vsel %vm420, %v2567, 0.0
    %v2573 = vrot.slane %v2569, 1
    %v2574 = vrot.slane %v2570, 1
    %v2575 = vsel %vm425, %v2573, %v2574
    %2576 = vrot.lane.b32.xlu0 %v2575, 64
    %v2577 = vpop.permute.xlu0 %2576
    %v2579 = vrot.slane %v2569, 2
    %v2580 = vrot.slane %v2570, 2
    %v2581 = vsel %vm432, %v2579, %v2580
    %v2582 = vsel %vm441, %v2569, %v2577
    %v2584 = vlaneseq
    %v2585 = vshrl.u32 %v2584, 7
    %v2586 = vsub.s32 0, %v2585
    %v2587 = vrot.slane %v2462, %v2586
    %v2589 = vsel %vm441, %v2564, 0
    %v2591 = vsel %vm441, %v2581, 0
    %2593 = vmatprep.subr.mxu0 0.0
    %2594 = vmatpush1.msra.mxu0 %v2453
    %2595 = vmatprep.subr.mxu0 0.0
    %2596 = vmatpush1.msra.mxu0 %v2452
    %2597 = vmatprep.subr.mxu0 0.0
    %2598 = vmatpush1.msra.mxu0 %v2451
    %2599 = vmatprep.subr.mxu0 0.0
    %2600 = vmatpush1.msra.mxu0 %v2450
    %2601 = vmatprep.subr.mxu0 0.0
    %2602 = vmatpush1.msra.mxu0 %v2449
    %2603 = vmatprep.subr.mxu0 0.0
    %2604 = vmatpush1.msra.mxu0 %v2448
    %2605 = vmatprep.subr.mxu0 0.0
    %2606 = vmatpush1.msra.mxu0 %v2447
    %2607 = vmatprep.subr.mxu0 0.0
    %2608 = vmatpush1.msra.mxu0 %v2446
    %2609 = vmatprep.subr.mxu0 0.0
    %2610 = vmatpush1.msra.mxu0 %v2445
    %2611 = vmatprep.subr.mxu0 0.0
    %2612 = vmatpush1.msra.mxu0 %v2444
    %2613 = vmatprep.subr.mxu0 0.0
    %2614 = vmatpush1.msra.mxu0 %v2443
    %2615 = vmatprep.subr.mxu0 0.0
    %2616 = vmatpush1.msra.mxu0 %v2442
    %2617 = vmatprep.subr.mxu0 0.0
    %2618 = vmatpush1.msra.mxu0 %v2441
    %2619 = vmatprep.subr.mxu0 0.0
    %2620 = vmatpush1.msra.mxu0 %v2440
    %2621 = vmatprep.subr.mxu0 0.0
    %2622 = vmatpush1.msra.mxu0 %v2439
    %2623 = vmatprep.subr.mxu0 0.0
    %2624 = vmatpush1.msra.mxu0 %v2438
    %2625 = vmatprep.subr.mxu0 0.0
    %2626 = vmatpush2.msra.mxu0 0.0
    %2627 = vmatprep.subr.mxu0 0.0
    %2628 = vmatpush2.msra.mxu0 0.0
    %2629 = vmatprep.subr.mxu0 0.0
    %2630 = vmatpush2.msra.mxu0 0.0
    %2631 = vmatprep.subr.mxu0 0.0
    %2632 = vmatpush2.msra.mxu0 0.0
    %2633 = vmatprep.subr.mxu0 0.0
    %2634 = vmatpush2.msra.mxu0 0.0
    %2635 = vmatprep.subr.mxu0 0.0
    %2636 = vmatpush2.msra.mxu0 0.0
    %2637 = vmatprep.subr.mxu0 0.0
    %2638 = vmatpush2.msra.mxu0 0.0
    %2639 = vmatprep.subr.mxu0 0.0
    %2640 = vmatpush2.msra.mxu0 0.0
    %2641 = vmatprep.subr.mxu0 0.0
    %2642 = vmatpush2.msra.mxu0 %v2461
    %2643 = vmatprep.subr.mxu0 0.0
    %2644 = vmatpush2.msra.mxu0 %v2460
    %2645 = vmatprep.subr.mxu0 0.0
    %2646 = vmatpush2.msra.mxu0 %v2459
    %2647 = vmatprep.subr.mxu0 0.0
    %2648 = vmatpush2.msra.mxu0 %v2458
    %2649 = vmatprep.subr.mxu0 0.0
    %2650 = vmatpush2.msra.mxu0 %v2457
    %2651 = vmatprep.subr.mxu0 0.0
    %2652 = vmatpush2.msra.mxu0 %v2456
    %2653 = vmatprep.subr.mxu0 0.0
    %2654 = vmatpush2.msra.mxu0 %v2455
    %2655 = vmatprep.subr.mxu0 0.0
    %2656 = vmatpush2.msra.mxu0 %v2454
    %2657 = vmatprep.mubr.f32.mxu0 %v2589
    %2658 = vmatmul.mubr.f32.gmra.mxu0 %v2565
    %v2659 = vpop.f32.mrf.mxu0
    %v2660 = vadd.f32 %v2587, %v2659
    %v2661 = vpop.f32.mrf.mxu0
    %2662 = vmatprep.mubr.f32.mxu0 %v2591
    %2663 = vmatmul.mubr.f32.gmra.mxu0 %v2582
    %v2664 = vpop.f32.mrf.mxu0
    %v2665 = vadd.f32 %v2587, %v2664
    %v2666 = vpop.f32.mrf.mxu0
    %2667 = vdwg.mxu0
    %v2668 = vmul.f32 %v2660, 0.5
    %v2669 = vmul.f32 %v2665, 0.5
    %v2670 = vmul.f32 %v2660, 0.7978846
    %v2671 = vmul.f32 %v2665, 0.7978846
    %v2672 = vmul.f32 %v2660, 0.044715
    %v2673 = vmul.f32 %v2665, 0.044715
    %v2674 = vmul.f32 %v2672, %v2660
    %v2675 = vmul.f32 %v2673, %v2665
    %v2676 = vadd.f32 %v2674, 1.0
    %v2677 = vadd.f32 %v2675, 1.0
    %v2678 = vmul.f32 %v2670, %v2676
    %v2679 = vmul.f32 %v2671, %v2677
    %v2680 = vtanh.pop %v2678
    %v2681 = vtanh.pop %v2679
    %v2682 = vadd.f32 %v2680, 1.0
    %v2683 = vadd.f32 %v2681, 1.0
    %v2684 = vmul.f32 %v2668, %v2682
    %v2685 = vmul.f32 %v2669, %v2683
    %v2686 = vmul.f32 %v2684, %v408
    %v2687 = vmul.f32 %v2685, %v413
    %v2689 = vrot.slane %v2686, 7
    %v2691 = vsel %vm420, 0.0, %v2689
    %v2692 = vsel %vm420, %v2689, 0.0
    %v2695 = vrot.slane %v2691, 1
    %v2696 = vrot.slane %v2692, 1
    %v2697 = vsel %vm425, %v2695, %v2696
    %2698 = vrot.lane.b32.xlu0 %v2697, 32
    %v2699 = vpop.permute.xlu0 %2698
    %v2701 = vrot.slane %v2691, 2
    %v2702 = vrot.slane %v2692, 2
    %v2703 = vsel %vm432, %v2701, %v2702
    %2704 = vrot.lane.b32.xlu0 %v2703, 64
    %v2705 = vpop.permute.xlu0 %2704
    %v2707 = vsel %vm439, %v2691, %v2699
    %v2708 = vsel %vm441, %v2707, %v2705
    %v2710 = vrot.slane %v2687, 7
    %v2712 = vsel %vm420, 0.0, %v2710
    %v2713 = vsel %vm420, %v2710, 0.0
    %v2716 = vrot.slane %v2712, 1
    %v2717 = vrot.slane %v2713, 1
    %v2718 = vsel %vm425, %v2716, %v2717
    %2719 = vrot.lane.b32.xlu0 %v2718, 32
    %v2720 = vpop.permute.xlu0 %2719
    %v2722 = vrot.slane %v2712, 2
    %v2723 = vrot.slane %v2713, 2
    %v2724 = vsel %vm432, %v2722, %v2723
    %2725 = vrot.lane.b32.xlu0 %v2724, 64
    %v2726 = vpop.permute.xlu0 %2725
    %v2728 = vsel %vm439, %v2712, %v2720
    %v2729 = vsel %vm441, %v2728, %v2726
    %v2731 = vlaneseq
    %v2732 = vshrl.u32 %v2731, 7
    %v2733 = vsub.s32 0, %v2732
    %v2734 = vrot.slane %v2475, %v2733
    %v2737 = vsel %vm470, %v2708, 0
    %v2740 = vsel %vm470, %v2729, 0
    %2742 = vmatprep.subr.mxu0 0.0
    %2743 = vmatpush1.msra.mxu0 0.0
    %2744 = vmatprep.subr.mxu0 0.0
    %2745 = vmatpush1.msra.mxu0 0.0
    %2746 = vmatprep.subr.mxu0 0.0
    %2747 = vmatpush1.msra.mxu0 0.0
    %2748 = vmatprep.subr.mxu0 0.0
    %2749 = vmatpush1.msra.mxu0 0.0
    %2750 = vmatprep.subr.mxu0 0.0
    %2751 = vmatpush1.msra.mxu0 %v2474
    %2752 = vmatprep.subr.mxu0 0.0
    %2753 = vmatpush1.msra.mxu0 %v2473
    %2754 = vmatprep.subr.mxu0 0.0
    %2755 = vmatpush1.msra.mxu0 %v2472
    %2756 = vmatprep.subr.mxu0 0.0
    %2757 = vmatpush1.msra.mxu0 %v2471
    %2758 = vmatprep.subr.mxu0 0.0
    %2759 = vmatpush1.msra.mxu0 %v2470
    %2760 = vmatprep.subr.mxu0 0.0
    %2761 = vmatpush1.msra.mxu0 %v2469
    %2762 = vmatprep.subr.mxu0 0.0
    %2763 = vmatpush1.msra.mxu0 %v2468
    %2764 = vmatprep.subr.mxu0 0.0
    %2765 = vmatpush1.msra.mxu0 %v2467
    %2766 = vmatprep.subr.mxu0 0.0
    %2767 = vmatpush1.msra.mxu0 %v2466
    %2768 = vmatprep.subr.mxu0 0.0
    %2769 = vmatpush1.msra.mxu0 %v2465
    %2770 = vmatprep.subr.mxu0 0.0
    %2771 = vmatpush1.msra.mxu0 %v2464
    %2772 = vmatprep.subr.mxu0 0.0
    %2773 = vmatpush1.msra.mxu0 %v2463
    %2774 = vmatprep.subr.mxu0 0.0
    %2775 = vmatpush2.msra.mxu0 0.0
    %2776 = vmatprep.subr.mxu0 0.0
    %2777 = vmatpush2.msra.mxu0 0.0
    %2778 = vmatprep.subr.mxu0 0.0
    %2779 = vmatpush2.msra.mxu0 0.0
    %2780 = vmatprep.subr.mxu0 0.0
    %2781 = vmatpush2.msra.mxu0 0.0
    %2782 = vmatprep.subr.mxu0 0.0
    %2783 = vmatpush2.msra.mxu0 0.0
    %2784 = vmatprep.subr.mxu0 0.0
    %2785 = vmatpush2.msra.mxu0 0.0
    %2786 = vmatprep.subr.mxu0 0.0
    %2787 = vmatpush2.msra.mxu0 0.0
    %2788 = vmatprep.subr.mxu0 0.0
    %2789 = vmatpush2.msra.mxu0 0.0
    %2790 = vmatprep.subr.mxu0 0.0
    %2791 = vmatpush2.msra.mxu0 0.0
    %2792 = vmatprep.subr.mxu0 0.0
    %2793 = vmatpush2.msra.mxu0 0.0
    %2794 = vmatprep.subr.mxu0 0.0
    %2795 = vmatpush2.msra.mxu0 0.0
    %2796 = vmatprep.subr.mxu0 0.0
    %2797 = vmatpush2.msra.mxu0 0.0
    %2798 = vmatprep.subr.mxu0 0.0
    %2799 = vmatpush2.msra.mxu0 0.0
    %2800 = vmatprep.subr.mxu0 0.0
    %2801 = vmatpush2.msra.mxu0 0.0
    %2802 = vmatprep.subr.mxu0 0.0
    %2803 = vmatpush2.msra.mxu0 0.0
    %2804 = vmatprep.subr.mxu0 0.0
    %2805 = vmatpush2.msra.mxu0 0.0
    %2806 = vmatprep.mubr.f32.mxu0 0.0
    %2807 = vmatmul.mubr.f32.gmra.mxu0 %v2737
    %v2808 = vpop.f32.mrf.mxu0
    %v2809 = vadd.f32 %v2734, %v2808
    %v2810 = vpop.f32.mrf.mxu0
    %2811 = vmatprep.mubr.f32.mxu0 0.0
    %2812 = vmatmul.mubr.f32.gmra.mxu0 %v2740
    %v2813 = vpop.f32.mrf.mxu0
    %v2814 = vadd.f32 %v2734, %v2813
    %v2815 = vpop.f32.mrf.mxu0
    %2816 = vdwg.mxu0
    %v2817 = vmul.f32 %v2809, 0.5
    %v2818 = vmul.f32 %v2814, 0.5
    %v2819 = vmul.f32 %v2809, 0.7978846
    %v2820 = vmul.f32 %v2814, 0.7978846
    %v2821 = vmul.f32 %v2809, 0.044715
    %v2822 = vmul.f32 %v2814, 0.044715
    %v2823 = vmul.f32 %v2821, %v2809
    %v2824 = vmul.f32 %v2822, %v2814
    %v2825 = vadd.f32 %v2823, 1.0
    %v2826 = vadd.f32 %v2824, 1.0
    %v2827 = vmul.f32 %v2819, %v2825
    %v2828 = vmul.f32 %v2820, %v2826
    %v2829 = vtanh.pop %v2827
    %v2830 = vtanh.pop %v2828
    %v2831 = vadd.f32 %v2829, 1.0
    %v2832 = vadd.f32 %v2830, 1.0
    %v2833 = vmul.f32 %v2817, %v2831
    %v2834 = vmul.f32 %v2818, %v2832
    %v2835 = vmul.f32 %v2545, %v722
    %v2836 = vmul.f32 %v2546, %v727
    %v2838 = vrot.slane %v2835, 7
    %v2840 = vsel %vm420, 0.0, %v2838
    %v2841 = vsel %vm420, %v2838, 0.0
    %v2844 = vrot.slane %v2840, 1
    %v2845 = vrot.slane %v2841, 1
    %v2846 = vsel %vm425, %v2844, %v2845
    %2847 = vrot.lane.b32.xlu0 %v2846, 64
    %v2848 = vpop.permute.xlu0 %2847
    %v2850 = vrot.slane %v2840, 2
    %v2851 = vrot.slane %v2841, 2
    %v2852 = vsel %vm432, %v2850, %v2851
    %v2853 = vsel %vm441, %v2840, %v2848
    %v2855 = vrot.slane %v2836, 7
    %v2857 = vsel %vm420, 0.0, %v2855
    %v2858 = vsel %vm420, %v2855, 0.0
    %v2861 = vrot.slane %v2857, 1
    %v2862 = vrot.slane %v2858, 1
    %v2863 = vsel %vm425, %v2861, %v2862
    %2864 = vrot.lane.b32.xlu0 %v2863, 64
    %v2865 = vpop.permute.xlu0 %2864
    %v2867 = vrot.slane %v2857, 2
    %v2868 = vrot.slane %v2858, 2
    %v2869 = vsel %vm432, %v2867, %v2868
    %v2870 = vsel %vm441, %v2857, %v2865
    %v2871 = vsel %vm441, %v2852, 0
    %v2873 = vsel %vm441, %v2869, 0
    %2875 = vmatprep.subr.mxu0 0.0
    %2876 = vmatpush1.msra.mxu0 %v2453
    %2877 = vmatprep.subr.mxu0 0.0
    %2878 = vmatpush1.msra.mxu0 %v2452
    %2879 = vmatprep.subr.mxu0 0.0
    %2880 = vmatpush1.msra.mxu0 %v2451
    %2881 = vmatprep.subr.mxu0 0.0
    %2882 = vmatpush1.msra.mxu0 %v2450
    %2883 = vmatprep.subr.mxu0 0.0
    %2884 = vmatpush1.msra.mxu0 %v2449
    %2885 = vmatprep.subr.mxu0 0.0
    %2886 = vmatpush1.msra.mxu0 %v2448
    %2887 = vmatprep.subr.mxu0 0.0
    %2888 = vmatpush1.msra.mxu0 %v2447
    %2889 = vmatprep.subr.mxu0 0.0
    %2890 = vmatpush1.msra.mxu0 %v2446
    %2891 = vmatprep.subr.mxu0 0.0
    %2892 = vmatpush1.msra.mxu0 %v2445
    %2893 = vmatprep.subr.mxu0 0.0
    %2894 = vmatpush1.msra.mxu0 %v2444
    %2895 = vmatprep.subr.mxu0 0.0
    %2896 = vmatpush1.msra.mxu0 %v2443
    %2897 = vmatprep.subr.mxu0 0.0
    %2898 = vmatpush1.msra.mxu0 %v2442
    %2899 = vmatprep.subr.mxu0 0.0
    %2900 = vmatpush1.msra.mxu0 %v2441
    %2901 = vmatprep.subr.mxu0 0.0
    %2902 = vmatpush1.msra.mxu0 %v2440
    %2903 = vmatprep.subr.mxu0 0.0
    %2904 = vmatpush1.msra.mxu0 %v2439
    %2905 = vmatprep.subr.mxu0 0.0
    %2906 = vmatpush1.msra.mxu0 %v2438
    %2907 = vmatprep.subr.mxu0 0.0
    %2908 = vmatpush2.msra.mxu0 0.0
    %2909 = vmatprep.subr.mxu0 0.0
    %2910 = vmatpush2.msra.mxu0 0.0
    %2911 = vmatprep.subr.mxu0 0.0
    %2912 = vmatpush2.msra.mxu0 0.0
    %2913 = vmatprep.subr.mxu0 0.0
    %2914 = vmatpush2.msra.mxu0 0.0
    %2915 = vmatprep.subr.mxu0 0.0
    %2916 = vmatpush2.msra.mxu0 0.0
    %2917 = vmatprep.subr.mxu0 0.0
    %2918 = vmatpush2.msra.mxu0 0.0
    %2919 = vmatprep.subr.mxu0 0.0
    %2920 = vmatpush2.msra.mxu0 0.0
    %2921 = vmatprep.subr.mxu0 0.0
    %2922 = vmatpush2.msra.mxu0 0.0
    %2923 = vmatprep.subr.mxu0 0.0
    %2924 = vmatpush2.msra.mxu0 %v2461
    %2925 = vmatprep.subr.mxu0 0.0
    %2926 = vmatpush2.msra.mxu0 %v2460
    %2927 = vmatprep.subr.mxu0 0.0
    %2928 = vmatpush2.msra.mxu0 %v2459
    %2929 = vmatprep.subr.mxu0 0.0
    %2930 = vmatpush2.msra.mxu0 %v2458
    %2931 = vmatprep.subr.mxu0 0.0
    %2932 = vmatpush2.msra.mxu0 %v2457
    %2933 = vmatprep.subr.mxu0 0.0
    %2934 = vmatpush2.msra.mxu0 %v2456
    %2935 = vmatprep.subr.mxu0 0.0
    %2936 = vmatpush2.msra.mxu0 %v2455
    %2937 = vmatprep.subr.mxu0 0.0
    %2938 = vmatpush2.msra.mxu0 %v2454
    %2939 = vmatprep.mubr.f32.mxu0 %v2871
    %2940 = vmatmul.mubr.f32.gmra.mxu0 %v2853
    %v2941 = vpop.f32.mrf.mxu0
    %v2942 = vadd.f32 %v2587, %v2941
    %v2943 = vpop.f32.mrf.mxu0
    %2944 = vmatprep.mubr.f32.mxu0 %v2873
    %2945 = vmatmul.mubr.f32.gmra.mxu0 %v2870
    %v2946 = vpop.f32.mrf.mxu0
    %v2947 = vadd.f32 %v2587, %v2946
    %v2948 = vpop.f32.mrf.mxu0
    %2949 = vdwg.mxu0
    %v2950 = vmul.f32 %v2942, 0.5
    %v2951 = vmul.f32 %v2947, 0.5
    %v2952 = vmul.f32 %v2942, 0.7978846
    %v2953 = vmul.f32 %v2947, 0.7978846
    %v2954 = vmul.f32 %v2942, 0.044715
    %v2955 = vmul.f32 %v2947, 0.044715
    %v2956 = vmul.f32 %v2954, %v2942
    %v2957 = vmul.f32 %v2955, %v2947
    %v2958 = vadd.f32 %v2956, 1.0
    %v2959 = vadd.f32 %v2957, 1.0
    %v2960 = vmul.f32 %v2952, %v2958
    %v2961 = vmul.f32 %v2953, %v2959
    %v2962 = vtanh.pop %v2960
    %v2963 = vtanh.pop %v2961
    %v2964 = vadd.f32 %v2962, 1.0
    %v2965 = vadd.f32 %v2963, 1.0
    %v2966 = vmul.f32 %v2950, %v2964
    %v2967 = vmul.f32 %v2951, %v2965
    %v2968 = vmul.f32 %v2966, %v722
    %v2969 = vmul.f32 %v2967, %v727
    %v2971 = vrot.slane %v2968, 7
    %v2973 = vsel %vm420, 0.0, %v2971
    %v2974 = vsel %vm420, %v2971, 0.0
    %v2977 = vrot.slane %v2973, 1
    %v2978 = vrot.slane %v2974, 1
    %v2979 = vsel %vm425, %v2977, %v2978
    %2980 = vrot.lane.b32.xlu0 %v2979, 32
    %v2981 = vpop.permute.xlu0 %2980
    %v2983 = vrot.slane %v2973, 2
    %v2984 = vrot.slane %v2974, 2
    %v2985 = vsel %vm432, %v2983, %v2984
    %2986 = vrot.lane.b32.xlu0 %v2985, 64
    %v2987 = vpop.permute.xlu0 %2986
    %v2989 = vsel %vm439, %v2973, %v2981
    %v2990 = vsel %vm441, %v2989, %v2987
    %v2992 = vrot.slane %v2969, 7
    %v2994 = vsel %vm420, 0.0, %v2992
    %v2995 = vsel %vm420, %v2992, 0.0
    %v2998 = vrot.slane %v2994, 1
    %v2999 = vrot.slane %v2995, 1
    %v3000 = vsel %vm425, %v2998, %v2999
    %3001 = vrot.lane.b32.xlu0 %v3000, 32
    %v3002 = vpop.permute.xlu0 %3001
    %v3004 = vrot.slane %v2994, 2
    %v3005 = vrot.slane %v2995, 2
    %v3006 = vsel %vm432, %v3004, %v3005
    %3007 = vrot.lane.b32.xlu0 %v3006, 64
    %v3008 = vpop.permute.xlu0 %3007
    %v3010 = vsel %vm439, %v2994, %v3002
    %v3011 = vsel %vm441, %v3010, %v3008
    %v3013 = vsel %vm470, %v2990, 0
    %v3016 = vsel %vm470, %v3011, 0
    %3018 = vmatprep.subr.mxu0 0.0
    %3019 = vmatpush1.msra.mxu0 0.0
    %3020 = vmatprep.subr.mxu0 0.0
    %3021 = vmatpush1.msra.mxu0 0.0
    %3022 = vmatprep.subr.mxu0 0.0
    %3023 = vmatpush1.msra.mxu0 0.0
    %3024 = vmatprep.subr.mxu0 0.0
    %3025 = vmatpush1.msra.mxu0 0.0
    %3026 = vmatprep.subr.mxu0 0.0
    %3027 = vmatpush1.msra.mxu0 %v2474
    %3028 = vmatprep.subr.mxu0 0.0
    %3029 = vmatpush1.msra.mxu0 %v2473
    %3030 = vmatprep.subr.mxu0 0.0
    %3031 = vmatpush1.msra.mxu0 %v2472
    %3032 = vmatprep.subr.mxu0 0.0
    %3033 = vmatpush1.msra.mxu0 %v2471
    %3034 = vmatprep.subr.mxu0 0.0
    %3035 = vmatpush1.msra.mxu0 %v2470
    %3036 = vmatprep.subr.mxu0 0.0
    %3037 = vmatpush1.msra.mxu0 %v2469
    %3038 = vmatprep.subr.mxu0 0.0
    %3039 = vmatpush1.msra.mxu0 %v2468
    %3040 = vmatprep.subr.mxu0 0.0
    %3041 = vmatpush1.msra.mxu0 %v2467
    %3042 = vmatprep.subr.mxu0 0.0
    %3043 = vmatpush1.msra.mxu0 %v2466
    %3044 = vmatprep.subr.mxu0 0.0
    %3045 = vmatpush1.msra.mxu0 %v2465
    %3046 = vmatprep.subr.mxu0 0.0
    %3047 = vmatpush1.msra.mxu0 %v2464
    %3048 = vmatprep.subr.mxu0 0.0
    %3049 = vmatpush1.msra.mxu0 %v2463
    %3050 = vmatprep.subr.mxu0 0.0
    %3051 = vmatpush2.msra.mxu0 0.0
    %3052 = vmatprep.subr.mxu0 0.0
    %3053 = vmatpush2.msra.mxu0 0.0
    %3054 = vmatprep.subr.mxu0 0.0
    %3055 = vmatpush2.msra.mxu0 0.0
    %3056 = vmatprep.subr.mxu0 0.0
    %3057 = vmatpush2.msra.mxu0 0.0
    %3058 = vmatprep.subr.mxu0 0.0
    %3059 = vmatpush2.msra.mxu0 0.0
    %3060 = vmatprep.subr.mxu0 0.0
    %3061 = vmatpush2.msra.mxu0 0.0
    %3062 = vmatprep.subr.mxu0 0.0
    %3063 = vmatpush2.msra.mxu0 0.0
    %3064 = vmatprep.subr.mxu0 0.0
    %3065 = vmatpush2.msra.mxu0 0.0
    %3066 = vmatprep.subr.mxu0 0.0
    %3067 = vmatpush2.msra.mxu0 0.0
    %3068 = vmatprep.subr.mxu0 0.0
    %3069 = vmatpush2.msra.mxu0 0.0
    %3070 = vmatprep.subr.mxu0 0.0
    %3071 = vmatpush2.msra.mxu0 0.0
    %3072 = vmatprep.subr.mxu0 0.0
    %3073 = vmatpush2.msra.mxu0 0.0
    %3074 = vmatprep.subr.mxu0 0.0
    %3075 = vmatpush2.msra.mxu0 0.0
    %3076 = vmatprep.subr.mxu0 0.0
    %3077 = vmatpush2.msra.mxu0 0.0
    %3078 = vmatprep.subr.mxu0 0.0
    %3079 = vmatpush2.msra.mxu0 0.0
    %3080 = vmatprep.subr.mxu0 0.0
    %3081 = vmatpush2.msra.mxu0 0.0
    %3082 = vmatprep.mubr.f32.mxu0 0.0
    %3083 = vmatmul.mubr.f32.gmra.mxu0 %v3013
    %v3084 = vpop.f32.mrf.mxu0
    %v3085 = vadd.f32 %v2734, %v3084
    %v3086 = vpop.f32.mrf.mxu0
    %3087 = vmatprep.mubr.f32.mxu0 0.0
    %3088 = vmatmul.mubr.f32.gmra.mxu0 %v3016
    %v3089 = vpop.f32.mrf.mxu0
    %v3090 = vadd.f32 %v2734, %v3089
    %v3091 = vpop.f32.mrf.mxu0
    %3092 = vdwg.mxu0
    %v3093 = vmul.f32 %v3085, 0.5
    %v3094 = vmul.f32 %v3090, 0.5
    %v3095 = vmul.f32 %v3085, 0.7978846
    %v3096 = vmul.f32 %v3090, 0.7978846
    %v3097 = vmul.f32 %v3085, 0.044715
    %v3098 = vmul.f32 %v3090, 0.044715
    %v3099 = vmul.f32 %v3097, %v3085
    %v3100 = vmul.f32 %v3098, %v3090
    %v3101 = vadd.f32 %v3099, 1.0
    %v3102 = vadd.f32 %v3100, 1.0
    %v3103 = vmul.f32 %v3095, %v3101
    %v3104 = vmul.f32 %v3096, %v3102
    %v3105 = vtanh.pop %v3103
    %v3106 = vtanh.pop %v3104
    %v3107 = vadd.f32 %v3105, 1.0
    %v3108 = vadd.f32 %v3106, 1.0
    %v3109 = vmul.f32 %v3093, %v3107
    %v3110 = vmul.f32 %v3094, %v3108
    %3113 = vrot.lane.b32.xlu0 %v2833, 64
    %v3114 = vpop.permute.xlu0 %3113
    %3115 = vrot.lane.b32.xlu0 %v2834, 64
    %v3116 = vpop.permute.xlu0 %3115
    %v3119 = vsel %vm441, %v2535, %v3114
    %v3120 = vsel %vm441, %v2536, %v3116
    %3123 = vrot.lane.b32.xlu0 %v3109, 64
    %v3124 = vpop.permute.xlu0 %3123
    %3125 = vrot.lane.b32.xlu0 %v3110, 64
    %v3126 = vpop.permute.xlu0 %3125
    %v3129 = vsel %vm441, %v2545, %v3124
    %v3130 = vsel %vm441, %v2546, %v3126
    %v3132 = vlaneseq
    %v3133 = vshrl.u32 %v3132, 7
    %v3134 = vsub.s32 0, %v3133
    %v3135 = vrot.slane %v2488, %v3134
    %v3138 = vsel %vm470, %v3119, 0
    %v3141 = vsel %vm470, %v3120, 0
    %3143 = vmatprep.subr.mxu0 0.0
    %3144 = vmatpush1.msra.mxu0 0.0
    %3145 = vmatprep.subr.mxu0 0.0
    %3146 = vmatpush1.msra.mxu0 0.0
    %3147 = vmatprep.subr.mxu0 0.0
    %3148 = vmatpush1.msra.mxu0 0.0
    %3149 = vmatprep.subr.mxu0 0.0
    %3150 = vmatpush1.msra.mxu0 0.0
    %3151 = vmatprep.subr.mxu0 0.0
    %3152 = vmatpush1.msra.mxu0 %v2487
    %3153 = vmatprep.subr.mxu0 0.0
    %3154 = vmatpush1.msra.mxu0 %v2486
    %3155 = vmatprep.subr.mxu0 0.0
    %3156 = vmatpush1.msra.mxu0 %v2485
    %3157 = vmatprep.subr.mxu0 0.0
    %3158 = vmatpush1.msra.mxu0 %v2484
    %3159 = vmatprep.subr.mxu0 0.0
    %3160 = vmatpush1.msra.mxu0 %v2483
    %3161 = vmatprep.subr.mxu0 0.0
    %3162 = vmatpush1.msra.mxu0 %v2482
    %3163 = vmatprep.subr.mxu0 0.0
    %3164 = vmatpush1.msra.mxu0 %v2481
    %3165 = vmatprep.subr.mxu0 0.0
    %3166 = vmatpush1.msra.mxu0 %v2480
    %3167 = vmatprep.subr.mxu0 0.0
    %3168 = vmatpush1.msra.mxu0 %v2479
    %3169 = vmatprep.subr.mxu0 0.0
    %3170 = vmatpush1.msra.mxu0 %v2478
    %3171 = vmatprep.subr.mxu0 0.0
    %3172 = vmatpush1.msra.mxu0 %v2477
    %3173 = vmatprep.subr.mxu0 0.0
    %3174 = vmatpush1.msra.mxu0 %v2476
    %3175 = vmatprep.subr.mxu0 0.0
    %3176 = vmatpush2.msra.mxu0 0.0
    %3177 = vmatprep.subr.mxu0 0.0
    %3178 = vmatpush2.msra.mxu0 0.0
    %3179 = vmatprep.subr.mxu0 0.0
    %3180 = vmatpush2.msra.mxu0 0.0
    %3181 = vmatprep.subr.mxu0 0.0
    %3182 = vmatpush2.msra.mxu0 0.0
    %3183 = vmatprep.subr.mxu0 0.0
    %3184 = vmatpush2.msra.mxu0 0.0
    %3185 = vmatprep.subr.mxu0 0.0
    %3186 = vmatpush2.msra.mxu0 0.0
    %3187 = vmatprep.subr.mxu0 0.0
    %3188 = vmatpush2.msra.mxu0 0.0
    %3189 = vmatprep.subr.mxu0 0.0
    %3190 = vmatpush2.msra.mxu0 0.0
    %3191 = vmatprep.subr.mxu0 0.0
    %3192 = vmatpush2.msra.mxu0 0.0
    %3193 = vmatprep.subr.mxu0 0.0
    %3194 = vmatpush2.msra.mxu0 0.0
    %3195 = vmatprep.subr.mxu0 0.0
    %3196 = vmatpush2.msra.mxu0 0.0
    %3197 = vmatprep.subr.mxu0 0.0
    %3198 = vmatpush2.msra.mxu0 0.0
    %3199 = vmatprep.subr.mxu0 0.0
    %3200 = vmatpush2.msra.mxu0 0.0
    %3201 = vmatprep.subr.mxu0 0.0
    %3202 = vmatpush2.msra.mxu0 0.0
    %3203 = vmatprep.subr.mxu0 0.0
    %3204 = vmatpush2.msra.mxu0 0.0
    %3205 = vmatprep.subr.mxu0 0.0
    %3206 = vmatpush2.msra.mxu0 0.0
    %3207 = vmatprep.mubr.f32.mxu0 0.0
    %3208 = vmatmul.mubr.f32.gmra.mxu0 %v3138
    %v3209 = vpop.f32.mrf.mxu0
    %v3210 = vadd.f32 %v3135, %v3209
    %v3211 = vpop.f32.mrf.mxu0
    %3212 = vmatprep.mubr.f32.mxu0 0.0
    %3213 = vmatmul.mubr.f32.gmra.mxu0 %v3141
    %v3214 = vpop.f32.mrf.mxu0
    %v3215 = vadd.f32 %v3135, %v3214
    %v3216 = vpop.f32.mrf.mxu0
    %3217 = vdwg.mxu0
    %v3218 = vmul.f32 %v3210, 0.5
    %v3219 = vmul.f32 %v3215, 0.5
    %v3220 = vmul.f32 %v3210, 0.7978846
    %v3221 = vmul.f32 %v3215, 0.7978846
    %v3222 = vmul.f32 %v3210, 0.044715
    %v3223 = vmul.f32 %v3215, 0.044715
    %v3224 = vmul.f32 %v3222, %v3210
    %v3225 = vmul.f32 %v3223, %v3215
    %v3226 = vadd.f32 %v3224, 1.0
    %v3227 = vadd.f32 %v3225, 1.0
    %v3228 = vmul.f32 %v3220, %v3226
    %v3229 = vmul.f32 %v3221, %v3227
    %v3230 = vtanh.pop %v3228
    %v3231 = vtanh.pop %v3229
    %v3232 = vadd.f32 %v3230, 1.0
    %v3233 = vadd.f32 %v3231, 1.0
    %v3234 = vmul.f32 %v3218, %v3232
    %v3235 = vmul.f32 %v3219, %v3233
    %v3237 = vsel %vm470, %v3129, 0
    %v3240 = vsel %vm470, %v3130, 0
    %3242 = vmatprep.subr.mxu0 0.0
    %3243 = vmatpush1.msra.mxu0 0.0
    %3244 = vmatprep.subr.mxu0 0.0
    %3245 = vmatpush1.msra.mxu0 0.0
    %3246 = vmatprep.subr.mxu0 0.0
    %3247 = vmatpush1.msra.mxu0 0.0
    %3248 = vmatprep.subr.mxu0 0.0
    %3249 = vmatpush1.msra.mxu0 0.0
    %3250 = vmatprep.subr.mxu0 0.0
    %3251 = vmatpush1.msra.mxu0 %v2487
    %3252 = vmatprep.subr.mxu0 0.0
    %3253 = vmatpush1.msra.mxu0 %v2486
    %3254 = vmatprep.subr.mxu0 0.0
    %3255 = vmatpush1.msra.mxu0 %v2485
    %3256 = vmatprep.subr.mxu0 0.0
    %3257 = vmatpush1.msra.mxu0 %v2484
    %3258 = vmatprep.subr.mxu0 0.0
    %3259 = vmatpush1.msra.mxu0 %v2483
    %3260 = vmatprep.subr.mxu0 0.0
    %3261 = vmatpush1.msra.mxu0 %v2482
    %3262 = vmatprep.subr.mxu0 0.0
    %3263 = vmatpush1.msra.mxu0 %v2481
    %3264 = vmatprep.subr.mxu0 0.0
    %3265 = vmatpush1.msra.mxu0 %v2480
    %3266 = vmatprep.subr.mxu0 0.0
    %3267 = vmatpush1.msra.mxu0 %v2479
    %3268 = vmatprep.subr.mxu0 0.0
    %3269 = vmatpush1.msra.mxu0 %v2478
    %3270 = vmatprep.subr.mxu0 0.0
    %3271 = vmatpush1.msra.mxu0 %v2477
    %3272 = vmatprep.subr.mxu0 0.0
    %3273 = vmatpush1.msra.mxu0 %v2476
    %3274 = vmatprep.subr.mxu0 0.0
    %3275 = vmatpush2.msra.mxu0 0.0
    %3276 = vmatprep.subr.mxu0 0.0
    %3277 = vmatpush2.msra.mxu0 0.0
    %3278 = vmatprep.subr.mxu0 0.0
    %3279 = vmatpush2.msra.mxu0 0.0
    %3280 = vmatprep.subr.mxu0 0.0
    %3281 = vmatpush2.msra.mxu0 0.0
    %3282 = vmatprep.subr.mxu0 0.0
    %3283 = vmatpush2.msra.mxu0 0.0
    %3284 = vmatprep.subr.mxu0 0.0
    %3285 = vmatpush2.msra.mxu0 0.0
    %3286 = vmatprep.subr.mxu0 0.0
    %3287 = vmatpush2.msra.mxu0 0.0
    %3288 = vmatprep.subr.mxu0 0.0
    %3289 = vmatpush2.msra.mxu0 0.0
    %3290 = vmatprep.subr.mxu0 0.0
    %3291 = vmatpush2.msra.mxu0 0.0
    %3292 = vmatprep.subr.mxu0 0.0
    %3293 = vmatpush2.msra.mxu0 0.0
    %3294 = vmatprep.subr.mxu0 0.0
    %3295 = vmatpush2.msra.mxu0 0.0
    %3296 = vmatprep.subr.mxu0 0.0
    %3297 = vmatpush2.msra.mxu0 0.0
    %3298 = vmatprep.subr.mxu0 0.0
    %3299 = vmatpush2.msra.mxu0 0.0
    %3300 = vmatprep.subr.mxu0 0.0
    %3301 = vmatpush2.msra.mxu0 0.0
    %3302 = vmatprep.subr.mxu0 0.0
    %3303 = vmatpush2.msra.mxu0 0.0
    %3304 = vmatprep.subr.mxu0 0.0
    %3305 = vmatpush2.msra.mxu0 0.0
    %3306 = vmatprep.mubr.f32.mxu0 0.0
    %3307 = vmatmul.mubr.f32.gmra.mxu0 %v3237
    %v3308 = vpop.f32.mrf.mxu0
    %v3309 = vadd.f32 %v3135, %v3308
    %v3310 = vpop.f32.mrf.mxu0
    %3311 = vmatprep.mubr.f32.mxu0 0.0
    %3312 = vmatmul.mubr.f32.gmra.mxu0 %v3240
    %v3313 = vpop.f32.mrf.mxu0
    %v3314 = vadd.f32 %v3135, %v3313
    %v3315 = vpop.f32.mrf.mxu0
    %3316 = vdwg.mxu0
    %v3317 = vmul.f32 %v3309, 0.5
    %v3318 = vmul.f32 %v3314, 0.5
    %v3319 = vmul.f32 %v3309, 0.7978846
    %v3320 = vmul.f32 %v3314, 0.7978846
    %v3321 = vmul.f32 %v3309, 0.044715
    %v3322 = vmul.f32 %v3314, 0.044715
    %v3323 = vmul.f32 %v3321, %v3309
    %v3324 = vmul.f32 %v3322, %v3314
    %v3325 = vadd.f32 %v3323, 1.0
    %v3326 = vadd.f32 %v3324, 1.0
    %v3327 = vmul.f32 %v3319, %v3325
    %v3328 = vmul.f32 %v3320, %v3326
    %v3329 = vtanh.pop %v3327
    %v3330 = vtanh.pop %v3328
    %v3331 = vadd.f32 %v3329, 1.0
    %v3332 = vadd.f32 %v3330, 1.0
    %v3333 = vmul.f32 %v3317, %v3331
    %v3334 = vmul.f32 %v3318, %v3332
    %v3336 = vsel %vm439, %v3234, 0
    %v3339 = vsel %vm439, %v3333, 0
    %3341 = vmatprep.subr.mxu0 0.0
    %3342 = vmatpush1.xpose.msra.mxu0 0.0
    %3343 = vmatprep.subr.mxu0 0.0
    %3344 = vmatpush1.xpose.msra.mxu0 0.0
    %3345 = vmatprep.subr.mxu0 0.0
    %3346 = vmatpush1.xpose.msra.mxu0 0.0
    %3347 = vmatprep.subr.mxu0 0.0
    %3348 = vmatpush1.xpose.msra.mxu0 0.0
    %3349 = vmatprep.subr.mxu0 0.0
    %3350 = vmatpush1.xpose.msra.mxu0 0.0
    %3351 = vmatprep.subr.mxu0 0.0
    %3352 = vmatpush1.xpose.msra.mxu0 0.0
    %3353 = vmatprep.subr.mxu0 0.0
    %3354 = vmatpush1.xpose.msra.mxu0 0.0
    %3355 = vmatprep.subr.mxu0 0.0
    %3356 = vmatpush1.xpose.msra.mxu0 0.0
    %3357 = vmatprep.subr.mxu0 0.0
    %3358 = vmatpush1.xpose.msra.mxu0 0.0
    %3359 = vmatprep.subr.mxu0 0.0
    %3360 = vmatpush1.xpose.msra.mxu0 0.0
    %3361 = vmatprep.subr.mxu0 0.0
    %3362 = vmatpush1.xpose.msra.mxu0 0.0
    %3363 = vmatprep.subr.mxu0 0.0
    %3364 = vmatpush1.xpose.msra.mxu0 0.0
    %3365 = vmatprep.subr.mxu0 0.0
    %3366 = vmatpush1.xpose.msra.mxu0 0.0
    %3367 = vmatprep.subr.mxu0 0.0
    %3368 = vmatpush1.xpose.msra.mxu0 0.0
    %3369 = vmatprep.subr.mxu0 0.0
    %3370 = vmatpush1.xpose.msra.mxu0 0.0
    %3371 = vmatprep.subr.mxu0 0.0
    %3372 = vmatpush1.xpose.msra.mxu0 %v3339
    %3373 = vmatprep.subr.mxu0 0.0
    %3374 = vmatpush2.xpose.msra.mxu0 0.0
    %3375 = vmatprep.subr.mxu0 0.0
    %3376 = vmatpush2.xpose.msra.mxu0 0.0
    %3377 = vmatprep.subr.mxu0 0.0
    %3378 = vmatpush2.xpose.msra.mxu0 0.0
    %3379 = vmatprep.subr.mxu0 0.0
    %3380 = vmatpush2.xpose.msra.mxu0 0.0
    %3381 = vmatprep.subr.mxu0 0.0
    %3382 = vmatpush2.xpose.msra.mxu0 0.0
    %3383 = vmatprep.subr.mxu0 0.0
    %3384 = vmatpush2.xpose.msra.mxu0 0.0
    %3385 = vmatprep.subr.mxu0 0.0
    %3386 = vmatpush2.xpose.msra.mxu0 0.0
    %3387 = vmatprep.subr.mxu0 0.0
    %3388 = vmatpush2.xpose.msra.mxu0 0.0
    %3389 = vmatprep.subr.mxu0 0.0
    %3390 = vmatpush2.xpose.msra.mxu0 0.0
    %3391 = vmatprep.subr.mxu0 0.0
    %3392 = vmatpush2.xpose.msra.mxu0 0.0
    %3393 = vmatprep.subr.mxu0 0.0
    %3394 = vmatpush2.xpose.msra.mxu0 0.0
    %3395 = vmatprep.subr.mxu0 0.0
    %3396 = vmatpush2.xpose.msra.mxu0 0.0
    %3397 = vmatprep.subr.mxu0 0.0
    %3398 = vmatpush2.xpose.msra.mxu0 0.0
    %3399 = vmatprep.subr.mxu0 0.0
    %3400 = vmatpush2.xpose.msra.mxu0 0.0
    %3401 = vmatprep.subr.mxu0 0.0
    %3402 = vmatpush2.xpose.msra.mxu0 0.0
    %3403 = vmatprep.subr.mxu0 0.0
    %3404 = vmatpush2.xpose.msra.mxu0 0.0
    %3405 = vmatprep.mubr.f32.mxu0 0.0
    %3406 = vmatmul.mubr.f32.gmra.mxu0 %v3336
    %v3407 = vpop.f32.mrf.mxu0
    %v3408 = vadd.f32 0.0, %v3407
    %v3409 = vpop.f32.mrf.mxu0
    %3410 = vdwg.mxu0
    %v3411 = vmul.f32 %v3408, 0.17677669
    %v3412 = vsel %vm1321, %v3411, -10000000.0
    %v3413 = vsel %vm1323, %v3412, -inf
    %v3414 = vrot.slane %v3413, 4
    %v3415 = vmax.f32 %v3413, %v3414
    %v3416 = vrot.slane %v3415, 2
    %v3417 = vmax.f32 %v3415, %v3416
    %v3418 = vrot.slane %v3417, 1
    %v3419 = vmax.f32 %v3417, %v3418
    %v3420 = vsub.f32 %v3412, %v3419
    %v3421 = vmul.f32 %v3420, 1.442695
    %v3422 = vpow.pop %v3421
    %v3423 = vsel %vm1323, %v3422, 0.0
    %v3424 = vrot.slane %v3423, 4
    %v3425 = vadd.f32 %v3423, %v3424
    %v3426 = vrot.slane %v3425, 2
    %v3427 = vadd.f32 %v3425, %v3426
    %v3428 = vrot.slane %v3427, 1
    %v3429 = vadd.f32 %v3427, %v3428
    %v3430 = vrcp.pop %v3429
    %v3431 = vmul.f32 %v3422, %v3430
    %3432 = vmax.xlane.f32.xlu0 %v3413
    %v3433 = vpop.xlane.xlu0 %3432
    %v3434 = vsub.f32 %v3412, %v3433
    %v3435 = vmul.f32 %v3434, 1.442695
    %v3436 = vpow.pop %v3435
    %v3437 = vsel %vm1323, %v3436, 0.0
    %3438 = vadd.xlane.f32.xlu0 %v3437
    %v3439 = vpop.xlane.xlu0 %3438
    %v3440 = vrcp.pop %v3439
    %v3441 = vmul.f32 %v3436, %v3440
    %3442 = vxpose.xlu0.b32.start [1/16] %v3431, 128
    %3443 = vxpose.xlu0.b32.cont [2/16] 0.0, 128
    %3444 = vxpose.xlu0.b32.cont [3/16] 0.0, 128
    %3445 = vxpose.xlu0.b32.cont [4/16] 0.0, 128
    %3446 = vxpose.xlu0.b32.cont [5/16] 0.0, 128
    %3447 = vxpose.xlu0.b32.cont [6/16] 0.0, 128
    %3448 = vxpose.xlu0.b32.cont [7/16] 0.0, 128
    %3449 = vxpose.xlu0.b32.cont [8/16] 0.0, 128
    %3450 = vxpose.xlu0.b32.cont [9/16] 0.0, 128
    %3451 = vxpose.xlu0.b32.cont [10/16] 0.0, 128
    %3452 = vxpose.xlu0.b32.cont [11/16] 0.0, 128
    %3453 = vxpose.xlu0.b32.cont [12/16] 0.0, 128
    %3454 = vxpose.xlu0.b32.cont [13/16] 0.0, 128
    %3455 = vxpose.xlu0.b32.cont [14/16] 0.0, 128
    %3456 = vxpose.xlu0.b32.cont [15/16] 0.0, 128
    %3457 = vxpose.xlu0.b32.end [16/16] 0.0, 128
    %v3458 = vpop.trf.xlu0
    %v3459 = vpop.trf.xlu0
    %v3460 = vpop.trf.xlu0
    %v3461 = vpop.trf.xlu0
    %v3462 = vpop.trf.xlu0
    %v3463 = vpop.trf.xlu0
    %v3464 = vpop.trf.xlu0
    %v3465 = vpop.trf.xlu0
    %v3466 = vpop.trf.xlu0
    %v3467 = vpop.trf.xlu0
    %v3468 = vpop.trf.xlu0
    %v3469 = vpop.trf.xlu0
    %v3470 = vpop.trf.xlu0
    %v3471 = vpop.trf.xlu0
    %v3472 = vpop.trf.xlu0
    %v3473 = vpop.trf.xlu0
    %v3475 = vsel %vm1323, %v3458, 0
    %3477 = vmatprep.subr.mxu0 0.0
    %3478 = vmatpush1.msra.mxu0 0.0
    %3479 = vmatprep.subr.mxu0 0.0
    %3480 = vmatpush1.msra.mxu0 0.0
    %3481 = vmatprep.subr.mxu0 0.0
    %3482 = vmatpush1.msra.mxu0 0.0
    %3483 = vmatprep.subr.mxu0 0.0
    %3484 = vmatpush1.msra.mxu0 0.0
    %3485 = vmatprep.subr.mxu0 0.0
    %3486 = vmatpush1.msra.mxu0 0.0
    %3487 = vmatprep.subr.mxu0 0.0
    %3488 = vmatpush1.msra.mxu0 0.0
    %3489 = vmatprep.subr.mxu0 0.0
    %3490 = vmatpush1.msra.mxu0 0.0
    %3491 = vmatprep.subr.mxu0 0.0
    %3492 = vmatpush1.msra.mxu0 0.0
    %3493 = vmatprep.subr.mxu0 0.0
    %3494 = vmatpush1.msra.mxu0 0.0
    %3495 = vmatprep.subr.mxu0 0.0
    %3496 = vmatpush1.msra.mxu0 0.0
    %3497 = vmatprep.subr.mxu0 0.0
    %3498 = vmatpush1.msra.mxu0 0.0
    %3499 = vmatprep.subr.mxu0 0.0
    %3500 = vmatpush1.msra.mxu0 0.0
    %3501 = vmatprep.subr.mxu0 0.0
    %3502 = vmatpush1.msra.mxu0 0.0
    %3503 = vmatprep.subr.mxu0 0.0
    %3504 = vmatpush1.msra.mxu0 0.0
    %3505 = vmatprep.subr.mxu0 0.0
    %3506 = vmatpush1.msra.mxu0 0.0
    %3507 = vmatprep.subr.mxu0 0.0
    %3508 = vmatpush1.msra.mxu0 %v3119
    %3509 = vmatprep.subr.mxu0 0.0
    %3510 = vmatpush2.msra.mxu0 0.0
    %3511 = vmatprep.subr.mxu0 0.0
    %3512 = vmatpush2.msra.mxu0 0.0
    %3513 = vmatprep.subr.mxu0 0.0
    %3514 = vmatpush2.msra.mxu0 0.0
    %3515 = vmatprep.subr.mxu0 0.0
    %3516 = vmatpush2.msra.mxu0 0.0
    %3517 = vmatprep.subr.mxu0 0.0
    %3518 = vmatpush2.msra.mxu0 0.0
    %3519 = vmatprep.subr.mxu0 0.0
    %3520 = vmatpush2.msra.mxu0 0.0
    %3521 = vmatprep.subr.mxu0 0.0
    %3522 = vmatpush2.msra.mxu0 0.0
    %3523 = vmatprep.subr.mxu0 0.0
    %3524 = vmatpush2.msra.mxu0 0.0
    %3525 = vmatprep.subr.mxu0 0.0
    %3526 = vmatpush2.msra.mxu0 0.0
    %3527 = vmatprep.subr.mxu0 0.0
    %3528 = vmatpush2.msra.mxu0 0.0
    %3529 = vmatprep.subr.mxu0 0.0
    %3530 = vmatpush2.msra.mxu0 0.0
    %3531 = vmatprep.subr.mxu0 0.0
    %3532 = vmatpush2.msra.mxu0 0.0
    %3533 = vmatprep.subr.mxu0 0.0
    %3534 = vmatpush2.msra.mxu0 0.0
    %3535 = vmatprep.subr.mxu0 0.0
    %3536 = vmatpush2.msra.mxu0 0.0
    %3537 = vmatprep.subr.mxu0 0.0
    %3538 = vmatpush2.msra.mxu0 0.0
    %3539 = vmatprep.subr.mxu0 0.0
    %3540 = vmatpush2.msra.mxu0 0.0
    %3541 = vmatprep.mubr.f32.mxu0 0.0
    %3542 = vmatmul.mubr.f32.gmra.mxu0 %v3475
    %v3543 = vpop.f32.mrf.mxu0
    %v3544 = vadd.f32 0.0, %v3543
    %v3545 = vpop.f32.mrf.mxu0
    %3546 = vdwg.mxu0
    %v3548 = vsel %vm1323, %v3441, 0
    %3550 = vmatprep.subr.mxu0 0.0
    %3551 = vmatpush1.msra.mxu0 0.0
    %3552 = vmatprep.subr.mxu0 0.0
    %3553 = vmatpush1.msra.mxu0 0.0
    %3554 = vmatprep.subr.mxu0 0.0
    %3555 = vmatpush1.msra.mxu0 0.0
    %3556 = vmatprep.subr.mxu0 0.0
    %3557 = vmatpush1.msra.mxu0 0.0
    %3558 = vmatprep.subr.mxu0 0.0
    %3559 = vmatpush1.msra.mxu0 0.0
    %3560 = vmatprep.subr.mxu0 0.0
    %3561 = vmatpush1.msra.mxu0 0.0
    %3562 = vmatprep.subr.mxu0 0.0
    %3563 = vmatpush1.msra.mxu0 0.0
    %3564 = vmatprep.subr.mxu0 0.0
    %3565 = vmatpush1.msra.mxu0 0.0
    %3566 = vmatprep.subr.mxu0 0.0
    %3567 = vmatpush1.msra.mxu0 0.0
    %3568 = vmatprep.subr.mxu0 0.0
    %3569 = vmatpush1.msra.mxu0 0.0
    %3570 = vmatprep.subr.mxu0 0.0
    %3571 = vmatpush1.msra.mxu0 0.0
    %3572 = vmatprep.subr.mxu0 0.0
    %3573 = vmatpush1.msra.mxu0 0.0
    %3574 = vmatprep.subr.mxu0 0.0
    %3575 = vmatpush1.msra.mxu0 0.0
    %3576 = vmatprep.subr.mxu0 0.0
    %3577 = vmatpush1.msra.mxu0 0.0
    %3578 = vmatprep.subr.mxu0 0.0
    %3579 = vmatpush1.msra.mxu0 0.0
    %3580 = vmatprep.subr.mxu0 0.0
    %3581 = vmatpush1.msra.mxu0 %v3129
    %3582 = vmatprep.subr.mxu0 0.0
    %3583 = vmatpush2.msra.mxu0 0.0
    %3584 = vmatprep.subr.mxu0 0.0
    %3585 = vmatpush2.msra.mxu0 0.0
    %3586 = vmatprep.subr.mxu0 0.0
    %3587 = vmatpush2.msra.mxu0 0.0
    %3588 = vmatprep.subr.mxu0 0.0
    %3589 = vmatpush2.msra.mxu0 0.0
    %3590 = vmatprep.subr.mxu0 0.0
    %3591 = vmatpush2.msra.mxu0 0.0
    %3592 = vmatprep.subr.mxu0 0.0
    %3593 = vmatpush2.msra.mxu0 0.0
    %3594 = vmatprep.subr.mxu0 0.0
    %3595 = vmatpush2.msra.mxu0 0.0
    %3596 = vmatprep.subr.mxu0 0.0
    %3597 = vmatpush2.msra.mxu0 0.0
    %3598 = vmatprep.subr.mxu0 0.0
    %3599 = vmatpush2.msra.mxu0 0.0
    %3600 = vmatprep.subr.mxu0 0.0
    %3601 = vmatpush2.msra.mxu0 0.0
    %3602 = vmatprep.subr.mxu0 0.0
    %3603 = vmatpush2.msra.mxu0 0.0
    %3604 = vmatprep.subr.mxu0 0.0
    %3605 = vmatpush2.msra.mxu0 0.0
    %3606 = vmatprep.subr.mxu0 0.0
    %3607 = vmatpush2.msra.mxu0 0.0
    %3608 = vmatprep.subr.mxu0 0.0
    %3609 = vmatpush2.msra.mxu0 0.0
    %3610 = vmatprep.subr.mxu0 0.0
    %3611 = vmatpush2.msra.mxu0 0.0
    %3612 = vmatprep.subr.mxu0 0.0
    %3613 = vmatpush2.msra.mxu0 0.0
    %3614 = vmatprep.mubr.f32.mxu0 0.0
    %3615 = vmatmul.mubr.f32.gmra.mxu0 %v3548
    %v3616 = vpop.f32.mrf.mxu0
    %v3617 = vadd.f32 0.0, %v3616
    %v3618 = vpop.f32.mrf.mxu0
    %3619 = vdwg.mxu0
    %v3621 = vsel %vm439, %v3235, 0
    %v3624 = vsel %vm439, %v3334, 0
    %3626 = vmatprep.subr.mxu0 0.0
    %3627 = vmatpush1.xpose.msra.mxu0 0.0
    %3628 = vmatprep.subr.mxu0 0.0
    %3629 = vmatpush1.xpose.msra.mxu0 0.0
    %3630 = vmatprep.subr.mxu0 0.0
    %3631 = vmatpush1.xpose.msra.mxu0 0.0
    %3632 = vmatprep.subr.mxu0 0.0
    %3633 = vmatpush1.xpose.msra.mxu0 0.0
    %3634 = vmatprep.subr.mxu0 0.0
    %3635 = vmatpush1.xpose.msra.mxu0 0.0
    %3636 = vmatprep.subr.mxu0 0.0
    %3637 = vmatpush1.xpose.msra.mxu0 0.0
    %3638 = vmatprep.subr.mxu0 0.0
    %3639 = vmatpush1.xpose.msra.mxu0 0.0
    %3640 = vmatprep.subr.mxu0 0.0
    %3641 = vmatpush1.xpose.msra.mxu0 0.0
    %3642 = vmatprep.subr.mxu0 0.0
    %3643 = vmatpush1.xpose.msra.mxu0 0.0
    %3644 = vmatprep.subr.mxu0 0.0
    %3645 = vmatpush1.xpose.msra.mxu0 0.0
    %3646 = vmatprep.subr.mxu0 0.0
    %3647 = vmatpush1.xpose.msra.mxu0 0.0
    %3648 = vmatprep.subr.mxu0 0.0
    %3649 = vmatpush1.xpose.msra.mxu0 0.0
    %3650 = vmatprep.subr.mxu0 0.0
    %3651 = vmatpush1.xpose.msra.mxu0 0.0
    %3652 = vmatprep.subr.mxu0 0.0
    %3653 = vmatpush1.xpose.msra.mxu0 0.0
    %3654 = vmatprep.subr.mxu0 0.0
    %3655 = vmatpush1.xpose.msra.mxu0 0.0
    %3656 = vmatprep.subr.mxu0 0.0
    %3657 = vmatpush1.xpose.msra.mxu0 %v3624
    %3658 = vmatprep.subr.mxu0 0.0
    %3659 = vmatpush2.xpose.msra.mxu0 0.0
    %3660 = vmatprep.subr.mxu0 0.0
    %3661 = vmatpush2.xpose.msra.mxu0 0.0
    %3662 = vmatprep.subr.mxu0 0.0
    %3663 = vmatpush2.xpose.msra.mxu0 0.0
    %3664 = vmatprep.subr.mxu0 0.0
    %3665 = vmatpush2.xpose.msra.mxu0 0.0
    %3666 = vmatprep.subr.mxu0 0.0
    %3667 = vmatpush2.xpose.msra.mxu0 0.0
    %3668 = vmatprep.subr.mxu0 0.0
    %3669 = vmatpush2.xpose.msra.mxu0 0.0
    %3670 = vmatprep.subr.mxu0 0.0
    %3671 = vmatpush2.xpose.msra.mxu0 0.0
    %3672 = vmatprep.subr.mxu0 0.0
    %3673 = vmatpush2.xpose.msra.mxu0 0.0
    %3674 = vmatprep.subr.mxu0 0.0
    %3675 = vmatpush2.xpose.msra.mxu0 0.0
    %3676 = vmatprep.subr.mxu0 0.0
    %3677 = vmatpush2.xpose.msra.mxu0 0.0
    %3678 = vmatprep.subr.mxu0 0.0
    %3679 = vmatpush2.xpose.msra.mxu0 0.0
    %3680 = vmatprep.subr.mxu0 0.0
    %3681 = vmatpush2.xpose.msra.mxu0 0.0
    %3682 = vmatprep.subr.mxu0 0.0
    %3683 = vmatpush2.xpose.msra.mxu0 0.0
    %3684 = vmatprep.subr.mxu0 0.0
    %3685 = vmatpush2.xpose.msra.mxu0 0.0
    %3686 = vmatprep.subr.mxu0 0.0
    %3687 = vmatpush2.xpose.msra.mxu0 0.0
    %3688 = vmatprep.subr.mxu0 0.0
    %3689 = vmatpush2.xpose.msra.mxu0 0.0
    %3690 = vmatprep.mubr.f32.mxu0 0.0
    %3691 = vmatmul.mubr.f32.gmra.mxu0 %v3621
    %v3692 = vpop.f32.mrf.mxu0
    %v3693 = vadd.f32 0.0, %v3692
    %v3694 = vpop.f32.mrf.mxu0
    %3695 = vdwg.mxu0
    %v3696 = vmul.f32 %v3693, 0.17677669
    %v3697 = vsel %vm1613, %v3696, -10000000.0
    %v3698 = vsel %vm1323, %v3697, -inf
    %v3699 = vrot.slane %v3698, 4
    %v3700 = vmax.f32 %v3698, %v3699
    %v3701 = vrot.slane %v3700, 2
    %v3702 = vmax.f32 %v3700, %v3701
    %v3703 = vrot.slane %v3702, 1
    %v3704 = vmax.f32 %v3702, %v3703
    %v3705 = vsub.f32 %v3697, %v3704
    %v3706 = vmul.f32 %v3705, 1.442695
    %v3707 = vpow.pop %v3706
    %v3708 = vsel %vm1323, %v3707, 0.0
    %v3709 = vrot.slane %v3708, 4
    %v3710 = vadd.f32 %v3708, %v3709
    %v3711 = vrot.slane %v3710, 2
    %v3712 = vadd.f32 %v3710, %v3711
    %v3713 = vrot.slane %v3712, 1
    %v3714 = vadd.f32 %v3712, %v3713
    %v3715 = vrcp.pop %v3714
    %v3716 = vmul.f32 %v3707, %v3715
    %3717 = vmax.xlane.f32.xlu0 %v3698
    %v3718 = vpop.xlane.xlu0 %3717
    %v3719 = vsub.f32 %v3697, %v3718
    %v3720 = vmul.f32 %v3719, 1.442695
    %v3721 = vpow.pop %v3720
    %v3722 = vsel %vm1323, %v3721, 0.0
    %3723 = vadd.xlane.f32.xlu0 %v3722
    %v3724 = vpop.xlane.xlu0 %3723
    %v3725 = vrcp.pop %v3724
    %v3726 = vmul.f32 %v3721, %v3725
    %3727 = vxpose.xlu0.b32.start [1/16] %v3716, 128
    %3728 = vxpose.xlu0.b32.cont [2/16] 0.0, 128
    %3729 = vxpose.xlu0.b32.cont [3/16] 0.0, 128
    %3730 = vxpose.xlu0.b32.cont [4/16] 0.0, 128
    %3731 = vxpose.xlu0.b32.cont [5/16] 0.0, 128
    %3732 = vxpose.xlu0.b32.cont [6/16] 0.0, 128
    %3733 = vxpose.xlu0.b32.cont [7/16] 0.0, 128
    %3734 = vxpose.xlu0.b32.cont [8/16] 0.0, 128
    %3735 = vxpose.xlu0.b32.cont [9/16] 0.0, 128
    %3736 = vxpose.xlu0.b32.cont [10/16] 0.0, 128
    %3737 = vxpose.xlu0.b32.cont [11/16] 0.0, 128
    %3738 = vxpose.xlu0.b32.cont [12/16] 0.0, 128
    %3739 = vxpose.xlu0.b32.cont [13/16] 0.0, 128
    %3740 = vxpose.xlu0.b32.cont [14/16] 0.0, 128
    %3741 = vxpose.xlu0.b32.cont [15/16] 0.0, 128
    %3742 = vxpose.xlu0.b32.end [16/16] 0.0, 128
    %v3743 = vpop.trf.xlu0
    %v3744 = vpop.trf.xlu0
    %v3745 = vpop.trf.xlu0
    %v3746 = vpop.trf.xlu0
    %v3747 = vpop.trf.xlu0
    %v3748 = vpop.trf.xlu0
    %v3749 = vpop.trf.xlu0
    %v3750 = vpop.trf.xlu0
    %v3751 = vpop.trf.xlu0
    %v3752 = vpop.trf.xlu0
    %v3753 = vpop.trf.xlu0
    %v3754 = vpop.trf.xlu0
    %v3755 = vpop.trf.xlu0
    %v3756 = vpop.trf.xlu0
    %v3757 = vpop.trf.xlu0
    %v3758 = vpop.trf.xlu0
    %v3760 = vsel %vm1323, %v3743, 0
    %3762 = vmatprep.subr.mxu0 0.0
    %3763 = vmatpush1.msra.mxu0 0.0
    %3764 = vmatprep.subr.mxu0 0.0
    %3765 = vmatpush1.msra.mxu0 0.0
    %3766 = vmatprep.subr.mxu0 0.0
    %3767 = vmatpush1.msra.mxu0 0.0
    %3768 = vmatprep.subr.mxu0 0.0
    %3769 = vmatpush1.msra.mxu0 0.0
    %3770 = vmatprep.subr.mxu0 0.0
    %3771 = vmatpush1.msra.mxu0 0.0
    %3772 = vmatprep.subr.mxu0 0.0
    %3773 = vmatpush1.msra.mxu0 0.0
    %3774 = vmatprep.subr.mxu0 0.0
    %3775 = vmatpush1.msra.mxu0 0.0
    %3776 = vmatprep.subr.mxu0 0.0
    %3777 = vmatpush1.msra.mxu0 0.0
    %3778 = vmatprep.subr.mxu0 0.0
    %3779 = vmatpush1.msra.mxu0 0.0
    %3780 = vmatprep.subr.mxu0 0.0
    %3781 = vmatpush1.msra.mxu0 0.0
    %3782 = vmatprep.subr.mxu0 0.0
    %3783 = vmatpush1.msra.mxu0 0.0
    %3784 = vmatprep.subr.mxu0 0.0
    %3785 = vmatpush1.msra.mxu0 0.0
    %3786 = vmatprep.subr.mxu0 0.0
    %3787 = vmatpush1.msra.mxu0 0.0
    %3788 = vmatprep.subr.mxu0 0.0
    %3789 = vmatpush1.msra.mxu0 0.0
    %3790 = vmatprep.subr.mxu0 0.0
    %3791 = vmatpush1.msra.mxu0 0.0
    %3792 = vmatprep.subr.mxu0 0.0
    %3793 = vmatpush1.msra.mxu0 %v3120
    %3794 = vmatprep.subr.mxu0 0.0
    %3795 = vmatpush2.msra.mxu0 0.0
    %3796 = vmatprep.subr.mxu0 0.0
    %3797 = vmatpush2.msra.mxu0 0.0
    %3798 = vmatprep.subr.mxu0 0.0
    %3799 = vmatpush2.msra.mxu0 0.0
    %3800 = vmatprep.subr.mxu0 0.0
    %3801 = vmatpush2.msra.mxu0 0.0
    %3802 = vmatprep.subr.mxu0 0.0
    %3803 = vmatpush2.msra.mxu0 0.0
    %3804 = vmatprep.subr.mxu0 0.0
    %3805 = vmatpush2.msra.mxu0 0.0
    %3806 = vmatprep.subr.mxu0 0.0
    %3807 = vmatpush2.msra.mxu0 0.0
    %3808 = vmatprep.subr.mxu0 0.0
    %3809 = vmatpush2.msra.mxu0 0.0
    %3810 = vmatprep.subr.mxu0 0.0
    %3811 = vmatpush2.msra.mxu0 0.0
    %3812 = vmatprep.subr.mxu0 0.0
    %3813 = vmatpush2.msra.mxu0 0.0
    %3814 = vmatprep.subr.mxu0 0.0
    %3815 = vmatpush2.msra.mxu0 0.0
    %3816 = vmatprep.subr.mxu0 0.0
    %3817 = vmatpush2.msra.mxu0 0.0
    %3818 = vmatprep.subr.mxu0 0.0
    %3819 = vmatpush2.msra.mxu0 0.0
    %3820 = vmatprep.subr.mxu0 0.0
    %3821 = vmatpush2.msra.mxu0 0.0
    %3822 = vmatprep.subr.mxu0 0.0
    %3823 = vmatpush2.msra.mxu0 0.0
    %3824 = vmatprep.subr.mxu0 0.0
    %3825 = vmatpush2.msra.mxu0 0.0
    %3826 = vmatprep.mubr.f32.mxu0 0.0
    %3827 = vmatmul.mubr.f32.gmra.mxu0 %v3760
    %v3828 = vpop.f32.mrf.mxu0
    %v3829 = vadd.f32 0.0, %v3828
    %v3830 = vpop.f32.mrf.mxu0
    %3831 = vdwg.mxu0
    %v3833 = vsel %vm1323, %v3726, 0
    %3835 = vmatprep.subr.mxu0 0.0
    %3836 = vmatpush1.msra.mxu0 0.0
    %3837 = vmatprep.subr.mxu0 0.0
    %3838 = vmatpush1.msra.mxu0 0.0
    %3839 = vmatprep.subr.mxu0 0.0
    %3840 = vmatpush1.msra.mxu0 0.0
    %3841 = vmatprep.subr.mxu0 0.0
    %3842 = vmatpush1.msra.mxu0 0.0
    %3843 = vmatprep.subr.mxu0 0.0
    %3844 = vmatpush1.msra.mxu0 0.0
    %3845 = vmatprep.subr.mxu0 0.0
    %3846 = vmatpush1.msra.mxu0 0.0
    %3847 = vmatprep.subr.mxu0 0.0
    %3848 = vmatpush1.msra.mxu0 0.0
    %3849 = vmatprep.subr.mxu0 0.0
    %3850 = vmatpush1.msra.mxu0 0.0
    %3851 = vmatprep.subr.mxu0 0.0
    %3852 = vmatpush1.msra.mxu0 0.0
    %3853 = vmatprep.subr.mxu0 0.0
    %3854 = vmatpush1.msra.mxu0 0.0
    %3855 = vmatprep.subr.mxu0 0.0
    %3856 = vmatpush1.msra.mxu0 0.0
    %3857 = vmatprep.subr.mxu0 0.0
    %3858 = vmatpush1.msra.mxu0 0.0
    %3859 = vmatprep.subr.mxu0 0.0
    %3860 = vmatpush1.msra.mxu0 0.0
    %3861 = vmatprep.subr.mxu0 0.0
    %3862 = vmatpush1.msra.mxu0 0.0
    %3863 = vmatprep.subr.mxu0 0.0
    %3864 = vmatpush1.msra.mxu0 0.0
    %3865 = vmatprep.subr.mxu0 0.0
    %3866 = vmatpush1.msra.mxu0 %v3130
    %3867 = vmatprep.subr.mxu0 0.0
    %3868 = vmatpush2.msra.mxu0 0.0
    %3869 = vmatprep.subr.mxu0 0.0
    %3870 = vmatpush2.msra.mxu0 0.0
    %3871 = vmatprep.subr.mxu0 0.0
    %3872 = vmatpush2.msra.mxu0 0.0
    %3873 = vmatprep.subr.mxu0 0.0
    %3874 = vmatpush2.msra.mxu0 0.0
    %3875 = vmatprep.subr.mxu0 0.0
    %3876 = vmatpush2.msra.mxu0 0.0
    %3877 = vmatprep.subr.mxu0 0.0
    %3878 = vmatpush2.msra.mxu0 0.0
    %3879 = vmatprep.subr.mxu0 0.0
    %3880 = vmatpush2.msra.mxu0 0.0
    %3881 = vmatprep.subr.mxu0 0.0
    %3882 = vmatpush2.msra.mxu0 0.0
    %3883 = vmatprep.subr.mxu0 0.0
    %3884 = vmatpush2.msra.mxu0 0.0
    %3885 = vmatprep.subr.mxu0 0.0
    %3886 = vmatpush2.msra.mxu0 0.0
    %3887 = vmatprep.subr.mxu0 0.0
    %3888 = vmatpush2.msra.mxu0 0.0
    %3889 = vmatprep.subr.mxu0 0.0
    %3890 = vmatpush2.msra.mxu0 0.0
    %3891 = vmatprep.subr.mxu0 0.0
    %3892 = vmatpush2.msra.mxu0 0.0
    %3893 = vmatprep.subr.mxu0 0.0
    %3894 = vmatpush2.msra.mxu0 0.0
    %3895 = vmatprep.subr.mxu0 0.0
    %3896 = vmatpush2.msra.mxu0 0.0
    %3897 = vmatprep.subr.mxu0 0.0
    %3898 = vmatpush2.msra.mxu0 0.0
    %3899 = vmatprep.mubr.f32.mxu0 0.0
    %3900 = vmatmul.mubr.f32.gmra.mxu0 %v3833
    %v3901 = vpop.f32.mrf.mxu0
    %v3902 = vadd.f32 0.0, %v3901
    %v3903 = vpop.f32.mrf.mxu0
    %3904 = vdwg.mxu0
    %3907 = vrot.lane.b32.xlu0 %v3617, 96
    %v3908 = vpop.permute.xlu0 %3907
    %3909 = vrot.lane.b32.xlu0 %v3902, 96
    %v3910 = vpop.permute.xlu0 %3909
    %v3913 = vsel %vm470, %v3119, %v3908
    %v3914 = vsel %vm470, %v3120, %v3910
    %v3915 = vsub.f32 %v3119, %v3617
    %v3916 = vsub.f32 %v3120, %v3902
    %3919 = vrot.lane.b32.xlu0 %v3915, 96
    %v3920 = vpop.permute.xlu0 %3919
    %3921 = vrot.lane.b32.xlu0 %v3916, 96
    %v3922 = vpop.permute.xlu0 %3921
    %v3925 = vsel %vm470, %v3119, %v3920
    %v3926 = vsel %vm470, %v3120, %v3922
    %v3927 = vmul.f32 %v3119, %v3617
    %v3928 = vmul.f32 %v3120, %v3902
    %3931 = vrot.lane.b32.xlu0 %v3927, 96
    %v3932 = vpop.permute.xlu0 %3931
    %3933 = vrot.lane.b32.xlu0 %v3928, 96
    %v3934 = vpop.permute.xlu0 %3933
    %v3937 = vsel %vm470, %v3119, %v3932
    %v3938 = vsel %vm470, %v3120, %v3934
    %v3940 = vlaneseq
    %v3941 = vshrl.u32 %v3940, 7
    %v3942 = vsub.s32 0, %v3941
    %v3943 = vrot.slane %v2513, %v3942
    %v3945 = vsel %vm441, %v3908, 0
    %v3947 = vsel %vm441, %v3910, 0
    %v3949 = vsel %vm441, %v3920, 0
    %v3951 = vsel %vm441, %v3922, 0
    %v3953 = vsel %vm441, %v3932, 0
    %v3955 = vsel %vm441, %v3934, 0
    %3957 = vmatprep.subr.mxu0 0.0
    %3958 = vmatpush1.msra.mxu0 %v2504
    %3959 = vmatprep.subr.mxu0 0.0
    %3960 = vmatpush1.msra.mxu0 %v2503
    %3961 = vmatprep.subr.mxu0 0.0
    %3962 = vmatpush1.msra.mxu0 %v2502
    %3963 = vmatprep.subr.mxu0 0.0
    %3964 = vmatpush1.msra.mxu0 %v2501
    %3965 = vmatprep.subr.mxu0 0.0
    %3966 = vmatpush1.msra.mxu0 %v2500
    %3967 = vmatprep.subr.mxu0 0.0
    %3968 = vmatpush1.msra.mxu0 %v2499
    %3969 = vmatprep.subr.mxu0 0.0
    %3970 = vmatpush1.msra.mxu0 %v2498
    %3971 = vmatprep.subr.mxu0 0.0
    %3972 = vmatpush1.msra.mxu0 %v2497
    %3973 = vmatprep.subr.mxu0 0.0
    %3974 = vmatpush1.msra.mxu0 %v2496
    %3975 = vmatprep.subr.mxu0 0.0
    %3976 = vmatpush1.msra.mxu0 %v2495
    %3977 = vmatprep.subr.mxu0 0.0
    %3978 = vmatpush1.msra.mxu0 %v2494
    %3979 = vmatprep.subr.mxu0 0.0
    %3980 = vmatpush1.msra.mxu0 %v2493
    %3981 = vmatprep.subr.mxu0 0.0
    %3982 = vmatpush1.msra.mxu0 %v2492
    %3983 = vmatprep.subr.mxu0 0.0
    %3984 = vmatpush1.msra.mxu0 %v2491
    %3985 = vmatprep.subr.mxu0 0.0
    %3986 = vmatpush1.msra.mxu0 %v2490
    %3987 = vmatprep.subr.mxu0 0.0
    %3988 = vmatpush1.msra.mxu0 %v2489
    %3989 = vmatprep.subr.mxu0 0.0
    %3990 = vmatpush2.msra.mxu0 0.0
    %3991 = vmatprep.subr.mxu0 0.0
    %3992 = vmatpush2.msra.mxu0 0.0
    %3993 = vmatprep.subr.mxu0 0.0
    %3994 = vmatpush2.msra.mxu0 0.0
    %3995 = vmatprep.subr.mxu0 0.0
    %3996 = vmatpush2.msra.mxu0 0.0
    %3997 = vmatprep.subr.mxu0 0.0
    %3998 = vmatpush2.msra.mxu0 0.0
    %3999 = vmatprep.subr.mxu0 0.0
    %4000 = vmatpush2.msra.mxu0 0.0
    %4001 = vmatprep.subr.mxu0 0.0
    %4002 = vmatpush2.msra.mxu0 0.0
    %4003 = vmatprep.subr.mxu0 0.0
    %4004 = vmatpush2.msra.mxu0 0.0
    %4005 = vmatprep.subr.mxu0 0.0
    %4006 = vmatpush2.msra.mxu0 %v2512
    %4007 = vmatprep.subr.mxu0 0.0
    %4008 = vmatpush2.msra.mxu0 %v2511
    %4009 = vmatprep.subr.mxu0 0.0
    %4010 = vmatpush2.msra.mxu0 %v2510
    %4011 = vmatprep.subr.mxu0 0.0
    %4012 = vmatpush2.msra.mxu0 %v2509
    %4013 = vmatprep.subr.mxu0 0.0
    %4014 = vmatpush2.msra.mxu0 %v2508
    %4015 = vmatprep.subr.mxu0 0.0
    %4016 = vmatpush2.msra.mxu0 %v2507
    %4017 = vmatprep.subr.mxu0 0.0
    %4018 = vmatpush2.msra.mxu0 %v2506
    %4019 = vmatprep.subr.mxu0 0.0
    %4020 = vmatpush2.msra.mxu0 %v2505
    %4021 = vmatprep.mubr.f32.mxu0 %v3945
    %4022 = vmatmul.mubr.f32.gmra.mxu0 %v3913
    %v4023 = vpop.f32.mrf.mxu0
    %v4024 = vadd.f32 %v3943, %v4023
    %v4025 = vpop.f32.mrf.mxu0
    %4026 = vmatprep.mubr.f32.mxu0 %v3947
    %4027 = vmatmul.mubr.f32.gmra.mxu0 %v3914
    %v4028 = vpop.f32.mrf.mxu0
    %v4029 = vadd.f32 %v3943, %v4028
    %v4030 = vpop.f32.mrf.mxu0
    %4031 = vmatprep.mubr.f32.mxu0 %v3949
    %4032 = vmatmul.mubr.f32.gmra.mxu0 %v3925
    %v4033 = vpop.f32.mrf.mxu0
    %v4034 = vadd.f32 %v3943, %v4033
    %v4035 = vpop.f32.mrf.mxu0
    %4036 = vmatprep.mubr.f32.mxu0 %v3951
    %4037 = vmatmul.mubr.f32.gmra.mxu0 %v3926
    %v4038 = vpop.f32.mrf.mxu0
    %v4039 = vadd.f32 %v3943, %v4038
    %v4040 = vpop.f32.mrf.mxu0
    %4041 = vmatprep.mubr.f32.mxu0 %v3953
    %4042 = vmatmul.mubr.f32.gmra.mxu0 %v3937
    %v4043 = vpop.f32.mrf.mxu0
    %v4044 = vadd.f32 %v3943, %v4043
    %v4045 = vpop.f32.mrf.mxu0
    %4046 = vmatprep.mubr.f32.mxu0 %v3955
    %4047 = vmatmul.mubr.f32.gmra.mxu0 %v3938
    %v4048 = vpop.f32.mrf.mxu0
    %v4049 = vadd.f32 %v3943, %v4048
    %v4050 = vpop.f32.mrf.mxu0
    %4051 = vdwg.mxu0
    %v4052 = vmul.f32 %v4024, 0.5
    %v4053 = vmul.f32 %v4029, 0.5
    %v4054 = vmul.f32 %v4034, 0.5
    %v4055 = vmul.f32 %v4039, 0.5
    %v4056 = vmul.f32 %v4044, 0.5
    %v4057 = vmul.f32 %v4049, 0.5
    %v4058 = vmul.f32 %v4024, 0.7978846
    %v4059 = vmul.f32 %v4029, 0.7978846
    %v4060 = vmul.f32 %v4034, 0.7978846
    %v4061 = vmul.f32 %v4039, 0.7978846
    %v4062 = vmul.f32 %v4044, 0.7978846
    %v4063 = vmul.f32 %v4049, 0.7978846
    %v4064 = vmul.f32 %v4024, 0.044715
    %v4065 = vmul.f32 %v4029, 0.044715
    %v4066 = vmul.f32 %v4034, 0.044715
    %v4067 = vmul.f32 %v4039, 0.044715
    %v4068 = vmul.f32 %v4044, 0.044715
    %v4069 = vmul.f32 %v4049, 0.044715
    %v4070 = vmul.f32 %v4064, %v4024
    %v4071 = vmul.f32 %v4065, %v4029
    %v4072 = vmul.f32 %v4066, %v4034
    %v4073 = vmul.f32 %v4067, %v4039
    %v4074 = vmul.f32 %v4068, %v4044
    %v4075 = vmul.f32 %v4069, %v4049
    %v4076 = vadd.f32 %v4070, 1.0
    %v4077 = vadd.f32 %v4071, 1.0
    %v4078 = vadd.f32 %v4072, 1.0
    %v4079 = vadd.f32 %v4073, 1.0
    %v4080 = vadd.f32 %v4074, 1.0
    %v4081 = vadd.f32 %v4075, 1.0
    %v4082 = vmul.f32 %v4058, %v4076
    %v4083 = vmul.f32 %v4059, %v4077
    %v4084 = vmul.f32 %v4060, %v4078
    %v4085 = vmul.f32 %v4061, %v4079
    %v4086 = vmul.f32 %v4062, %v4080
    %v4087 = vmul.f32 %v4063, %v4081
    %v4088 = vtanh.pop %v4082
    %v4089 = vtanh.pop %v4083
    %v4090 = vtanh.pop %v4084
    %v4091 = vtanh.pop %v4085
    %v4092 = vtanh.pop %v4086
    %v4093 = vtanh.pop %v4087
    %v4094 = vadd.f32 %v4088, 1.0
    %v4095 = vadd.f32 %v4089, 1.0
    %v4096 = vadd.f32 %v4090, 1.0
    %v4097 = vadd.f32 %v4091, 1.0
    %v4098 = vadd.f32 %v4092, 1.0
    %v4099 = vadd.f32 %v4093, 1.0
    %v4100 = vmul.f32 %v4052, %v4094
    %v4101 = vmul.f32 %v4053, %v4095
    %v4102 = vmul.f32 %v4054, %v4096
    %v4103 = vmul.f32 %v4055, %v4097
    %v4104 = vmul.f32 %v4056, %v4098
    %v4105 = vmul.f32 %v4057, %v4099
    %4108 = vrot.lane.b32.xlu0 %v4102, 32
    %v4109 = vpop.permute.xlu0 %4108
    %4110 = vrot.lane.b32.xlu0 %v4103, 32
    %v4111 = vpop.permute.xlu0 %4110
    %4116 = vrot.lane.b32.xlu0 %v4104, 64
    %v4117 = vpop.permute.xlu0 %4116
    %4118 = vrot.lane.b32.xlu0 %v4105, 64
    %v4119 = vpop.permute.xlu0 %4118
    %v4122 = vsel %vm439, %v4100, %v4109
    %v4123 = vsel %vm439, %v4101, %v4111
    %v4124 = vsel %vm441, %v4122, %v4117
    %v4125 = vsel %vm441, %v4123, %v4119
    %v4127 = vlaneseq
    %v4128 = vshrl.u32 %v4127, 7
    %v4129 = vsub.s32 0, %v4128
    %v4130 = vrot.slane %v2526, %v4129
    %v4133 = vsel %vm470, %v4124, 0
    %v4136 = vsel %vm470, %v4125, 0
    %4138 = vmatprep.subr.mxu0 0.0
    %4139 = vmatpush1.msra.mxu0 0.0
    %4140 = vmatprep.subr.mxu0 0.0
    %4141 = vmatpush1.msra.mxu0 0.0
    %4142 = vmatprep.subr.mxu0 0.0
    %4143 = vmatpush1.msra.mxu0 0.0
    %4144 = vmatprep.subr.mxu0 0.0
    %4145 = vmatpush1.msra.mxu0 0.0
    %4146 = vmatprep.subr.mxu0 0.0
    %4147 = vmatpush1.msra.mxu0 %v2525
    %4148 = vmatprep.subr.mxu0 0.0
    %4149 = vmatpush1.msra.mxu0 %v2524
    %4150 = vmatprep.subr.mxu0 0.0
    %4151 = vmatpush1.msra.mxu0 %v2523
    %4152 = vmatprep.subr.mxu0 0.0
    %4153 = vmatpush1.msra.mxu0 %v2522
    %4154 = vmatprep.subr.mxu0 0.0
    %4155 = vmatpush1.msra.mxu0 %v2521
    %4156 = vmatprep.subr.mxu0 0.0
    %4157 = vmatpush1.msra.mxu0 %v2520
    %4158 = vmatprep.subr.mxu0 0.0
    %4159 = vmatpush1.msra.mxu0 %v2519
    %4160 = vmatprep.subr.mxu0 0.0
    %4161 = vmatpush1.msra.mxu0 %v2518
    %4162 = vmatprep.subr.mxu0 0.0
    %4163 = vmatpush1.msra.mxu0 %v2517
    %4164 = vmatprep.subr.mxu0 0.0
    %4165 = vmatpush1.msra.mxu0 %v2516
    %4166 = vmatprep.subr.mxu0 0.0
    %4167 = vmatpush1.msra.mxu0 %v2515
    %4168 = vmatprep.subr.mxu0 0.0
    %4169 = vmatpush1.msra.mxu0 %v2514
    %4170 = vmatprep.subr.mxu0 0.0
    %4171 = vmatpush2.msra.mxu0 0.0
    %4172 = vmatprep.subr.mxu0 0.0
    %4173 = vmatpush2.msra.mxu0 0.0
    %4174 = vmatprep.subr.mxu0 0.0
    %4175 = vmatpush2.msra.mxu0 0.0
    %4176 = vmatprep.subr.mxu0 0.0
    %4177 = vmatpush2.msra.mxu0 0.0
    %4178 = vmatprep.subr.mxu0 0.0
    %4179 = vmatpush2.msra.mxu0 0.0
    %4180 = vmatprep.subr.mxu0 0.0
    %4181 = vmatpush2.msra.mxu0 0.0
    %4182 = vmatprep.subr.mxu0 0.0
    %4183 = vmatpush2.msra.mxu0 0.0
    %4184 = vmatprep.subr.mxu0 0.0
    %4185 = vmatpush2.msra.mxu0 0.0
    %4186 = vmatprep.subr.mxu0 0.0
    %4187 = vmatpush2.msra.mxu0 0.0
    %4188 = vmatprep.subr.mxu0 0.0
    %4189 = vmatpush2.msra.mxu0 0.0
    %4190 = vmatprep.subr.mxu0 0.0
    %4191 = vmatpush2.msra.mxu0 0.0
    %4192 = vmatprep.subr.mxu0 0.0
    %4193 = vmatpush2.msra.mxu0 0.0
    %4194 = vmatprep.subr.mxu0 0.0
    %4195 = vmatpush2.msra.mxu0 0.0
    %4196 = vmatprep.subr.mxu0 0.0
    %4197 = vmatpush2.msra.mxu0 0.0
    %4198 = vmatprep.subr.mxu0 0.0
    %4199 = vmatpush2.msra.mxu0 0.0
    %4200 = vmatprep.subr.mxu0 0.0
    %4201 = vmatpush2.msra.mxu0 0.0
    %4202 = vmatprep.mubr.f32.mxu0 0.0
    %4203 = vmatmul.mubr.f32.gmra.mxu0 %v4133
    %v4204 = vpop.f32.mrf.mxu0
    %v4205 = vadd.f32 %v4130, %v4204
    %v4206 = vpop.f32.mrf.mxu0
    %4207 = vmatprep.mubr.f32.mxu0 0.0
    %4208 = vmatmul.mubr.f32.gmra.mxu0 %v4136
    %v4209 = vpop.f32.mrf.mxu0
    %v4210 = vadd.f32 %v4130, %v4209
    %v4211 = vpop.f32.mrf.mxu0
    %4212 = vdwg.mxu0
    %v4213 = vmul.f32 %v4205, 0.5
    %v4214 = vmul.f32 %v4210, 0.5
    %v4215 = vmul.f32 %v4205, 0.7978846
    %v4216 = vmul.f32 %v4210, 0.7978846
    %v4217 = vmul.f32 %v4205, 0.044715
    %v4218 = vmul.f32 %v4210, 0.044715
    %v4219 = vmul.f32 %v4217, %v4205
    %v4220 = vmul.f32 %v4218, %v4210
    %v4221 = vadd.f32 %v4219, 1.0
    %v4222 = vadd.f32 %v4220, 1.0
    %v4223 = vmul.f32 %v4215, %v4221
    %v4224 = vmul.f32 %v4216, %v4222
    %v4225 = vtanh.pop %v4223
    %v4226 = vtanh.pop %v4224
    %v4227 = vadd.f32 %v4225, 1.0
    %v4228 = vadd.f32 %v4226, 1.0
    %v4229 = vmul.f32 %v4213, %v4227
    %v4230 = vmul.f32 %v4214, %v4228
    %4233 = vrot.lane.b32.xlu0 %v3544, 96
    %v4234 = vpop.permute.xlu0 %4233
    %4235 = vrot.lane.b32.xlu0 %v3829, 96
    %v4236 = vpop.permute.xlu0 %4235
    %v4239 = vsel %vm470, %v3129, %v4234
    %v4240 = vsel %vm470, %v3130, %v4236
    %v4241 = vsub.f32 %v3129, %v3544
    %v4242 = vsub.f32 %v3130, %v3829
    %4245 = vrot.lane.b32.xlu0 %v4241, 96
    %v4246 = vpop.permute.xlu0 %4245
    %4247 = vrot.lane.b32.xlu0 %v4242, 96
    %v4248 = vpop.permute.xlu0 %4247
    %v4251 = vsel %vm470, %v3129, %v4246
    %v4252 = vsel %vm470, %v3130, %v4248
    %v4253 = vmul.f32 %v3129, %v3544
    %v4254 = vmul.f32 %v3130, %v3829
    %4257 = vrot.lane.b32.xlu0 %v4253, 96
    %v4258 = vpop.permute.xlu0 %4257
    %4259 = vrot.lane.b32.xlu0 %v4254, 96
    %v4260 = vpop.permute.xlu0 %4259
    %v4263 = vsel %vm470, %v3129, %v4258
    %v4264 = vsel %vm470, %v3130, %v4260
    %v4265 = vsel %vm441, %v4234, 0
    %v4267 = vsel %vm441, %v4236, 0
    %v4269 = vsel %vm441, %v4246, 0
    %v4271 = vsel %vm441, %v4248, 0
    %v4273 = vsel %vm441, %v4258, 0
    %v4275 = vsel %vm441, %v4260, 0
    %4277 = vmatprep.subr.mxu0 0.0
    %4278 = vmatpush1.msra.mxu0 %v2504
    %4279 = vmatprep.subr.mxu0 0.0
    %4280 = vmatpush1.msra.mxu0 %v2503
    %4281 = vmatprep.subr.mxu0 0.0
    %4282 = vmatpush1.msra.mxu0 %v2502
    %4283 = vmatprep.subr.mxu0 0.0
    %4284 = vmatpush1.msra.mxu0 %v2501
    %4285 = vmatprep.subr.mxu0 0.0
    %4286 = vmatpush1.msra.mxu0 %v2500
    %4287 = vmatprep.subr.mxu0 0.0
    %4288 = vmatpush1.msra.mxu0 %v2499
    %4289 = vmatprep.subr.mxu0 0.0
    %4290 = vmatpush1.msra.mxu0 %v2498
    %4291 = vmatprep.subr.mxu0 0.0
    %4292 = vmatpush1.msra.mxu0 %v2497
    %4293 = vmatprep.subr.mxu0 0.0
    %4294 = vmatpush1.msra.mxu0 %v2496
    %4295 = vmatprep.subr.mxu0 0.0
    %4296 = vmatpush1.msra.mxu0 %v2495
    %4297 = vmatprep.subr.mxu0 0.0
    %4298 = vmatpush1.msra.mxu0 %v2494
    %4299 = vmatprep.subr.mxu0 0.0
    %4300 = vmatpush1.msra.mxu0 %v2493
    %4301 = vmatprep.subr.mxu0 0.0
    %4302 = vmatpush1.msra.mxu0 %v2492
    %4303 = vmatprep.subr.mxu0 0.0
    %4304 = vmatpush1.msra.mxu0 %v2491
    %4305 = vmatprep.subr.mxu0 0.0
    %4306 = vmatpush1.msra.mxu0 %v2490
    %4307 = vmatprep.subr.mxu0 0.0
    %4308 = vmatpush1.msra.mxu0 %v2489
    %4309 = vmatprep.subr.mxu0 0.0
    %4310 = vmatpush2.msra.mxu0 0.0
    %4311 = vmatprep.subr.mxu0 0.0
    %4312 = vmatpush2.msra.mxu0 0.0
    %4313 = vmatprep.subr.mxu0 0.0
    %4314 = vmatpush2.msra.mxu0 0.0
    %4315 = vmatprep.subr.mxu0 0.0
    %4316 = vmatpush2.msra.mxu0 0.0
    %4317 = vmatprep.subr.mxu0 0.0
    %4318 = vmatpush2.msra.mxu0 0.0
    %4319 = vmatprep.subr.mxu0 0.0
    %4320 = vmatpush2.msra.mxu0 0.0
    %4321 = vmatprep.subr.mxu0 0.0
    %4322 = vmatpush2.msra.mxu0 0.0
    %4323 = vmatprep.subr.mxu0 0.0
    %4324 = vmatpush2.msra.mxu0 0.0
    %4325 = vmatprep.subr.mxu0 0.0
    %4326 = vmatpush2.msra.mxu0 %v2512
    %4327 = vmatprep.subr.mxu0 0.0
    %4328 = vmatpush2.msra.mxu0 %v2511
    %4329 = vmatprep.subr.mxu0 0.0
    %4330 = vmatpush2.msra.mxu0 %v2510
    %4331 = vmatprep.subr.mxu0 0.0
    %4332 = vmatpush2.msra.mxu0 %v2509
    %4333 = vmatprep.subr.mxu0 0.0
    %4334 = vmatpush2.msra.mxu0 %v2508
    %4335 = vmatprep.subr.mxu0 0.0
    %4336 = vmatpush2.msra.mxu0 %v2507
    %4337 = vmatprep.subr.mxu0 0.0
    %4338 = vmatpush2.msra.mxu0 %v2506
    %4339 = vmatprep.subr.mxu0 0.0
    %4340 = vmatpush2.msra.mxu0 %v2505
    %4341 = vmatprep.mubr.f32.mxu0 %v4265
    %4342 = vmatmul.mubr.f32.gmra.mxu0 %v4239
    %v4343 = vpop.f32.mrf.mxu0
    %v4344 = vadd.f32 %v3943, %v4343
    %v4345 = vpop.f32.mrf.mxu0
    %4346 = vmatprep.mubr.f32.mxu0 %v4267
    %4347 = vmatmul.mubr.f32.gmra.mxu0 %v4240
    %v4348 = vpop.f32.mrf.mxu0
    %v4349 = vadd.f32 %v3943, %v4348
    %v4350 = vpop.f32.mrf.mxu0
    %4351 = vmatprep.mubr.f32.mxu0 %v4269
    %4352 = vmatmul.mubr.f32.gmra.mxu0 %v4251
    %v4353 = vpop.f32.mrf.mxu0
    %v4354 = vadd.f32 %v3943, %v4353
    %v4355 = vpop.f32.mrf.mxu0
    %4356 = vmatprep.mubr.f32.mxu0 %v4271
    %4357 = vmatmul.mubr.f32.gmra.mxu0 %v4252
    %v4358 = vpop.f32.mrf.mxu0
    %v4359 = vadd.f32 %v3943, %v4358
    %v4360 = vpop.f32.mrf.mxu0
    %4361 = vmatprep.mubr.f32.mxu0 %v4273
    %4362 = vmatmul.mubr.f32.gmra.mxu0 %v4263
    %v4363 = vpop.f32.mrf.mxu0
    %v4364 = vadd.f32 %v3943, %v4363
    %v4365 = vpop.f32.mrf.mxu0
    %4366 = vmatprep.mubr.f32.mxu0 %v4275
    %4367 = vmatmul.mubr.f32.gmra.mxu0 %v4264
    %v4368 = vpop.f32.mrf.mxu0
    %v4369 = vadd.f32 %v3943, %v4368
    %v4370 = vpop.f32.mrf.mxu0
    %4371 = vdwg.mxu0
    %v4372 = vmul.f32 %v4344, 0.5
    %v4373 = vmul.f32 %v4349, 0.5
    %v4374 = vmul.f32 %v4354, 0.5
    %v4375 = vmul.f32 %v4359, 0.5
    %v4376 = vmul.f32 %v4364, 0.5
    %v4377 = vmul.f32 %v4369, 0.5
    %v4378 = vmul.f32 %v4344, 0.7978846
    %v4379 = vmul.f32 %v4349, 0.7978846
    %v4380 = vmul.f32 %v4354, 0.7978846
    %v4381 = vmul.f32 %v4359, 0.7978846
    %v4382 = vmul.f32 %v4364, 0.7978846
    %v4383 = vmul.f32 %v4369, 0.7978846
    %v4384 = vmul.f32 %v4344, 0.044715
    %v4385 = vmul.f32 %v4349, 0.044715
    %v4386 = vmul.f32 %v4354, 0.044715
    %v4387 = vmul.f32 %v4359, 0.044715
    %v4388 = vmul.f32 %v4364, 0.044715
    %v4389 = vmul.f32 %v4369, 0.044715
    %v4390 = vmul.f32 %v4384, %v4344
    %v4391 = vmul.f32 %v4385, %v4349
    %v4392 = vmul.f32 %v4386, %v4354
    %v4393 = vmul.f32 %v4387, %v4359
    %v4394 = vmul.f32 %v4388, %v4364
    %v4395 = vmul.f32 %v4389, %v4369
    %v4396 = vadd.f32 %v4390, 1.0
    %v4397 = vadd.f32 %v4391, 1.0
    %v4398 = vadd.f32 %v4392, 1.0
    %v4399 = vadd.f32 %v4393, 1.0
    %v4400 = vadd.f32 %v4394, 1.0
    %v4401 = vadd.f32 %v4395, 1.0
    %v4402 = vmul.f32 %v4378, %v4396
    %v4403 = vmul.f32 %v4379, %v4397
    %v4404 = vmul.f32 %v4380, %v4398
    %v4405 = vmul.f32 %v4381, %v4399
    %v4406 = vmul.f32 %v4382, %v4400
    %v4407 = vmul.f32 %v4383, %v4401
    %v4408 = vtanh.pop %v4402
    %v4409 = vtanh.pop %v4403
    %v4410 = vtanh.pop %v4404
    %v4411 = vtanh.pop %v4405
    %v4412 = vtanh.pop %v4406
    %v4413 = vtanh.pop %v4407
    %v4414 = vadd.f32 %v4408, 1.0
    %v4415 = vadd.f32 %v4409, 1.0
    %v4416 = vadd.f32 %v4410, 1.0
    %v4417 = vadd.f32 %v4411, 1.0
    %v4418 = vadd.f32 %v4412, 1.0
    %v4419 = vadd.f32 %v4413, 1.0
    %v4420 = vmul.f32 %v4372, %v4414
    %v4421 = vmul.f32 %v4373, %v4415
    %v4422 = vmul.f32 %v4374, %v4416
    %v4423 = vmul.f32 %v4375, %v4417
    %v4424 = vmul.f32 %v4376, %v4418
    %v4425 = vmul.f32 %v4377, %v4419
    %4428 = vrot.lane.b32.xlu0 %v4422, 32
    %v4429 = vpop.permute.xlu0 %4428
    %4430 = vrot.lane.b32.xlu0 %v4423, 32
    %v4431 = vpop.permute.xlu0 %4430
    %4436 = vrot.lane.b32.xlu0 %v4424, 64
    %v4437 = vpop.permute.xlu0 %4436
    %4438 = vrot.lane.b32.xlu0 %v4425, 64
    %v4439 = vpop.permute.xlu0 %4438
    %v4442 = vsel %vm439, %v4420, %v4429
    %v4443 = vsel %vm439, %v4421, %v4431
    %v4444 = vsel %vm441, %v4442, %v4437
    %v4445 = vsel %vm441, %v4443, %v4439
    %v4447 = vsel %vm470, %v4444, 0
    %v4450 = vsel %vm470, %v4445, 0
    %4452 = vmatprep.subr.mxu0 0.0
    %4453 = vmatpush1.msra.mxu0 0.0
    %4454 = vmatprep.subr.mxu0 0.0
    %4455 = vmatpush1.msra.mxu0 0.0
    %4456 = vmatprep.subr.mxu0 0.0
    %4457 = vmatpush1.msra.mxu0 0.0
    %4458 = vmatprep.subr.mxu0 0.0
    %4459 = vmatpush1.msra.mxu0 0.0
    %4460 = vmatprep.subr.mxu0 0.0
    %4461 = vmatpush1.msra.mxu0 %v2525
    %4462 = vmatprep.subr.mxu0 0.0
    %4463 = vmatpush1.msra.mxu0 %v2524
    %4464 = vmatprep.subr.mxu0 0.0
    %4465 = vmatpush1.msra.mxu0 %v2523
    %4466 = vmatprep.subr.mxu0 0.0
    %4467 = vmatpush1.msra.mxu0 %v2522
    %4468 = vmatprep.subr.mxu0 0.0
    %4469 = vmatpush1.msra.mxu0 %v2521
    %4470 = vmatprep.subr.mxu0 0.0
    %4471 = vmatpush1.msra.mxu0 %v2520
    %4472 = vmatprep.subr.mxu0 0.0
    %4473 = vmatpush1.msra.mxu0 %v2519
    %4474 = vmatprep.subr.mxu0 0.0
    %4475 = vmatpush1.msra.mxu0 %v2518
    %4476 = vmatprep.subr.mxu0 0.0
    %4477 = vmatpush1.msra.mxu0 %v2517
    %4478 = vmatprep.subr.mxu0 0.0
    %4479 = vmatpush1.msra.mxu0 %v2516
    %4480 = vmatprep.subr.mxu0 0.0
    %4481 = vmatpush1.msra.mxu0 %v2515
    %4482 = vmatprep.subr.mxu0 0.0
    %4483 = vmatpush1.msra.mxu0 %v2514
    %4484 = vmatprep.subr.mxu0 0.0
    %4485 = vmatpush2.msra.mxu0 0.0
    %4486 = vmatprep.subr.mxu0 0.0
    %4487 = vmatpush2.msra.mxu0 0.0
    %4488 = vmatprep.subr.mxu0 0.0
    %4489 = vmatpush2.msra.mxu0 0.0
    %4490 = vmatprep.subr.mxu0 0.0
    %4491 = vmatpush2.msra.mxu0 0.0
    %4492 = vmatprep.subr.mxu0 0.0
    %4493 = vmatpush2.msra.mxu0 0.0
    %4494 = vmatprep.subr.mxu0 0.0
    %4495 = vmatpush2.msra.mxu0 0.0
    %4496 = vmatprep.subr.mxu0 0.0
    %4497 = vmatpush2.msra.mxu0 0.0
    %4498 = vmatprep.subr.mxu0 0.0
    %4499 = vmatpush2.msra.mxu0 0.0
    %4500 = vmatprep.subr.mxu0 0.0
    %4501 = vmatpush2.msra.mxu0 0.0
    %4502 = vmatprep.subr.mxu0 0.0
    %4503 = vmatpush2.msra.mxu0 0.0
    %4504 = vmatprep.subr.mxu0 0.0
    %4505 = vmatpush2.msra.mxu0 0.0
    %4506 = vmatprep.subr.mxu0 0.0
    %4507 = vmatpush2.msra.mxu0 0.0
    %4508 = vmatprep.subr.mxu0 0.0
    %4509 = vmatpush2.msra.mxu0 0.0
    %4510 = vmatprep.subr.mxu0 0.0
    %4511 = vmatpush2.msra.mxu0 0.0
    %4512 = vmatprep.subr.mxu0 0.0
    %4513 = vmatpush2.msra.mxu0 0.0
    %4514 = vmatprep.subr.mxu0 0.0
    %4515 = vmatpush2.msra.mxu0 0.0
    %4516 = vmatprep.mubr.f32.mxu0 0.0
    %4517 = vmatmul.mubr.f32.gmra.mxu0 %v4447
    %v4518 = vpop.f32.mrf.mxu0
    %v4519 = vadd.f32 %v4130, %v4518
    %v4520 = vpop.f32.mrf.mxu0
    %4521 = vmatprep.mubr.f32.mxu0 0.0
    %4522 = vmatmul.mubr.f32.gmra.mxu0 %v4450
    %v4523 = vpop.f32.mrf.mxu0
    %v4524 = vadd.f32 %v4130, %v4523
    %v4525 = vpop.f32.mrf.mxu0
    %4526 = vdwg.mxu0
    %v4527 = vmul.f32 %v4519, 0.5
    %v4528 = vmul.f32 %v4524, 0.5
    %v4529 = vmul.f32 %v4519, 0.7978846
    %v4530 = vmul.f32 %v4524, 0.7978846
    %v4531 = vmul.f32 %v4519, 0.044715
    %v4532 = vmul.f32 %v4524, 0.044715
    %v4533 = vmul.f32 %v4531, %v4519
    %v4534 = vmul.f32 %v4532, %v4524
    %v4535 = vadd.f32 %v4533, 1.0
    %v4536 = vadd.f32 %v4534, 1.0
    %v4537 = vmul.f32 %v4529, %v4535
    %v4538 = vmul.f32 %v4530, %v4536
    %v4539 = vtanh.pop %v4537
    %v4540 = vtanh.pop %v4538
    %v4541 = vadd.f32 %v4539, 1.0
    %v4542 = vadd.f32 %v4540, 1.0
    %v4543 = vmul.f32 %v4527, %v4541
    %v4544 = vmul.f32 %v4528, %v4542
    %v4545 = vld [vmem:[%s55] sm:$0xff]
    %v4546 = vld [vmem:[%s55 + $0x8] sm:$0xff]
    %v4547 = vld [vmem:[%s55 + $0x10] sm:$0xff]
    %v4548 = vld [vmem:[%s55 + $0x18] sm:$0xff]
    %v4549 = vld [vmem:[%s55 + $0x20] sm:$0xff]
    %v4550 = vld [vmem:[%s55 + $0x28] sm:$0xff]
    %v4551 = vld [vmem:[%s55 + $0x30] sm:$0xff]
    %v4552 = vld [vmem:[%s55 + $0x38] sm:$0xff]
    %v4553 = vld [vmem:[%s55 + $0x40] sm:$0xff]
    %v4554 = vld [vmem:[%s55 + $0x48] sm:$0xff]
    %v4555 = vld [vmem:[%s55 + $0x50] sm:$0xff]
    %v4556 = vld [vmem:[%s55 + $0x58] sm:$0xff]
    %v4557 = vld [vmem:[%s55 + $0x60] sm:$0xff]
    %v4558 = vld [vmem:[%s55 + $0x68] sm:$0xff]
    %v4559 = vld [vmem:[%s55 + $0x70] sm:$0xff]
    %v4560 = vld [vmem:[%s55 + $0x78] sm:$0xff]
    %v4561 = vld [vmem:[%s57] sm:$0x1]
    %v4562 = vld [vmem:[%s59] sm:$0xff]
    %v4563 = vld [vmem:[%s59 + $0x8] sm:$0xff]
    %v4564 = vld [vmem:[%s59 + $0x10] sm:$0xff]
    %v4565 = vld [vmem:[%s59 + $0x18] sm:$0xff]
    %v4566 = vld [vmem:[%s61] sm:$0x1]
    %vm4567 = vcmp.gt.f32.partialorder %v135, 0.0
    %v4568 = vsel %vm4567, 1, 0
    %4569 = vset.pattern.permute.xlu0 0
    %4570 = vperm.xlu0 %4569, %v4568
    %v4571 = vpop.permute.xlu0 %4570
    %vm4572 = vcmp.eq.s32.totalorder %v4571, 1
    %v4573 = vsel %vm4572, %v4229, -10000000.0
    %v4574 = vsel %vm439, %v4573, -inf
    %v4575 = vrot.slane %v4574, 4
    %v4576 = vmax.f32 %v4574, %v4575
    %v4577 = vrot.slane %v4576, 2
    %v4578 = vmax.f32 %v4576, %v4577
    %v4579 = vrot.slane %v4578, 1
    %v4580 = vmax.f32 %v4578, %v4579
    %vm4581 = vcmp.gt.f32.partialorder %v136, 0.0
    %v4582 = vsel %vm4581, 1, 0
    %4583 = vset.pattern.permute.xlu0 0
    %4584 = vperm.xlu0 %4583, %v4582
    %v4585 = vpop.permute.xlu0 %4584
    %vm4586 = vcmp.eq.s32.totalorder %v4585, 1
    %v4587 = vsel %vm4586, %v4230, -10000000.0
    %v4588 = vsel %vm439, %v4587, -inf
    %v4589 = vrot.slane %v4588, 4
    %v4590 = vmax.f32 %v4588, %v4589
    %v4591 = vrot.slane %v4590, 2
    %v4592 = vmax.f32 %v4590, %v4591
    %v4593 = vrot.slane %v4592, 1
    %v4594 = vmax.f32 %v4592, %v4593
    %v4595 = vsel %vm420, %v4580, %v4594
    %vm4596 = vcmp.gt.f32.partialorder %v137, 0.0
    %v4597 = vsel %vm4596, 1, 0
    %4598 = vset.pattern.permute.xlu0 0
    %4599 = vperm.xlu0 %4598, %v4597
    %v4600 = vpop.permute.xlu0 %4599
    %vm4601 = vcmp.eq.s32.totalorder %v4600, 1
    %v4602 = vsel %vm4601, %v4543, -10000000.0
    %v4603 = vsel %vm439, %v4602, -inf
    %v4604 = vrot.slane %v4603, 4
    %v4605 = vmax.f32 %v4603, %v4604
    %v4606 = vrot.slane %v4605, 2
    %v4607 = vmax.f32 %v4605, %v4606
    %v4608 = vrot.slane %v4607, 1
    %v4609 = vmax.f32 %v4607, %v4608
    %vm4610 = vcmp.gt.f32.partialorder %v138, 0.0
    %v4611 = vsel %vm4610, 1, 0
    %4612 = vset.pattern.permute.xlu0 0
    %4613 = vperm.xlu0 %4612, %v4611
    %v4614 = vpop.permute.xlu0 %4613
    %vm4615 = vcmp.eq.s32.totalorder %v4614, 1
    %v4616 = vsel %vm4615, %v4544, -10000000.0
    %v4617 = vsel %vm439, %v4616, -inf
    %v4618 = vrot.slane %v4617, 4
    %v4619 = vmax.f32 %v4617, %v4618
    %v4620 = vrot.slane %v4619, 2
    %v4621 = vmax.f32 %v4619, %v4620
    %v4622 = vrot.slane %v4621, 1
    %v4623 = vmax.f32 %v4621, %v4622
    %v4624 = vsel %vm420, %v4609, %v4623
    %v4625 = vsub.f32 %v4595, %v4624
    %v4626 = vmul.f32 %v4595, %v4624
    %4628 = vrot.lane.b32.xlu0 %v4624, 32
    %v4629 = vpop.permute.xlu0 %4628
    %4632 = vrot.lane.b32.xlu0 %v4625, 64
    %v4633 = vpop.permute.xlu0 %4632
    %4636 = vrot.lane.b32.xlu0 %v4626, 96
    %v4637 = vpop.permute.xlu0 %4636
    %v4639 = vsel %vm439, %v4595, %v4629
    %v4640 = vsel %vm441, %v4639, %v4633
    %v4641 = vsel %vm470, %v4640, %v4637
    %v4643 = vlaneseq
    %v4644 = vshrl.u32 %v4643, 7
    %v4645 = vsub.s32 0, %v4644
    %v4646 = vrot.slane %v4561, %v4645
    %4648 = vmatprep.subr.mxu0 0.0
    %4649 = vmatpush1.msra.mxu0 %v4560
    %4650 = vmatprep.subr.mxu0 0.0
    %4651 = vmatpush1.msra.mxu0 %v4559
    %4652 = vmatprep.subr.mxu0 0.0
    %4653 = vmatpush1.msra.mxu0 %v4558
    %4654 = vmatprep.subr.mxu0 0.0
    %4655 = vmatpush1.msra.mxu0 %v4557
    %4656 = vmatprep.subr.mxu0 0.0
    %4657 = vmatpush1.msra.mxu0 %v4556
    %4658 = vmatprep.subr.mxu0 0.0
    %4659 = vmatpush1.msra.mxu0 %v4555
    %4660 = vmatprep.subr.mxu0 0.0
    %4661 = vmatpush1.msra.mxu0 %v4554
    %4662 = vmatprep.subr.mxu0 0.0
    %4663 = vmatpush1.msra.mxu0 %v4553
    %4664 = vmatprep.subr.mxu0 0.0
    %4665 = vmatpush1.msra.mxu0 %v4552
    %4666 = vmatprep.subr.mxu0 0.0
    %4667 = vmatpush1.msra.mxu0 %v4551
    %4668 = vmatprep.subr.mxu0 0.0
    %4669 = vmatpush1.msra.mxu0 %v4550
    %4670 = vmatprep.subr.mxu0 0.0
    %4671 = vmatpush1.msra.mxu0 %v4549
    %4672 = vmatprep.subr.mxu0 0.0
    %4673 = vmatpush1.msra.mxu0 %v4548
    %4674 = vmatprep.subr.mxu0 0.0
    %4675 = vmatpush1.msra.mxu0 %v4547
    %4676 = vmatprep.subr.mxu0 0.0
    %4677 = vmatpush1.msra.mxu0 %v4546
    %4678 = vmatprep.subr.mxu0 0.0
    %4679 = vmatpush1.msra.mxu0 %v4545
    %4680 = vmatprep.subr.mxu0 0.0
    %4681 = vmatpush2.msra.mxu0 0.0
    %4682 = vmatprep.subr.mxu0 0.0
    %4683 = vmatpush2.msra.mxu0 0.0
    %4684 = vmatprep.subr.mxu0 0.0
    %4685 = vmatpush2.msra.mxu0 0.0
    %4686 = vmatprep.subr.mxu0 0.0
    %4687 = vmatpush2.msra.mxu0 0.0
    %4688 = vmatprep.subr.mxu0 0.0
    %4689 = vmatpush2.msra.mxu0 0.0
    %4690 = vmatprep.subr.mxu0 0.0
    %4691 = vmatpush2.msra.mxu0 0.0
    %4692 = vmatprep.subr.mxu0 0.0
    %4693 = vmatpush2.msra.mxu0 0.0
    %4694 = vmatprep.subr.mxu0 0.0
    %4695 = vmatpush2.msra.mxu0 0.0
    %4696 = vmatprep.subr.mxu0 0.0
    %4697 = vmatpush2.msra.mxu0 0.0
    %4698 = vmatprep.subr.mxu0 0.0
    %4699 = vmatpush2.msra.mxu0 0.0
    %4700 = vmatprep.subr.mxu0 0.0
    %4701 = vmatpush2.msra.mxu0 0.0
    %4702 = vmatprep.subr.mxu0 0.0
    %4703 = vmatpush2.msra.mxu0 0.0
    %4704 = vmatprep.subr.mxu0 0.0
    %4705 = vmatpush2.msra.mxu0 0.0
    %4706 = vmatprep.subr.mxu0 0.0
    %4707 = vmatpush2.msra.mxu0 0.0
    %4708 = vmatprep.subr.mxu0 0.0
    %4709 = vmatpush2.msra.mxu0 0.0
    %4710 = vmatprep.subr.mxu0 0.0
    %4711 = vmatpush2.msra.mxu0 0.0
    %4712 = vmatprep.mubr.f32.mxu0 0.0
    %4713 = vmatmul.mubr.f32.gmra.mxu0 %v4641
    %v4714 = vpop.f32.mrf.mxu0
    %v4715 = vadd.f32 %v4646, %v4714
    %v4716 = vpop.f32.mrf.mxu0
    %4717 = vdwg.mxu0
    %v4718 = vmul.f32 %v4715, 0.5
    %v4719 = vmul.f32 %v4715, 0.7978846
    %v4720 = vmul.f32 %v4715, 0.044715
    %v4721 = vmul.f32 %v4720, %v4715
    %v4722 = vadd.f32 %v4721, 1.0
    %v4723 = vmul.f32 %v4719, %v4722
    %v4724 = vtanh.pop %v4723
    %v4725 = vadd.f32 %v4724, 1.0
    %v4726 = vmul.f32 %v4718, %v4725
    %v4728 = vlaneseq
    %v4729 = vshrl.u32 %v4728, 7
    %v4730 = vsub.s32 0, %v4729
    %v4731 = vrot.slane %v4566, %v4730
    %v4734 = vsel %vm439, %v4726, 0
    %4736 = vmatprep.subr.mxu0 0.0
    %4737 = vmatpush1.msra.mxu0 0.0
    %4738 = vmatprep.subr.mxu0 0.0
    %4739 = vmatpush1.msra.mxu0 0.0
    %4740 = vmatprep.subr.mxu0 0.0
    %4741 = vmatpush1.msra.mxu0 0.0
    %4742 = vmatprep.subr.mxu0 0.0
    %4743 = vmatpush1.msra.mxu0 0.0
    %4744 = vmatprep.subr.mxu0 0.0
    %4745 = vmatpush1.msra.mxu0 0.0
    %4746 = vmatprep.subr.mxu0 0.0
    %4747 = vmatpush1.msra.mxu0 0.0
    %4748 = vmatprep.subr.mxu0 0.0
    %4749 = vmatpush1.msra.mxu0 0.0
    %4750 = vmatprep.subr.mxu0 0.0
    %4751 = vmatpush1.msra.mxu0 0.0
    %4752 = vmatprep.subr.mxu0 0.0
    %4753 = vmatpush1.msra.mxu0 0.0
    %4754 = vmatprep.subr.mxu0 0.0
    %4755 = vmatpush1.msra.mxu0 0.0
    %4756 = vmatprep.subr.mxu0 0.0
    %4757 = vmatpush1.msra.mxu0 0.0
    %4758 = vmatprep.subr.mxu0 0.0
    %4759 = vmatpush1.msra.mxu0 0.0
    %4760 = vmatprep.subr.mxu0 0.0
    %4761 = vmatpush1.msra.mxu0 %v4565
    %4762 = vmatprep.subr.mxu0 0.0
    %4763 = vmatpush1.msra.mxu0 %v4564
    %4764 = vmatprep.subr.mxu0 0.0
    %4765 = vmatpush1.msra.mxu0 %v4563
    %4766 = vmatprep.subr.mxu0 0.0
    %4767 = vmatpush1.msra.mxu0 %v4562
    %4768 = vmatprep.subr.mxu0 0.0
    %4769 = vmatpush2.msra.mxu0 0.0
    %4770 = vmatprep.subr.mxu0 0.0
    %4771 = vmatpush2.msra.mxu0 0.0
    %4772 = vmatprep.subr.mxu0 0.0
    %4773 = vmatpush2.msra.mxu0 0.0
    %4774 = vmatprep.subr.mxu0 0.0
    %4775 = vmatpush2.msra.mxu0 0.0
    %4776 = vmatprep.subr.mxu0 0.0
    %4777 = vmatpush2.msra.mxu0 0.0
    %4778 = vmatprep.subr.mxu0 0.0
    %4779 = vmatpush2.msra.mxu0 0.0
    %4780 = vmatprep.subr.mxu0 0.0
    %4781 = vmatpush2.msra.mxu0 0.0
    %4782 = vmatprep.subr.mxu0 0.0
    %4783 = vmatpush2.msra.mxu0 0.0
    %4784 = vmatprep.subr.mxu0 0.0
    %4785 = vmatpush2.msra.mxu0 0.0
    %4786 = vmatprep.subr.mxu0 0.0
    %4787 = vmatpush2.msra.mxu0 0.0
    %4788 = vmatprep.subr.mxu0 0.0
    %4789 = vmatpush2.msra.mxu0 0.0
    %4790 = vmatprep.subr.mxu0 0.0
    %4791 = vmatpush2.msra.mxu0 0.0
    %4792 = vmatprep.subr.mxu0 0.0
    %4793 = vmatpush2.msra.mxu0 0.0
    %4794 = vmatprep.subr.mxu0 0.0
    %4795 = vmatpush2.msra.mxu0 0.0
    %4796 = vmatprep.subr.mxu0 0.0
    %4797 = vmatpush2.msra.mxu0 0.0
    %4798 = vmatprep.subr.mxu0 0.0
    %4799 = vmatpush2.msra.mxu0 0.0
    %4800 = vmatprep.mubr.f32.mxu0 0.0
    %4801 = vmatmul.mubr.f32.gmra.mxu0 %v4734
    %v4802 = vpop.f32.mrf.mxu0
    %v4803 = vadd.f32 %v4731, %v4802
    %v4804 = vpop.f32.mrf.mxu0
    %4805 = vdwg.mxu0
    %vm4806 = vcmask 9216
    %4807 = vst.msk [vmem:[#allocation2] sm:$0x3] %vm4806, %v4803
    // Predicated region
    $region126: #{re2_forward.1} parent=1 // pred_check
      _
    $region127: #{re2_forward.1} parent=1 // pred_check_branch
      %4809 = sbr.rel (0) target = $region129
    $region128: #{re2_forward.1} parent=1 // pred_region
      %s4811 = ssub.s32 32, 32
      %4812 = vsyncadd [#allocation3], %s4811
      %s4814 = sshll.u32 [#allocation2], 4
      %s4815 = int_to_ptr.vmem [resolvable:$true] %s4814
      %4817 = dma.vmem_to_hbm [thread:$0]  %s4815, 32, %s63, [#allocation3]
    $region129: #{re2_forward.1} parent=1 // pred_fallthru
      _
    // Predicated region
    $region130: #{re2_forward.1} parent=1 // pred_check
      _
    $region131: #{re2_forward.1} parent=1 // pred_check_branch
      %4819 = sbr.rel (0) target = $region133
    $region132: #{re2_forward.1} parent=1 // pred_region
      %4820 = dma.done [#allocation3], 32
    $region133: #{re2_forward.1} parent=1 // pred_fallthru
      _
    %4821 = vsyncpa [#allocation3], 1

</llo_original>
